<compile_context>
chip_gen: v7x
topology: tpu7x:2x2x1
jax: 0.10.0
libtpu: 0.0.40
codegen_flags: <defaults>
</compile_context>

<pallas_src>
import jax
import jax.numpy as jnp
from jax.experimental import pallas as pl
from jax.experimental.pallas import tpu as pltpu
from jax.scipy.linalg import block_diag


def transfer_kernel(x_ref, a_ref, we_ref, be_ref, w_ref, b_ref,
                    mean_ref, wf_ref, bf_ref, out_ref):
    f32 = jnp.float32
    cd = x_ref.dtype                       # compute (MXU operand) dtype, e.g. bfloat16

    x = x_ref[...]                         # (M, F)   cd   -- flattened (B*N, F)
    A = a_ref[...]                         # (M, M)   cd   -- block-diagonal over batches

    # fused embedding of both branches: (M, 2C), f32 accumulation on the MXU
    h = jnp.dot(x, we_ref[...], preferred_element_type=f32) + be_ref[...]

    n_layers = w_ref.shape[0]
    for l in range(n_layers):              # static unroll: short fixed trip count
        w = w_ref[l]                       # (2C, 2C) cd   -- block-diag(w1[l], w2[l])
        b = b_ref[l]                       # (1, 2C)  f32
        h = jnp.dot(h.astype(cd), w, preferred_element_type=f32) + b
        h = jnp.dot(A, h.astype(cd), preferred_element_type=f32)   # A @ h (all batches)
        h = jnp.maximum(h, 0.0)            # ReLU in f32

    # per-batch mean over nodes as a matmul: (B, M) @ (M, 2C) -> (B, 2C)
    pooled = jnp.dot(mean_ref[...], h.astype(cd), preferred_element_type=f32)
    # fc_final on the (implicitly concatenated) 2C channels
    out = (jnp.dot(pooled.astype(cd), wf_ref[...], preferred_element_type=f32)
           + bf_ref[...])
    out_ref[...] = out.astype(out_ref.dtype)


def _block_diag_stack(w1, w2):
    """(L, C, C), (L, C, C) -> (L, 2C, 2C) per-layer block-diagonal weights."""
    top = jnp.concatenate([w1, jnp.zeros_like(w1)], axis=2)
    bot = jnp.concatenate([jnp.zeros_like(w2), w2], axis=2)
    return jnp.concatenate([top, bot], axis=1)


def transfer_forward(x, A, params, compute_dtype=jnp.bfloat16):
    B, N, F = x.shape
    L = params['w1'].shape[0]
    assert params['w2'].shape[0] == L, "channel-axis fusion assumes equal layer counts"
    M = B * N
    cd = compute_dtype
    f32 = jnp.float32

    # flatten (B, N) -> M rows; one 2D matmul per op instead of B batched tiny ones
    x_flat = x.reshape(M, F).astype(cd)

    # block-diagonal adjacency: one (M, M) matmul per layer (off-diag blocks exactly 0)
    A_bd = block_diag(*[A[b] for b in range(B)]).astype(cd)

    # fuse the two branches along the channel axis (2C lanes -> fills the 256-wide MXU)
    we_f = jnp.concatenate([params['we1'], params['we2']], axis=1).astype(cd)   # (F, 2C)
    be_f = jnp.concatenate([params['be1'], params['be2']], axis=1).astype(f32)  # (1, 2C)
    w_f = _block_diag_stack(params['w1'], params['w2']).astype(cd)              # (L,2C,2C)
    b_f = jnp.concatenate([params['b1'], params['b2']], axis=2).astype(f32)     # (L,1,2C)
    wf_f = jnp.concatenate([params['wf1'], params['wf2']], axis=0).astype(cd)   # (2C, 1)
    bf = params['bf'].astype(f32)                                               # (1, 1)

    # node-mean pooling matrix: row b has 1/N over batch b's node rows (1/N exact in bf16)
    mean_mat = jnp.kron(jnp.eye(B, dtype=f32),
                        jnp.full((1, N), 1.0 / N, f32)).astype(cd)              # (B, M)

    args = (x_flat, A_bd, we_f, be_f, w_f, b_f, mean_mat, wf_f, bf)
    vmem = pl.BlockSpec(memory_space=pltpu.MemorySpace.VMEM)
    # TODO(synk): add a batch/node grid with BlockSpec tiling (weights on a constant
    # index_map) once B*N grows beyond VMEM-resident sizes (v7x scoped default 32 MiB).
    return pl.pallas_call(
        transfer_kernel,
        out_shape=jax.ShapeDtypeStruct((B, 1), f32),
        in_specs=[vmem] * len(args),
        out_specs=vmem,
    )(*args)


def init_params(key, in_feat=16, n_channel=128, n_layers1=10, n_layers2=10):
    ks = jax.random.split(key, 10)
    s_in = 1.0 / jnp.sqrt(jnp.float32(in_feat))
    s_c = 1.0 / jnp.sqrt(jnp.float32(n_channel))
    s_f = 1.0 / jnp.sqrt(jnp.float32(2 * n_channel))
    u = lambda k, shape, s: jax.random.uniform(k, shape, jnp.float32, -s, s)
    wf = u(ks[8], (2 * n_channel, 1), s_f)
    return {
        'we1': u(ks[0], (in_feat, n_channel), s_in),
        'be1': u(ks[1], (1, n_channel), s_in),
        'w1':  u(ks[2], (n_layers1, n_channel, n_channel), s_c),
        'b1':  u(ks[3], (n_layers1, 1, n_channel), s_c),
        'we2': u(ks[4], (in_feat, n_channel), s_in),
        'be2': u(ks[5], (1, n_channel), s_in),
        'w2':  u(ks[6], (n_layers2, n_channel, n_channel), s_c),
        'b2':  u(ks[7], (n_layers2, 1, n_channel), s_c),
        'wf1': wf[:n_channel],
        'wf2': wf[n_channel:],
        'bf':  u(ks[9], (1, 1), s_f),
    }


def reference_forward_exact(x, A, p):
    """Pure-JAX f32 reference mirroring the torch forward exactly (semantics oracle)."""
    def branch(we, be, ws, bs):
        h = jnp.einsum('bnf,fc->bnc', x, we) + be
        for l in range(ws.shape[0]):
            h = jnp.einsum('bnc,cd->bnd', h, ws[l]) + bs[l]
            h = jnp.einsum('bnm,bmc->bnc', A, h)
            h = jnp.maximum(h, 0.0)
        return h
    h1 = branch(p['we1'], p['be1'], p['w1'], p['b1'])
    h2 = branch(p['we2'], p['be2'], p['w2'], p['b2'])
    m = jnp.concatenate([h1, h2], axis=2).mean(axis=1)
    wf = jnp.concatenate([p['wf1'], p['wf2']], axis=0)
    return m @ wf + p['bf']


def reference_forward(x, A, p, compute_dtype=jnp.bfloat16):
    """Torch-structured (unfused, per-branch, per-batch) reference using the kernel's
    mixed-precision discipline: matmul operands in compute_dtype, f32 accumulation,
    bias/ReLU in f32. Correctness oracle for the bf16-MXU kernel."""
    cd = compute_dtype
    f32 = jnp.float32
    A_c = A.astype(cd)
    x_c = x.astype(cd)

    def branch(we, be, ws, bs):
        h = jnp.einsum('bnf,fc->bnc', x_c, we.astype(cd),
                       preferred_element_type=f32) + be
        for l in range(ws.shape[0]):
            h = jnp.einsum('bnc,cd->bnd', h.astype(cd), ws[l].astype(cd),
                           preferred_element_type=f32) + bs[l]
            h = jnp.einsum('bnm,bmc->bnc', A_c, h.astype(cd),
                           preferred_element_type=f32)
            h = jnp.maximum(h, 0.0)
        return h

    h1 = branch(p['we1'], p['be1'], p['w1'], p['b1'])
    h2 = branch(p['we2'], p['be2'], p['w2'], p['b2'])
    h = jnp.concatenate([h1, h2], axis=2)                        # (B, N, 2C) f32
    m = jnp.mean(h.astype(cd).astype(f32), axis=1)               # pooling sees cd-rounded h
    wf = jnp.concatenate([p['wf1'], p['wf2']], axis=0)
    return jnp.einsum('bc,co->bo', m.astype(cd), wf.astype(cd),
                      preferred_element_type=f32) + p['bf']


if __name__ == "__main__":
    B, N, F, C = 2, 8, 16, 128          # small node count, module-default channel width
    L1, L2 = 10, 10                     # module defaults n_conv_layer1/2

    key = jax.random.PRNGKey(0)
    kx, ka, kp = jax.random.split(key, 3)
    x = jax.random.normal(kx, (B, N, F), jnp.float32)
    # row-normalized random adjacency keeps the deep ReLU stack numerically tame
    A_raw = jax.random.uniform(ka, (B, N, N), jnp.float32)
    A = A_raw / jnp.sum(A_raw, axis=-1, keepdims=True)
    params = init_params(kp, in_feat=F, n_channel=C, n_layers1=L1, n_layers2=L2)

    out = jax.block_until_ready(transfer_forward(x, A, params))
    ref = jax.block_until_ready(reference_forward(x, A, params))
    ref_f32 = jax.block_until_ready(reference_forward_exact(x, A, params))

    assert out.shape == (B, 1)
    # kernel vs mixed-precision oracle with identical cast points: should be ~exact
    assert jnp.allclose(out, ref, rtol=1e-2, atol=1e-2), (out, ref)
    # informational only (not asserted): drift of the bf16-MXU path vs pure-f32 forward
    _drift = float(jnp.max(jnp.abs(out - ref_f32)))
    print("KERNEL_OK")
</pallas_src>

<mosaic_0001>
module attributes {stable_mosaic.version = 11 : i64} {
  func.func @transfer_kernel(%arg0: memref<16x16xbf16, #tpu.memory_space<vmem>>, %arg1: memref<16x16xbf16, #tpu.memory_space<vmem>>, %arg2: memref<16x256xbf16, #tpu.memory_space<vmem>>, %arg3: memref<1x256xf32, #tpu.memory_space<vmem>>, %arg4: memref<10x256x256xbf16, #tpu.memory_space<vmem>>, %arg5: memref<10x1x256xf32, #tpu.memory_space<vmem>>, %arg6: memref<2x16xbf16, #tpu.memory_space<vmem>>, %arg7: memref<256x1xbf16, #tpu.memory_space<vmem>>, %arg8: memref<1x1xf32, #tpu.memory_space<vmem>>, %arg9: memref<2x1xf32, #tpu.memory_space<vmem>>) attributes {dimension_semantics = [], scalar_prefetch = 0 : i64, scratch_operands = 0 : i64, tpu.core_type = #tpu.core_type<tc>} {
    %c0 = arith.constant 0 : index
    %c0_0 = arith.constant 0 : index
    %0 = vector.load %arg0[%c0, %c0_0] : memref<16x16xbf16, #tpu.memory_space<vmem>>, vector<16x16xbf16>
    %c0_1 = arith.constant 0 : index
    %c0_2 = arith.constant 0 : index
    %1 = vector.load %arg1[%c0_1, %c0_2] : memref<16x16xbf16, #tpu.memory_space<vmem>>, vector<16x16xbf16>
    %c0_3 = arith.constant 0 : index
    %c0_4 = arith.constant 0 : index
    %2 = vector.load %arg2[%c0_3, %c0_4] : memref<16x256xbf16, #tpu.memory_space<vmem>>, vector<16x256xbf16>
    %cst = arith.constant dense<0.000000e+00> : vector<16x256xf32>
    %3 = tpu.matmul %0, %2, %cst {dimension_numbers = #tpu.dot_dimension_numbers<[1], [0], [0], [1], [0, 0, 1, 1], [], []>} : vector<16x16xbf16>, vector<16x256xbf16>, vector<16x256xf32> -> vector<16x256xf32>
    %c0_5 = arith.constant 0 : index
    %c0_6 = arith.constant 0 : index
    %4 = vector.load %arg3[%c0_5, %c0_6] : memref<1x256xf32, #tpu.memory_space<vmem>>, vector<1x256xf32>
    %5 = vector.broadcast %4 : vector<1x256xf32> to vector<16x256xf32>
    %6 = arith.addf %3, %5 : vector<16x256xf32>
    %c0_7 = arith.constant 0 : index
    %c0_8 = arith.constant 0 : index
    %c0_9 = arith.constant 0 : index
    %7 = vector.load %arg4[%c0_7, %c0_8, %c0_9] : memref<10x256x256xbf16, #tpu.memory_space<vmem>>, vector<1x256x256xbf16>
    %8 = vector.shape_cast %7 : vector<1x256x256xbf16> to vector<256x256xbf16>
    %c0_10 = arith.constant 0 : index
    %c0_11 = arith.constant 0 : index
    %c0_12 = arith.constant 0 : index
    %9 = vector.load %arg5[%c0_10, %c0_11, %c0_12] : memref<10x1x256xf32, #tpu.memory_space<vmem>>, vector<1x1x256xf32>
    %10 = vector.shape_cast %9 : vector<1x1x256xf32> to vector<1x256xf32>
    %11 = arith.truncf %6 : vector<16x256xf32> to vector<16x256xbf16>
    %cst_13 = arith.constant dense<0.000000e+00> : vector<16x256xf32>
    %12 = tpu.matmul %11, %8, %cst_13 {dimension_numbers = #tpu.dot_dimension_numbers<[1], [0], [0], [1], [0, 0, 1, 1], [], []>} : vector<16x256xbf16>, vector<256x256xbf16>, vector<16x256xf32> -> vector<16x256xf32>
    %13 = vector.broadcast %10 : vector<1x256xf32> to vector<16x256xf32>
    %14 = arith.addf %12, %13 : vector<16x256xf32>
    %15 = arith.truncf %14 : vector<16x256xf32> to vector<16x256xbf16>
    %cst_14 = arith.constant dense<0.000000e+00> : vector<16x256xf32>
    %16 = tpu.matmul %1, %15, %cst_14 {dimension_numbers = #tpu.dot_dimension_numbers<[1], [0], [0], [1], [0, 0, 1, 1], [], []>} : vector<16x16xbf16>, vector<16x256xbf16>, vector<16x256xf32> -> vector<16x256xf32>
    %cst_15 = arith.constant 0.000000e+00 : f32
    %17 = vector.broadcast %cst_15 : f32 to vector<16x256xf32>
    %18 = arith.maximumf %16, %17 : vector<16x256xf32>
    %c1 = arith.constant 1 : index
    %c0_16 = arith.constant 0 : index
    %c0_17 = arith.constant 0 : index
    %19 = vector.load %arg4[%c1, %c0_16, %c0_17] : memref<10x256x256xbf16, #tpu.memory_space<vmem>>, vector<1x256x256xbf16>
    %20 = vector.shape_cast %19 : vector<1x256x256xbf16> to vector<256x256xbf16>
    %c1_18 = arith.constant 1 : index
    %c0_19 = arith.constant 0 : index
    %c0_20 = arith.constant 0 : index
    %21 = vector.load %arg5[%c1_18, %c0_19, %c0_20] : memref<10x1x256xf32, #tpu.memory_space<vmem>>, vector<1x1x256xf32>
    %22 = vector.shape_cast %21 : vector<1x1x256xf32> to vector<1x256xf32>
    %23 = arith.truncf %18 : vector<16x256xf32> to vector<16x256xbf16>
    %cst_21 = arith.constant dense<0.000000e+00> : vector<16x256xf32>
    %24 = tpu.matmul %23, %20, %cst_21 {dimension_numbers = #tpu.dot_dimension_numbers<[1], [0], [0], [1], [0, 0, 1, 1], [], []>} : vector<16x256xbf16>, vector<256x256xbf16>, vector<16x256xf32> -> vector<16x256xf32>
    %25 = vector.broadcast %22 : vector<1x256xf32> to vector<16x256xf32>
    %26 = arith.addf %24, %25 : vector<16x256xf32>
    %27 = arith.truncf %26 : vector<16x256xf32> to vector<16x256xbf16>
    %cst_22 = arith.constant dense<0.000000e+00> : vector<16x256xf32>
    %28 = tpu.matmul %1, %27, %cst_22 {dimension_numbers = #tpu.dot_dimension_numbers<[1], [0], [0], [1], [0, 0, 1, 1], [], []>} : vector<16x16xbf16>, vector<16x256xbf16>, vector<16x256xf32> -> vector<16x256xf32>
    %cst_23 = arith.constant 0.000000e+00 : f32
    %29 = vector.broadcast %cst_23 : f32 to vector<16x256xf32>
    %30 = arith.maximumf %28, %29 : vector<16x256xf32>
    %c2 = arith.constant 2 : index
    %c0_24 = arith.constant 0 : index
    %c0_25 = arith.constant 0 : index
    %31 = vector.load %arg4[%c2, %c0_24, %c0_25] : memref<10x256x256xbf16, #tpu.memory_space<vmem>>, vector<1x256x256xbf16>
    %32 = vector.shape_cast %31 : vector<1x256x256xbf16> to vector<256x256xbf16>
    %c2_26 = arith.constant 2 : index
    %c0_27 = arith.constant 0 : index
    %c0_28 = arith.constant 0 : index
    %33 = vector.load %arg5[%c2_26, %c0_27, %c0_28] : memref<10x1x256xf32, #tpu.memory_space<vmem>>, vector<1x1x256xf32>
    %34 = vector.shape_cast %33 : vector<1x1x256xf32> to vector<1x256xf32>
    %35 = arith.truncf %30 : vector<16x256xf32> to vector<16x256xbf16>
    %cst_29 = arith.constant dense<0.000000e+00> : vector<16x256xf32>
    %36 = tpu.matmul %35, %32, %cst_29 {dimension_numbers = #tpu.dot_dimension_numbers<[1], [0], [0], [1], [0, 0, 1, 1], [], []>} : vector<16x256xbf16>, vector<256x256xbf16>, vector<16x256xf32> -> vector<16x256xf32>
    %37 = vector.broadcast %34 : vector<1x256xf32> to vector<16x256xf32>
    %38 = arith.addf %36, %37 : vector<16x256xf32>
    %39 = arith.truncf %38 : vector<16x256xf32> to vector<16x256xbf16>
    %cst_30 = arith.constant dense<0.000000e+00> : vector<16x256xf32>
    %40 = tpu.matmul %1, %39, %cst_30 {dimension_numbers = #tpu.dot_dimension_numbers<[1], [0], [0], [1], [0, 0, 1, 1], [], []>} : vector<16x16xbf16>, vector<16x256xbf16>, vector<16x256xf32> -> vector<16x256xf32>
    %cst_31 = arith.constant 0.000000e+00 : f32
    %41 = vector.broadcast %cst_31 : f32 to vector<16x256xf32>
    %42 = arith.maximumf %40, %41 : vector<16x256xf32>
    %c3 = arith.constant 3 : index
    %c0_32 = arith.constant 0 : index
    %c0_33 = arith.constant 0 : index
    %43 = vector.load %arg4[%c3, %c0_32, %c0_33] : memref<10x256x256xbf16, #tpu.memory_space<vmem>>, vector<1x256x256xbf16>
    %44 = vector.shape_cast %43 : vector<1x256x256xbf16> to vector<256x256xbf16>
    %c3_34 = arith.constant 3 : index
    %c0_35 = arith.constant 0 : index
    %c0_36 = arith.constant 0 : index
    %45 = vector.load %arg5[%c3_34, %c0_35, %c0_36] : memref<10x1x256xf32, #tpu.memory_space<vmem>>, vector<1x1x256xf32>
    %46 = vector.shape_cast %45 : vector<1x1x256xf32> to vector<1x256xf32>
    %47 = arith.truncf %42 : vector<16x256xf32> to vector<16x256xbf16>
    %cst_37 = arith.constant dense<0.000000e+00> : vector<16x256xf32>
    %48 = tpu.matmul %47, %44, %cst_37 {dimension_numbers = #tpu.dot_dimension_numbers<[1], [0], [0], [1], [0, 0, 1, 1], [], []>} : vector<16x256xbf16>, vector<256x256xbf16>, vector<16x256xf32> -> vector<16x256xf32>
    %49 = vector.broadcast %46 : vector<1x256xf32> to vector<16x256xf32>
    %50 = arith.addf %48, %49 : vector<16x256xf32>
    %51 = arith.truncf %50 : vector<16x256xf32> to vector<16x256xbf16>
    %cst_38 = arith.constant dense<0.000000e+00> : vector<16x256xf32>
    %52 = tpu.matmul %1, %51, %cst_38 {dimension_numbers = #tpu.dot_dimension_numbers<[1], [0], [0], [1], [0, 0, 1, 1], [], []>} : vector<16x16xbf16>, vector<16x256xbf16>, vector<16x256xf32> -> vector<16x256xf32>
    %cst_39 = arith.constant 0.000000e+00 : f32
    %53 = vector.broadcast %cst_39 : f32 to vector<16x256xf32>
    %54 = arith.maximumf %52, %53 : vector<16x256xf32>
    %c4 = arith.constant 4 : index
    %c0_40 = arith.constant 0 : index
    %c0_41 = arith.constant 0 : index
    %55 = vector.load %arg4[%c4, %c0_40, %c0_41] : memref<10x256x256xbf16, #tpu.memory_space<vmem>>, vector<1x256x256xbf16>
    %56 = vector.shape_cast %55 : vector<1x256x256xbf16> to vector<256x256xbf16>
    %c4_42 = arith.constant 4 : index
    %c0_43 = arith.constant 0 : index
    %c0_44 = arith.constant 0 : index
    %57 = vector.load %arg5[%c4_42, %c0_43, %c0_44] : memref<10x1x256xf32, #tpu.memory_space<vmem>>, vector<1x1x256xf32>
    %58 = vector.shape_cast %57 : vector<1x1x256xf32> to vector<1x256xf32>
    %59 = arith.truncf %54 : vector<16x256xf32> to vector<16x256xbf16>
    %cst_45 = arith.constant dense<0.000000e+00> : vector<16x256xf32>
    %60 = tpu.matmul %59, %56, %cst_45 {dimension_numbers = #tpu.dot_dimension_numbers<[1], [0], [0], [1], [0, 0, 1, 1], [], []>} : vector<16x256xbf16>, vector<256x256xbf16>, vector<16x256xf32> -> vector<16x256xf32>
    %61 = vector.broadcast %58 : vector<1x256xf32> to vector<16x256xf32>
    %62 = arith.addf %60, %61 : vector<16x256xf32>
    %63 = arith.truncf %62 : vector<16x256xf32> to vector<16x256xbf16>
    %cst_46 = arith.constant dense<0.000000e+00> : vector<16x256xf32>
    %64 = tpu.matmul %1, %63, %cst_46 {dimension_numbers = #tpu.dot_dimension_numbers<[1], [0], [0], [1], [0, 0, 1, 1], [], []>} : vector<16x16xbf16>, vector<16x256xbf16>, vector<16x256xf32> -> vector<16x256xf32>
    %cst_47 = arith.constant 0.000000e+00 : f32
    %65 = vector.broadcast %cst_47 : f32 to vector<16x256xf32>
    %66 = arith.maximumf %64, %65 : vector<16x256xf32>
    %c5 = arith.constant 5 : index
    %c0_48 = arith.constant 0 : index
    %c0_49 = arith.constant 0 : index
    %67 = vector.load %arg4[%c5, %c0_48, %c0_49] : memref<10x256x256xbf16, #tpu.memory_space<vmem>>, vector<1x256x256xbf16>
    %68 = vector.shape_cast %67 : vector<1x256x256xbf16> to vector<256x256xbf16>
    %c5_50 = arith.constant 5 : index
    %c0_51 = arith.constant 0 : index
    %c0_52 = arith.constant 0 : index
    %69 = vector.load %arg5[%c5_50, %c0_51, %c0_52] : memref<10x1x256xf32, #tpu.memory_space<vmem>>, vector<1x1x256xf32>
    %70 = vector.shape_cast %69 : vector<1x1x256xf32> to vector<1x256xf32>
    %71 = arith.truncf %66 : vector<16x256xf32> to vector<16x256xbf16>
    %cst_53 = arith.constant dense<0.000000e+00> : vector<16x256xf32>
    %72 = tpu.matmul %71, %68, %cst_53 {dimension_numbers = #tpu.dot_dimension_numbers<[1], [0], [0], [1], [0, 0, 1, 1], [], []>} : vector<16x256xbf16>, vector<256x256xbf16>, vector<16x256xf32> -> vector<16x256xf32>
    %73 = vector.broadcast %70 : vector<1x256xf32> to vector<16x256xf32>
    %74 = arith.addf %72, %73 : vector<16x256xf32>
    %75 = arith.truncf %74 : vector<16x256xf32> to vector<16x256xbf16>
    %cst_54 = arith.constant dense<0.000000e+00> : vector<16x256xf32>
    %76 = tpu.matmul %1, %75, %cst_54 {dimension_numbers = #tpu.dot_dimension_numbers<[1], [0], [0], [1], [0, 0, 1, 1], [], []>} : vector<16x16xbf16>, vector<16x256xbf16>, vector<16x256xf32> -> vector<16x256xf32>
    %cst_55 = arith.constant 0.000000e+00 : f32
    %77 = vector.broadcast %cst_55 : f32 to vector<16x256xf32>
    %78 = arith.maximumf %76, %77 : vector<16x256xf32>
    %c6 = arith.constant 6 : index
    %c0_56 = arith.constant 0 : index
    %c0_57 = arith.constant 0 : index
    %79 = vector.load %arg4[%c6, %c0_56, %c0_57] : memref<10x256x256xbf16, #tpu.memory_space<vmem>>, vector<1x256x256xbf16>
    %80 = vector.shape_cast %79 : vector<1x256x256xbf16> to vector<256x256xbf16>
    %c6_58 = arith.constant 6 : index
    %c0_59 = arith.constant 0 : index
    %c0_60 = arith.constant 0 : index
    %81 = vector.load %arg5[%c6_58, %c0_59, %c0_60] : memref<10x1x256xf32, #tpu.memory_space<vmem>>, vector<1x1x256xf32>
    %82 = vector.shape_cast %81 : vector<1x1x256xf32> to vector<1x256xf32>
    %83 = arith.truncf %78 : vector<16x256xf32> to vector<16x256xbf16>
    %cst_61 = arith.constant dense<0.000000e+00> : vector<16x256xf32>
    %84 = tpu.matmul %83, %80, %cst_61 {dimension_numbers = #tpu.dot_dimension_numbers<[1], [0], [0], [1], [0, 0, 1, 1], [], []>} : vector<16x256xbf16>, vector<256x256xbf16>, vector<16x256xf32> -> vector<16x256xf32>
    %85 = vector.broadcast %82 : vector<1x256xf32> to vector<16x256xf32>
    %86 = arith.addf %84, %85 : vector<16x256xf32>
    %87 = arith.truncf %86 : vector<16x256xf32> to vector<16x256xbf16>
    %cst_62 = arith.constant dense<0.000000e+00> : vector<16x256xf32>
    %88 = tpu.matmul %1, %87, %cst_62 {dimension_numbers = #tpu.dot_dimension_numbers<[1], [0], [0], [1], [0, 0, 1, 1], [], []>} : vector<16x16xbf16>, vector<16x256xbf16>, vector<16x256xf32> -> vector<16x256xf32>
    %cst_63 = arith.constant 0.000000e+00 : f32
    %89 = vector.broadcast %cst_63 : f32 to vector<16x256xf32>
    %90 = arith.maximumf %88, %89 : vector<16x256xf32>
    %c7 = arith.constant 7 : index
    %c0_64 = arith.constant 0 : index
    %c0_65 = arith.constant 0 : index
    %91 = vector.load %arg4[%c7, %c0_64, %c0_65] : memref<10x256x256xbf16, #tpu.memory_space<vmem>>, vector<1x256x256xbf16>
    %92 = vector.shape_cast %91 : vector<1x256x256xbf16> to vector<256x256xbf16>
    %c7_66 = arith.constant 7 : index
    %c0_67 = arith.constant 0 : index
    %c0_68 = arith.constant 0 : index
    %93 = vector.load %arg5[%c7_66, %c0_67, %c0_68] : memref<10x1x256xf32, #tpu.memory_space<vmem>>, vector<1x1x256xf32>
    %94 = vector.shape_cast %93 : vector<1x1x256xf32> to vector<1x256xf32>
    %95 = arith.truncf %90 : vector<16x256xf32> to vector<16x256xbf16>
    %cst_69 = arith.constant dense<0.000000e+00> : vector<16x256xf32>
    %96 = tpu.matmul %95, %92, %cst_69 {dimension_numbers = #tpu.dot_dimension_numbers<[1], [0], [0], [1], [0, 0, 1, 1], [], []>} : vector<16x256xbf16>, vector<256x256xbf16>, vector<16x256xf32> -> vector<16x256xf32>
    %97 = vector.broadcast %94 : vector<1x256xf32> to vector<16x256xf32>
    %98 = arith.addf %96, %97 : vector<16x256xf32>
    %99 = arith.truncf %98 : vector<16x256xf32> to vector<16x256xbf16>
    %cst_70 = arith.constant dense<0.000000e+00> : vector<16x256xf32>
    %100 = tpu.matmul %1, %99, %cst_70 {dimension_numbers = #tpu.dot_dimension_numbers<[1], [0], [0], [1], [0, 0, 1, 1], [], []>} : vector<16x16xbf16>, vector<16x256xbf16>, vector<16x256xf32> -> vector<16x256xf32>
    %cst_71 = arith.constant 0.000000e+00 : f32
    %101 = vector.broadcast %cst_71 : f32 to vector<16x256xf32>
    %102 = arith.maximumf %100, %101 : vector<16x256xf32>
    %c8 = arith.constant 8 : index
    %c0_72 = arith.constant 0 : index
    %c0_73 = arith.constant 0 : index
    %103 = vector.load %arg4[%c8, %c0_72, %c0_73] : memref<10x256x256xbf16, #tpu.memory_space<vmem>>, vector<1x256x256xbf16>
    %104 = vector.shape_cast %103 : vector<1x256x256xbf16> to vector<256x256xbf16>
    %c8_74 = arith.constant 8 : index
    %c0_75 = arith.constant 0 : index
    %c0_76 = arith.constant 0 : index
    %105 = vector.load %arg5[%c8_74, %c0_75, %c0_76] : memref<10x1x256xf32, #tpu.memory_space<vmem>>, vector<1x1x256xf32>
    %106 = vector.shape_cast %105 : vector<1x1x256xf32> to vector<1x256xf32>
    %107 = arith.truncf %102 : vector<16x256xf32> to vector<16x256xbf16>
    %cst_77 = arith.constant dense<0.000000e+00> : vector<16x256xf32>
    %108 = tpu.matmul %107, %104, %cst_77 {dimension_numbers = #tpu.dot_dimension_numbers<[1], [0], [0], [1], [0, 0, 1, 1], [], []>} : vector<16x256xbf16>, vector<256x256xbf16>, vector<16x256xf32> -> vector<16x256xf32>
    %109 = vector.broadcast %106 : vector<1x256xf32> to vector<16x256xf32>
    %110 = arith.addf %108, %109 : vector<16x256xf32>
    %111 = arith.truncf %110 : vector<16x256xf32> to vector<16x256xbf16>
    %cst_78 = arith.constant dense<0.000000e+00> : vector<16x256xf32>
    %112 = tpu.matmul %1, %111, %cst_78 {dimension_numbers = #tpu.dot_dimension_numbers<[1], [0], [0], [1], [0, 0, 1, 1], [], []>} : vector<16x16xbf16>, vector<16x256xbf16>, vector<16x256xf32> -> vector<16x256xf32>
    %cst_79 = arith.constant 0.000000e+00 : f32
    %113 = vector.broadcast %cst_79 : f32 to vector<16x256xf32>
    %114 = arith.maximumf %112, %113 : vector<16x256xf32>
    %c9 = arith.constant 9 : index
    %c0_80 = arith.constant 0 : index
    %c0_81 = arith.constant 0 : index
    %115 = vector.load %arg4[%c9, %c0_80, %c0_81] : memref<10x256x256xbf16, #tpu.memory_space<vmem>>, vector<1x256x256xbf16>
    %116 = vector.shape_cast %115 : vector<1x256x256xbf16> to vector<256x256xbf16>
    %c9_82 = arith.constant 9 : index
    %c0_83 = arith.constant 0 : index
    %c0_84 = arith.constant 0 : index
    %117 = vector.load %arg5[%c9_82, %c0_83, %c0_84] : memref<10x1x256xf32, #tpu.memory_space<vmem>>, vector<1x1x256xf32>
    %118 = vector.shape_cast %117 : vector<1x1x256xf32> to vector<1x256xf32>
    %119 = arith.truncf %114 : vector<16x256xf32> to vector<16x256xbf16>
    %cst_85 = arith.constant dense<0.000000e+00> : vector<16x256xf32>
    %120 = tpu.matmul %119, %116, %cst_85 {dimension_numbers = #tpu.dot_dimension_numbers<[1], [0], [0], [1], [0, 0, 1, 1], [], []>} : vector<16x256xbf16>, vector<256x256xbf16>, vector<16x256xf32> -> vector<16x256xf32>
    %121 = vector.broadcast %118 : vector<1x256xf32> to vector<16x256xf32>
    %122 = arith.addf %120, %121 : vector<16x256xf32>
    %123 = arith.truncf %122 : vector<16x256xf32> to vector<16x256xbf16>
    %cst_86 = arith.constant dense<0.000000e+00> : vector<16x256xf32>
    %124 = tpu.matmul %1, %123, %cst_86 {dimension_numbers = #tpu.dot_dimension_numbers<[1], [0], [0], [1], [0, 0, 1, 1], [], []>} : vector<16x16xbf16>, vector<16x256xbf16>, vector<16x256xf32> -> vector<16x256xf32>
    %cst_87 = arith.constant 0.000000e+00 : f32
    %125 = vector.broadcast %cst_87 : f32 to vector<16x256xf32>
    %126 = arith.maximumf %124, %125 : vector<16x256xf32>
    %c0_88 = arith.constant 0 : index
    %c0_89 = arith.constant 0 : index
    %127 = vector.load %arg6[%c0_88, %c0_89] : memref<2x16xbf16, #tpu.memory_space<vmem>>, vector<2x16xbf16>
    %128 = arith.truncf %126 : vector<16x256xf32> to vector<16x256xbf16>
    %cst_90 = arith.constant dense<0.000000e+00> : vector<2x256xf32>
    %129 = tpu.matmul %127, %128, %cst_90 {dimension_numbers = #tpu.dot_dimension_numbers<[1], [0], [0], [1], [0, 0, 1, 1], [], []>} : vector<2x16xbf16>, vector<16x256xbf16>, vector<2x256xf32> -> vector<2x256xf32>
    %130 = arith.truncf %129 : vector<2x256xf32> to vector<2x256xbf16>
    %c0_91 = arith.constant 0 : index
    %c0_92 = arith.constant 0 : index
    %131 = vector.load %arg7[%c0_91, %c0_92] : memref<256x1xbf16, #tpu.memory_space<vmem>>, vector<256x1xbf16>
    %cst_93 = arith.constant dense<0.000000e+00> : vector<2x1xf32>
    %132 = tpu.matmul %130, %131, %cst_93 {dimension_numbers = #tpu.dot_dimension_numbers<[1], [0], [0], [1], [0, 0, 1, 1], [], []>} : vector<2x256xbf16>, vector<256x1xbf16>, vector<2x1xf32> -> vector<2x1xf32>
    %c0_94 = arith.constant 0 : index
    %c0_95 = arith.constant 0 : index
    %133 = vector.load %arg8[%c0_94, %c0_95] : memref<1x1xf32, #tpu.memory_space<vmem>>, vector<1x1xf32>
    %134 = vector.broadcast %133 : vector<1x1xf32> to vector<2x1xf32>
    %135 = arith.addf %132, %134 : vector<2x1xf32>
    %c0_96 = arith.constant 0 : index
    %c0_97 = arith.constant 0 : index
    %136 = vector.load %arg9[%c0_96, %c0_97] : memref<2x1xf32, #tpu.memory_space<vmem>>, vector<2x1xf32>
    tpu.vector_store %arg9[%c0_96, %c0_97], %135 {strides = array<i32>} : memref<2x1xf32, #tpu.memory_space<vmem>>, vector<2x1xf32>,
    return
  }
}

</mosaic_0001>

<llo_original>
// kernel: tpu_custom_call.1
$region0: #{tpu_custom_call.1}
  #allocation0 [shape = 'u32[]', space=smem, size = 0x4, offset = 0x4, fixed_abs, tag = 'smem constant byte address 0x4 - core index']
  #allocation1 [shape = 'u32[144,128]{1,0:T(1,128)}', space=vmem, size = 0x12000, scoped, tag = 'internal scratch']
  #allocation2 [shape = 'f32[1,1]{1,0:T(1,128)S(1)}', space=vmem, size = 0x200, scoped, tag = 'scoped memory for tpu_custom_call.1']
  %s0 = inlined_call_operand.hbm [shape: bf16[16,16], index: 0, kind: input, shape index: {}]
  %s1 = inlined_call_operand.hbm [shape: bf16[16,16], index: 1, kind: input, shape index: {}]
  %s2 = inlined_call_operand.hbm [shape: bf16[16,256], index: 2, kind: input, shape index: {}]
  %s3 = inlined_call_operand.hbm [shape: f32[1,256], index: 3, kind: input, shape index: {}]
  %s4 = inlined_call_operand.hbm [shape: bf16[10,256,256], index: 4, kind: input, shape index: {}]
  %s5 = inlined_call_operand.hbm [shape: f32[10,1,256], index: 5, kind: input, shape index: {}]
  %s6 = inlined_call_operand.hbm [shape: bf16[2,16], index: 6, kind: input, shape index: {}]
  %s7 = inlined_call_operand.vmem [shape: bf16[256,1], index: 7, kind: input, shape index: {}]
  %s8 = inlined_call_operand.<no memory space> [shape: f32[1,1], index: 8, kind: input, shape index: {}]
  %s9 = inlined_call_operand.vmem [shape: f32[2,1], index: 9, kind: output, shape index: {}]
  %s10 = sld [smem:[#allocation0]]
  $region74: #{tpu_custom_call.1} parent=0
    _
  %s12 = ssub.s32 1, %s10
  %s13 = scalar_select 0, %s12, %s10
  %v14 = vstv %s8
  %15 = vst [vmem:[#allocation2] sm:$0x1] %v14
  $region1: #{tpu_custom_call.1} parent=0
    #allocation3 [shape = 'u8[4096]{0}', space=vmem, size = 0x1000, scoped, tag = 'input window, operand 0, single buffered']
    #allocation4 [shape = 's32[1]{0}', space=sflag, size = 0x4, scoped, tag = 'scoped memory for tpu_custom_call.1']
    #allocation5 [shape = 'u8[4096]{0}', space=vmem, size = 0x1000, scoped, tag = 'input window, operand 1, single buffered']
    #allocation6 [shape = 's32[1]{0}', space=sflag, size = 0x4, scoped, tag = 'scoped memory for tpu_custom_call.1']
    #allocation7 [shape = 'u8[8192]{0}', space=vmem, size = 0x2000, scoped, tag = 'input window, operand 2, single buffered']
    #allocation8 [shape = 'u8[1024]{0}', space=vmem, size = 0x400, scoped, tag = 'input window, operand 3, single buffered']
    #allocation9 [shape = 's32[1]{0}', space=sflag, size = 0x4, scoped, tag = 'scoped memory for tpu_custom_call.1']
    #allocation10 [shape = 'u8[1310720]{0}', space=vmem, size = 0x140000, scoped, tag = 'input window, operand 4, single buffered']
    #allocation11 [shape = 'u8[10240]{0}', space=vmem, size = 0x2800, scoped, tag = 'input window, operand 5, single buffered']
    #allocation12 [shape = 's32[1]{0}', space=sflag, size = 0x4, scoped, tag = 'scoped memory for tpu_custom_call.1']
    #allocation13 [shape = 'u8[512]{0}', space=vmem, size = 0x400, scoped, tag = 'input window, operand 6, single buffered']
    %16 = vsyncpa [#allocation4], 0
    %17 = vsyncpa [#allocation6], 0
    %18 = vsyncpa [#allocation9], 0
    %19 = vsyncpa [#allocation12], 0
    // Predicated region
    $region2: #{tpu_custom_call.1} parent=1 // pred_check
      _
    $region3: #{tpu_custom_call.1} parent=1 // pred_check_branch
      %21 = sbr.rel (0) target = $region5
    $region4: #{tpu_custom_call.1} parent=1 // pred_region
      %s23 = ssub.s32 128, 128
      %24 = vsyncadd [#allocation4], %s23
      %s25 = sshll.u32 [#allocation3], 4
      %s26 = int_to_ptr.vmem [resolvable:$true] %s25
      %31 = dma.hbm_to_vmem [thread:$0]  %s0, 128, %s26, [#allocation4], 64, 64, 4
    $region5: #{tpu_custom_call.1} parent=1 // pred_fallthru
      _
    // Predicated region
    $region6: #{tpu_custom_call.1} parent=1 // pred_check
      _
    $region7: #{tpu_custom_call.1} parent=1 // pred_check_branch
      %33 = sbr.rel (0) target = $region9
    $region8: #{tpu_custom_call.1} parent=1 // pred_region
      %s35 = ssub.s32 128, 128
      %36 = vsyncadd [#allocation6], %s35
      %s37 = sshll.u32 [#allocation5], 4
      %s38 = int_to_ptr.vmem [resolvable:$true] %s37
      %43 = dma.hbm_to_vmem [thread:$0]  %s1, 128, %s38, [#allocation6], 64, 64, 4
    $region9: #{tpu_custom_call.1} parent=1 // pred_fallthru
      _
    // Predicated region
    $region10: #{tpu_custom_call.1} parent=1 // pred_check
      _
    $region11: #{tpu_custom_call.1} parent=1 // pred_check_branch
      %45 = sbr.rel (0) target = $region13
    $region12: #{tpu_custom_call.1} parent=1 // pred_region
      %s47 = ssub.s32 256, 256
      %48 = vsyncadd [#allocation6], %s47
      %s49 = sshll.u32 [#allocation7], 4
      %s50 = int_to_ptr.vmem [resolvable:$true] %s49
      %55 = dma.hbm_to_vmem [thread:$0]  %s2, 256, %s50, [#allocation6], 128, 128, 8
    $region13: #{tpu_custom_call.1} parent=1 // pred_fallthru
      _
    // Predicated region
    $region14: #{tpu_custom_call.1} parent=1 // pred_check
      _
    $region15: #{tpu_custom_call.1} parent=1 // pred_check_branch
      %57 = sbr.rel (0) target = $region17
    $region16: #{tpu_custom_call.1} parent=1 // pred_region
      %s59 = ssub.s32 32, 32
      %60 = vsyncadd [#allocation9], %s59
      %s62 = sshll.u32 [#allocation8], 4
      %s63 = int_to_ptr.vmem [resolvable:$true] %s62
      %65 = dma.hbm_to_vmem [thread:$0]  %s3, 32, %s63, [#allocation9]
    $region17: #{tpu_custom_call.1} parent=1 // pred_fallthru
      _
    // Predicated region
    $region18: #{tpu_custom_call.1} parent=1 // pred_check
      _
    $region19: #{tpu_custom_call.1} parent=1 // pred_check_branch
      %67 = sbr.rel (0) target = $region21
    $region20: #{tpu_custom_call.1} parent=1 // pred_region
      %s69 = ssub.s32 40960, 40960
      %70 = vsyncadd [#allocation9], %s69
      %s71 = sshll.u32 [#allocation10], 4
      %s72 = int_to_ptr.vmem [resolvable:$true] %s71
      %77 = dma.hbm_to_vmem [thread:$0]  %s4, 40960, %s72, [#allocation9], 128, 128, 8
    $region21: #{tpu_custom_call.1} parent=1 // pred_fallthru
      _
    // Predicated region
    $region22: #{tpu_custom_call.1} parent=1 // pred_check
      _
    $region23: #{tpu_custom_call.1} parent=1 // pred_check_branch
      %79 = sbr.rel (0) target = $region25
    $region24: #{tpu_custom_call.1} parent=1 // pred_region
      %s81 = ssub.s32 320, 320
      %82 = vsyncadd [#allocation12], %s81
      %s83 = sshll.u32 [#allocation11], 4
      %s84 = int_to_ptr.vmem [resolvable:$true] %s83
      %89 = dma.hbm_to_vmem [thread:$0]  %s5, 320, %s84, [#allocation12], 32, 32, 2
    $region25: #{tpu_custom_call.1} parent=1 // pred_fallthru
      _
    // Predicated region
    $region26: #{tpu_custom_call.1} parent=1 // pred_check
      _
    $region27: #{tpu_custom_call.1} parent=1 // pred_check_branch
      %91 = sbr.rel (0) target = $region29
    $region28: #{tpu_custom_call.1} parent=1 // pred_region
      %s93 = ssub.s32 16, 16
      %94 = vsyncadd [#allocation12], %s93
      %s96 = sshll.u32 [#allocation13], 4
      %s97 = int_to_ptr.vmem [resolvable:$true] %s96
      %99 = dma.hbm_to_vmem [thread:$0]  %s6, 16, %s97, [#allocation12]
    $region29: #{tpu_custom_call.1} parent=1 // pred_fallthru
      _
    // Predicated region
    $region30: #{tpu_custom_call.1} parent=1 // pred_check
      _
    $region31: #{tpu_custom_call.1} parent=1 // pred_check_branch
      %101 = sbr.rel (0) target = $region33
    $region32: #{tpu_custom_call.1} parent=1 // pred_region
      _
    $region33: #{tpu_custom_call.1} parent=1 // pred_fallthru
      _
    // Predicated region
    $region34: #{tpu_custom_call.1} parent=1 // pred_check
      _
    $region35: #{tpu_custom_call.1} parent=1 // pred_check_branch
      %103 = sbr.rel (0) target = $region37
    $region36: #{tpu_custom_call.1} parent=1 // pred_region
      _
    $region37: #{tpu_custom_call.1} parent=1 // pred_fallthru
      _
    // Predicated region
    $region38: #{tpu_custom_call.1} parent=1 // pred_check
      _
    $region39: #{tpu_custom_call.1} parent=1 // pred_check_branch
      %105 = sbr.rel (0) target = $region41
    $region40: #{tpu_custom_call.1} parent=1 // pred_region
      %106 = dma.done [#allocation4], 128
    $region41: #{tpu_custom_call.1} parent=1 // pred_fallthru
      _
    // Predicated region
    $region42: #{tpu_custom_call.1} parent=1 // pred_check
      _
    $region43: #{tpu_custom_call.1} parent=1 // pred_check_branch
      %108 = sbr.rel (0) target = $region45
    $region44: #{tpu_custom_call.1} parent=1 // pred_region
      %109 = dma.done [#allocation6], 128
    $region45: #{tpu_custom_call.1} parent=1 // pred_fallthru
      _
    // Predicated region
    $region46: #{tpu_custom_call.1} parent=1 // pred_check
      _
    $region47: #{tpu_custom_call.1} parent=1 // pred_check_branch
      %111 = sbr.rel (0) target = $region49
    $region48: #{tpu_custom_call.1} parent=1 // pred_region
      %112 = dma.done [#allocation6], 256
    $region49: #{tpu_custom_call.1} parent=1 // pred_fallthru
      _
    // Predicated region
    $region50: #{tpu_custom_call.1} parent=1 // pred_check
      _
    $region51: #{tpu_custom_call.1} parent=1 // pred_check_branch
      %114 = sbr.rel (0) target = $region53
    $region52: #{tpu_custom_call.1} parent=1 // pred_region
      %115 = dma.done [#allocation9], 32
    $region53: #{tpu_custom_call.1} parent=1 // pred_fallthru
      _
    // Predicated region
    $region54: #{tpu_custom_call.1} parent=1 // pred_check
      _
    $region55: #{tpu_custom_call.1} parent=1 // pred_check_branch
      %117 = sbr.rel (0) target = $region57
    $region56: #{tpu_custom_call.1} parent=1 // pred_region
      %118 = dma.done [#allocation9], 40960
    $region57: #{tpu_custom_call.1} parent=1 // pred_fallthru
      _
    // Predicated region
    $region58: #{tpu_custom_call.1} parent=1 // pred_check
      _
    $region59: #{tpu_custom_call.1} parent=1 // pred_check_branch
      %120 = sbr.rel (0) target = $region61
    $region60: #{tpu_custom_call.1} parent=1 // pred_region
      %121 = dma.done [#allocation12], 320
    $region61: #{tpu_custom_call.1} parent=1 // pred_fallthru
      _
    // Predicated region
    $region62: #{tpu_custom_call.1} parent=1 // pred_check
      _
    $region63: #{tpu_custom_call.1} parent=1 // pred_check_branch
      %123 = sbr.rel (0) target = $region65
    $region64: #{tpu_custom_call.1} parent=1 // pred_region
      %124 = dma.done [#allocation12], 16
    $region65: #{tpu_custom_call.1} parent=1 // pred_fallthru
      _
    %v126 = vld [vmem:[#allocation3] sm:$0xf]
    %v127 = vld [vmem:[#allocation3 + $0x4] sm:$0xf]
    %v128 = vld [vmem:[#allocation5] sm:$0xf]
    %v129 = vld [vmem:[#allocation5 + $0x4] sm:$0xf]
    %v130 = vld [vmem:[#allocation7] sm:$0xff]
    %v131 = vld [vmem:[#allocation7 + $0x8] sm:$0xff]
    %v132 = vld [vmem:[#allocation8] sm:$0x3]
    %v134 = vlaneseq
    %v135 = vshrl.u32 %v134, 7
    %v136 = vsub.s32 0, %v135
    %v137 = vrot.slane %v132, %v136
    %v138 = vlaneseq
    %v139 = vshrl.u32 %v138, 7
    %v140 = vsub.s32 1, %v139
    %v141 = vrot.slane %v132, %v140
    %v146 = vunpack.c.l.b16 %v126
    %v147 = vunpack.c.l.b16 %v127
    %v148 = vpack.c.b16 %v147, %v146
    %v151 = vunpack.c.l.b16 %v130
    %v152 = vunpack.c.h.b16 %v130
    %v153 = vunpack.c.l.b16 %v131
    %v154 = vunpack.c.h.b16 %v131
    %v155 = vpack.c.b16 %v153, %v151
    %v156 = vpack.c.b16 %v154, %v152
    %vm159 = vcmask 130048
    %v161 = vsel %vm159, %v148, 0
    %163 = vmatprep.subr.bf16.mxu0 %v156
    %164 = vmatpush1.bf16.msra.mxu0 %v155
    %165 = vmatprep.subr.bf16.mxu0 0
    %166 = vmatpush1.bf16.msra.mxu0 0
    %167 = vmatprep.subr.bf16.mxu0 0
    %168 = vmatpush1.bf16.msra.mxu0 0
    %169 = vmatprep.subr.bf16.mxu0 0
    %170 = vmatpush1.bf16.msra.mxu0 0
    %171 = vmatprep.subr.bf16.mxu0 0
    %172 = vmatpush1.bf16.msra.mxu0 0
    %173 = vmatprep.subr.bf16.mxu0 0
    %174 = vmatpush1.bf16.msra.mxu0 0
    %175 = vmatprep.subr.bf16.mxu0 0
    %176 = vmatpush1.bf16.msra.mxu0 0
    %177 = vmatprep.subr.bf16.mxu0 0
    %178 = vmatpush1.bf16.msra.mxu0 0
    %179 = vmatprep.subr.bf16.mxu0 0
    %180 = vmatpush1.bf16.msra.mxu0 0
    %181 = vmatprep.subr.bf16.mxu0 0
    %182 = vmatpush1.bf16.msra.mxu0 0
    %183 = vmatprep.subr.bf16.mxu0 0
    %184 = vmatpush1.bf16.msra.mxu0 0
    %185 = vmatprep.subr.bf16.mxu0 0
    %186 = vmatpush1.bf16.msra.mxu0 0
    %187 = vmatprep.subr.bf16.mxu0 0
    %188 = vmatpush1.bf16.msra.mxu0 0
    %189 = vmatprep.subr.bf16.mxu0 0
    %190 = vmatpush1.bf16.msra.mxu0 0
    %191 = vmatprep.subr.bf16.mxu0 0
    %192 = vmatpush1.bf16.msra.mxu0 0
    %193 = vmatprep.subr.bf16.mxu0 0
    %194 = vmatpush1.bf16.msra.mxu0 0
    %195 = vmatprep.mubr.bf16.mxu0 0
    %196 = vmatmul.mubr.bf16.gmra.mrb[0].mxu0 %v161
    %v197 = vpop.f32.mrb[0].mxu0
    %v198 = vadd.f32 %v137, %v197
    %v199 = vpop.f32.mrb[0].mxu0
    %v200 = vadd.f32 %v141, %v199
    %v201 = vpop.f32.mrb[0].mxu0
    %v202 = vadd.f32 %v137, %v201
    %v203 = vpop.f32.mrb[0].mxu0
    %v204 = vadd.f32 %v141, %v203
    %205 = vdwg.mxu0
    %v206 = vld [vmem:[#allocation10] sm:$0xff]
    %v207 = vld [vmem:[#allocation10 + $0x8] sm:$0xff]
    %v208 = vld [vmem:[#allocation10 + $0x10] sm:$0xff]
    %v209 = vld [vmem:[#allocation10 + $0x18] sm:$0xff]
    %v210 = vld [vmem:[#allocation10 + $0x20] sm:$0xff]
    %v211 = vld [vmem:[#allocation10 + $0x28] sm:$0xff]
    %v212 = vld [vmem:[#allocation10 + $0x30] sm:$0xff]
    %v213 = vld [vmem:[#allocation10 + $0x38] sm:$0xff]
    %v214 = vld [vmem:[#allocation10 + $0x40] sm:$0xff]
    %v215 = vld [vmem:[#allocation10 + $0x48] sm:$0xff]
    %v216 = vld [vmem:[#allocation10 + $0x50] sm:$0xff]
    %v217 = vld [vmem:[#allocation10 + $0x58] sm:$0xff]
    %v218 = vld [vmem:[#allocation10 + $0x60] sm:$0xff]
    %v219 = vld [vmem:[#allocation10 + $0x68] sm:$0xff]
    %v220 = vld [vmem:[#allocation10 + $0x70] sm:$0xff]
    %v221 = vld [vmem:[#allocation10 + $0x78] sm:$0xff]
    %v222 = vld [vmem:[#allocation10 + $0x80] sm:$0xff]
    %v223 = vld [vmem:[#allocation10 + $0x88] sm:$0xff]
    %v224 = vld [vmem:[#allocation10 + $0x90] sm:$0xff]
    %v225 = vld [vmem:[#allocation10 + $0x98] sm:$0xff]
    %v226 = vld [vmem:[#allocation10 + $0xa0] sm:$0xff]
    %v227 = vld [vmem:[#allocation10 + $0xa8] sm:$0xff]
    %v228 = vld [vmem:[#allocation10 + $0xb0] sm:$0xff]
    %v229 = vld [vmem:[#allocation10 + $0xb8] sm:$0xff]
    %v230 = vld [vmem:[#allocation10 + $0xc0] sm:$0xff]
    %v231 = vld [vmem:[#allocation10 + $0xc8] sm:$0xff]
    %v232 = vld [vmem:[#allocation10 + $0xd0] sm:$0xff]
    %v233 = vld [vmem:[#allocation10 + $0xd8] sm:$0xff]
    %v234 = vld [vmem:[#allocation10 + $0xe0] sm:$0xff]
    %v235 = vld [vmem:[#allocation10 + $0xe8] sm:$0xff]
    %v236 = vld [vmem:[#allocation10 + $0xf0] sm:$0xff]
    %v237 = vld [vmem:[#allocation10 + $0xf8] sm:$0xff]
    %v238 = vld [vmem:[#allocation11] sm:$0x3]
    %v239 = vpack.c.bf16 %v202, %v198
    %v240 = vpack.c.bf16 %v204, %v200
    %v242 = vlaneseq
    %v243 = vshrl.u32 %v242, 7
    %v244 = vsub.s32 0, %v243
    %v245 = vrot.slane %v238, %v244
    %v246 = vlaneseq
    %v247 = vshrl.u32 %v246, 7
    %v248 = vsub.s32 1, %v247
    %v249 = vrot.slane %v238, %v248
    %v284 = vunpack.c.l.b16 %v206
    %v285 = vunpack.c.h.b16 %v206
    %v286 = vunpack.c.l.b16 %v207
    %v287 = vunpack.c.h.b16 %v207
    %v288 = vunpack.c.l.b16 %v208
    %v289 = vunpack.c.h.b16 %v208
    %v290 = vunpack.c.l.b16 %v209
    %v291 = vunpack.c.h.b16 %v209
    %v292 = vunpack.c.l.b16 %v210
    %v293 = vunpack.c.h.b16 %v210
    %v294 = vunpack.c.l.b16 %v211
    %v295 = vunpack.c.h.b16 %v211
    %v296 = vunpack.c.l.b16 %v212
    %v297 = vunpack.c.h.b16 %v212
    %v298 = vunpack.c.l.b16 %v213
    %v299 = vunpack.c.h.b16 %v213
    %v300 = vunpack.c.l.b16 %v214
    %v301 = vunpack.c.h.b16 %v214
    %v302 = vunpack.c.l.b16 %v215
    %v303 = vunpack.c.h.b16 %v215
    %v304 = vunpack.c.l.b16 %v216
    %v305 = vunpack.c.h.b16 %v216
    %v306 = vunpack.c.l.b16 %v217
    %v307 = vunpack.c.h.b16 %v217
    %v308 = vunpack.c.l.b16 %v218
    %v309 = vunpack.c.h.b16 %v218
    %v310 = vunpack.c.l.b16 %v219
    %v311 = vunpack.c.h.b16 %v219
    %v312 = vunpack.c.l.b16 %v220
    %v313 = vunpack.c.h.b16 %v220
    %v314 = vunpack.c.l.b16 %v221
    %v315 = vunpack.c.h.b16 %v221
    %v316 = vunpack.c.l.b16 %v222
    %v317 = vunpack.c.h.b16 %v222
    %v318 = vunpack.c.l.b16 %v223
    %v319 = vunpack.c.h.b16 %v223
    %v320 = vunpack.c.l.b16 %v224
    %v321 = vunpack.c.h.b16 %v224
    %v322 = vunpack.c.l.b16 %v225
    %v323 = vunpack.c.h.b16 %v225
    %v324 = vunpack.c.l.b16 %v226
    %v325 = vunpack.c.h.b16 %v226
    %v326 = vunpack.c.l.b16 %v227
    %v327 = vunpack.c.h.b16 %v227
    %v328 = vunpack.c.l.b16 %v228
    %v329 = vunpack.c.h.b16 %v228
    %v330 = vunpack.c.l.b16 %v229
    %v331 = vunpack.c.h.b16 %v229
    %v332 = vunpack.c.l.b16 %v230
    %v333 = vunpack.c.h.b16 %v230
    %v334 = vunpack.c.l.b16 %v231
    %v335 = vunpack.c.h.b16 %v231
    %v336 = vunpack.c.l.b16 %v232
    %v337 = vunpack.c.h.b16 %v232
    %v338 = vunpack.c.l.b16 %v233
    %v339 = vunpack.c.h.b16 %v233
    %v340 = vunpack.c.l.b16 %v234
    %v341 = vunpack.c.h.b16 %v234
    %v342 = vunpack.c.l.b16 %v235
    %v343 = vunpack.c.h.b16 %v235
    %v344 = vunpack.c.l.b16 %v236
    %v345 = vunpack.c.h.b16 %v236
    %v346 = vunpack.c.l.b16 %v237
    %v347 = vunpack.c.h.b16 %v237
    %v348 = vpack.c.b16 %v286, %v284
    %v349 = vpack.c.b16 %v287, %v285
    %v350 = vpack.c.b16 %v290, %v288
    %v351 = vpack.c.b16 %v291, %v289
    %v352 = vpack.c.b16 %v294, %v292
    %v353 = vpack.c.b16 %v295, %v293
    %v354 = vpack.c.b16 %v298, %v296
    %v355 = vpack.c.b16 %v299, %v297
    %v356 = vpack.c.b16 %v302, %v300
    %v357 = vpack.c.b16 %v303, %v301
    %v358 = vpack.c.b16 %v306, %v304
    %v359 = vpack.c.b16 %v307, %v305
    %v360 = vpack.c.b16 %v310, %v308
    %v361 = vpack.c.b16 %v311, %v309
    %v362 = vpack.c.b16 %v314, %v312
    %v363 = vpack.c.b16 %v315, %v313
    %v364 = vpack.c.b16 %v318, %v316
    %v365 = vpack.c.b16 %v319, %v317
    %v366 = vpack.c.b16 %v322, %v320
    %v367 = vpack.c.b16 %v323, %v321
    %v368 = vpack.c.b16 %v326, %v324
    %v369 = vpack.c.b16 %v327, %v325
    %v370 = vpack.c.b16 %v330, %v328
    %v371 = vpack.c.b16 %v331, %v329
    %v372 = vpack.c.b16 %v334, %v332
    %v373 = vpack.c.b16 %v335, %v333
    %v374 = vpack.c.b16 %v338, %v336
    %v375 = vpack.c.b16 %v339, %v337
    %v376 = vpack.c.b16 %v342, %v340
    %v377 = vpack.c.b16 %v343, %v341
    %v378 = vpack.c.b16 %v346, %v344
    %v379 = vpack.c.b16 %v347, %v345
    %412 = vmatprep.subr.bf16.mxu0 %v349
    %413 = vmatpush1.bf16.msra.mxu0 %v348
    %414 = vmatprep.subr.bf16.mxu0 %v351
    %415 = vmatpush1.bf16.msra.mxu0 %v350
    %416 = vmatprep.subr.bf16.mxu0 %v353
    %417 = vmatpush1.bf16.msra.mxu0 %v352
    %418 = vmatprep.subr.bf16.mxu0 %v355
    %419 = vmatpush1.bf16.msra.mxu0 %v354
    %420 = vmatprep.subr.bf16.mxu0 %v357
    %421 = vmatpush1.bf16.msra.mxu0 %v356
    %422 = vmatprep.subr.bf16.mxu0 %v359
    %423 = vmatpush1.bf16.msra.mxu0 %v358
    %424 = vmatprep.subr.bf16.mxu0 %v361
    %425 = vmatpush1.bf16.msra.mxu0 %v360
    %426 = vmatprep.subr.bf16.mxu0 %v363
    %427 = vmatpush1.bf16.msra.mxu0 %v362
    %428 = vmatprep.subr.bf16.mxu0 %v365
    %429 = vmatpush1.bf16.msra.mxu0 %v364
    %430 = vmatprep.subr.bf16.mxu0 %v367
    %431 = vmatpush1.bf16.msra.mxu0 %v366
    %432 = vmatprep.subr.bf16.mxu0 %v369
    %433 = vmatpush1.bf16.msra.mxu0 %v368
    %434 = vmatprep.subr.bf16.mxu0 %v371
    %435 = vmatpush1.bf16.msra.mxu0 %v370
    %436 = vmatprep.subr.bf16.mxu0 %v373
    %437 = vmatpush1.bf16.msra.mxu0 %v372
    %438 = vmatprep.subr.bf16.mxu0 %v375
    %439 = vmatpush1.bf16.msra.mxu0 %v374
    %440 = vmatprep.subr.bf16.mxu0 %v377
    %441 = vmatpush1.bf16.msra.mxu0 %v376
    %442 = vmatprep.subr.bf16.mxu0 %v379
    %443 = vmatpush1.bf16.msra.mxu0 %v378
    %444 = vmatprep.mubr.bf16.mxu0 %v240
    %445 = vmatmul.mubr.bf16.gmra.mrb[0].mxu0 %v239
    %v446 = vpop.f32.mrb[0].mxu0
    %v447 = vadd.f32 %v245, %v446
    %v448 = vpop.f32.mrb[0].mxu0
    %v449 = vadd.f32 %v249, %v448
    %v450 = vpop.f32.mrb[0].mxu0
    %v451 = vadd.f32 %v245, %v450
    %v452 = vpop.f32.mrb[0].mxu0
    %v453 = vadd.f32 %v249, %v452
    %454 = vdwg.mxu0
    %v455 = vpack.c.bf16 %v451, %v447
    %v456 = vpack.c.bf16 %v453, %v449
    %v459 = vunpack.c.l.b16 %v128
    %v460 = vunpack.c.l.b16 %v129
    %v461 = vpack.c.b16 %v460, %v459
    %v463 = vsel %vm159, %v461, 0
    %465 = vmatprep.subr.bf16.mxu0 %v456
    %466 = vmatpush1.bf16.msra.mxu0 %v455
    %467 = vmatprep.subr.bf16.mxu0 0
    %468 = vmatpush1.bf16.msra.mxu0 0
    %469 = vmatprep.subr.bf16.mxu0 0
    %470 = vmatpush1.bf16.msra.mxu0 0
    %471 = vmatprep.subr.bf16.mxu0 0
    %472 = vmatpush1.bf16.msra.mxu0 0
    %473 = vmatprep.subr.bf16.mxu0 0
    %474 = vmatpush1.bf16.msra.mxu0 0
    %475 = vmatprep.subr.bf16.mxu0 0
    %476 = vmatpush1.bf16.msra.mxu0 0
    %477 = vmatprep.subr.bf16.mxu0 0
    %478 = vmatpush1.bf16.msra.mxu0 0
    %479 = vmatprep.subr.bf16.mxu0 0
    %480 = vmatpush1.bf16.msra.mxu0 0
    %481 = vmatprep.subr.bf16.mxu0 0
    %482 = vmatpush1.bf16.msra.mxu0 0
    %483 = vmatprep.subr.bf16.mxu0 0
    %484 = vmatpush1.bf16.msra.mxu0 0
    %485 = vmatprep.subr.bf16.mxu0 0
    %486 = vmatpush1.bf16.msra.mxu0 0
    %487 = vmatprep.subr.bf16.mxu0 0
    %488 = vmatpush1.bf16.msra.mxu0 0
    %489 = vmatprep.subr.bf16.mxu0 0
    %490 = vmatpush1.bf16.msra.mxu0 0
    %491 = vmatprep.subr.bf16.mxu0 0
    %492 = vmatpush1.bf16.msra.mxu0 0
    %493 = vmatprep.subr.bf16.mxu0 0
    %494 = vmatpush1.bf16.msra.mxu0 0
    %495 = vmatprep.subr.bf16.mxu0 0
    %496 = vmatpush1.bf16.msra.mxu0 0
    %497 = vmatprep.mubr.bf16.mxu0 0
    %498 = vmatmul.mubr.bf16.gmra.mrb[0].mxu0 %v463
    %v499 = vpop.f32.mrb[0].mxu0
    %v500 = vadd.f32 0.0, %v499
    %v501 = vpop.f32.mrb[0].mxu0
    %v502 = vadd.f32 0.0, %v501
    %v503 = vpop.f32.mrb[0].mxu0
    %v504 = vadd.f32 0.0, %v503
    %v505 = vpop.f32.mrb[0].mxu0
    %v506 = vadd.f32 0.0, %v505
    %507 = vdwg.mxu0
    %v508 = vmax.f32 %v500, 0.0
    %v509 = vmax.f32 %v502, 0.0
    %v510 = vmax.f32 %v504, 0.0
    %v511 = vmax.f32 %v506, 0.0
    %s512 = scalar_lea.vmem [#allocation10], 256
    %v513 = vld [vmem:[%s512] sm:$0xff]
    %v514 = vld [vmem:[%s512 + $0x8] sm:$0xff]
    %v515 = vld [vmem:[%s512 + $0x10] sm:$0xff]
    %v516 = vld [vmem:[%s512 + $0x18] sm:$0xff]
    %v517 = vld [vmem:[%s512 + $0x20] sm:$0xff]
    %v518 = vld [vmem:[%s512 + $0x28] sm:$0xff]
    %v519 = vld [vmem:[%s512 + $0x30] sm:$0xff]
    %v520 = vld [vmem:[%s512 + $0x38] sm:$0xff]
    %v521 = vld [vmem:[%s512 + $0x40] sm:$0xff]
    %v522 = vld [vmem:[%s512 + $0x48] sm:$0xff]
    %v523 = vld [vmem:[%s512 + $0x50] sm:$0xff]
    %v524 = vld [vmem:[%s512 + $0x58] sm:$0xff]
    %v525 = vld [vmem:[%s512 + $0x60] sm:$0xff]
    %v526 = vld [vmem:[%s512 + $0x68] sm:$0xff]
    %v527 = vld [vmem:[%s512 + $0x70] sm:$0xff]
    %v528 = vld [vmem:[%s512 + $0x78] sm:$0xff]
    %v529 = vld [vmem:[%s512 + $0x80] sm:$0xff]
    %v530 = vld [vmem:[%s512 + $0x88] sm:$0xff]
    %v531 = vld [vmem:[%s512 + $0x90] sm:$0xff]
    %v532 = vld [vmem:[%s512 + $0x98] sm:$0xff]
    %v533 = vld [vmem:[%s512 + $0xa0] sm:$0xff]
    %v534 = vld [vmem:[%s512 + $0xa8] sm:$0xff]
    %v535 = vld [vmem:[%s512 + $0xb0] sm:$0xff]
    %v536 = vld [vmem:[%s512 + $0xb8] sm:$0xff]
    %v537 = vld [vmem:[%s512 + $0xc0] sm:$0xff]
    %v538 = vld [vmem:[%s512 + $0xc8] sm:$0xff]
    %v539 = vld [vmem:[%s512 + $0xd0] sm:$0xff]
    %v540 = vld [vmem:[%s512 + $0xd8] sm:$0xff]
    %v541 = vld [vmem:[%s512 + $0xe0] sm:$0xff]
    %v542 = vld [vmem:[%s512 + $0xe8] sm:$0xff]
    %v543 = vld [vmem:[%s512 + $0xf0] sm:$0xff]
    %v544 = vld [vmem:[%s512 + $0xf8] sm:$0xff]
    %s545 = scalar_lea.vmem [#allocation11], 2
    %v546 = vld [vmem:[%s545] sm:$0x3]
    %v547 = vpack.c.bf16 %v510, %v508
    %v548 = vpack.c.bf16 %v511, %v509
    %v550 = vlaneseq
    %v551 = vshrl.u32 %v550, 7
    %v552 = vsub.s32 0, %v551
    %v553 = vrot.slane %v546, %v552
    %v554 = vlaneseq
    %v555 = vshrl.u32 %v554, 7
    %v556 = vsub.s32 1, %v555
    %v557 = vrot.slane %v546, %v556
    %v592 = vunpack.c.l.b16 %v513
    %v593 = vunpack.c.h.b16 %v513
    %v594 = vunpack.c.l.b16 %v514
    %v595 = vunpack.c.h.b16 %v514
    %v596 = vunpack.c.l.b16 %v515
    %v597 = vunpack.c.h.b16 %v515
    %v598 = vunpack.c.l.b16 %v516
    %v599 = vunpack.c.h.b16 %v516
    %v600 = vunpack.c.l.b16 %v517
    %v601 = vunpack.c.h.b16 %v517
    %v602 = vunpack.c.l.b16 %v518
    %v603 = vunpack.c.h.b16 %v518
    %v604 = vunpack.c.l.b16 %v519
    %v605 = vunpack.c.h.b16 %v519
    %v606 = vunpack.c.l.b16 %v520
    %v607 = vunpack.c.h.b16 %v520
    %v608 = vunpack.c.l.b16 %v521
    %v609 = vunpack.c.h.b16 %v521
    %v610 = vunpack.c.l.b16 %v522
    %v611 = vunpack.c.h.b16 %v522
    %v612 = vunpack.c.l.b16 %v523
    %v613 = vunpack.c.h.b16 %v523
    %v614 = vunpack.c.l.b16 %v524
    %v615 = vunpack.c.h.b16 %v524
    %v616 = vunpack.c.l.b16 %v525
    %v617 = vunpack.c.h.b16 %v525
    %v618 = vunpack.c.l.b16 %v526
    %v619 = vunpack.c.h.b16 %v526
    %v620 = vunpack.c.l.b16 %v527
    %v621 = vunpack.c.h.b16 %v527
    %v622 = vunpack.c.l.b16 %v528
    %v623 = vunpack.c.h.b16 %v528
    %v624 = vunpack.c.l.b16 %v529
    %v625 = vunpack.c.h.b16 %v529
    %v626 = vunpack.c.l.b16 %v530
    %v627 = vunpack.c.h.b16 %v530
    %v628 = vunpack.c.l.b16 %v531
    %v629 = vunpack.c.h.b16 %v531
    %v630 = vunpack.c.l.b16 %v532
    %v631 = vunpack.c.h.b16 %v532
    %v632 = vunpack.c.l.b16 %v533
    %v633 = vunpack.c.h.b16 %v533
    %v634 = vunpack.c.l.b16 %v534
    %v635 = vunpack.c.h.b16 %v534
    %v636 = vunpack.c.l.b16 %v535
    %v637 = vunpack.c.h.b16 %v535
    %v638 = vunpack.c.l.b16 %v536
    %v639 = vunpack.c.h.b16 %v536
    %v640 = vunpack.c.l.b16 %v537
    %v641 = vunpack.c.h.b16 %v537
    %v642 = vunpack.c.l.b16 %v538
    %v643 = vunpack.c.h.b16 %v538
    %v644 = vunpack.c.l.b16 %v539
    %v645 = vunpack.c.h.b16 %v539
    %v646 = vunpack.c.l.b16 %v540
    %v647 = vunpack.c.h.b16 %v540
    %v648 = vunpack.c.l.b16 %v541
    %v649 = vunpack.c.h.b16 %v541
    %v650 = vunpack.c.l.b16 %v542
    %v651 = vunpack.c.h.b16 %v542
    %v652 = vunpack.c.l.b16 %v543
    %v653 = vunpack.c.h.b16 %v543
    %v654 = vunpack.c.l.b16 %v544
    %v655 = vunpack.c.h.b16 %v544
    %v656 = vpack.c.b16 %v594, %v592
    %v657 = vpack.c.b16 %v595, %v593
    %v658 = vpack.c.b16 %v598, %v596
    %v659 = vpack.c.b16 %v599, %v597
    %v660 = vpack.c.b16 %v602, %v600
    %v661 = vpack.c.b16 %v603, %v601
    %v662 = vpack.c.b16 %v606, %v604
    %v663 = vpack.c.b16 %v607, %v605
    %v664 = vpack.c.b16 %v610, %v608
    %v665 = vpack.c.b16 %v611, %v609
    %v666 = vpack.c.b16 %v614, %v612
    %v667 = vpack.c.b16 %v615, %v613
    %v668 = vpack.c.b16 %v618, %v616
    %v669 = vpack.c.b16 %v619, %v617
    %v670 = vpack.c.b16 %v622, %v620
    %v671 = vpack.c.b16 %v623, %v621
    %v672 = vpack.c.b16 %v626, %v624
    %v673 = vpack.c.b16 %v627, %v625
    %v674 = vpack.c.b16 %v630, %v628
    %v675 = vpack.c.b16 %v631, %v629
    %v676 = vpack.c.b16 %v634, %v632
    %v677 = vpack.c.b16 %v635, %v633
    %v678 = vpack.c.b16 %v638, %v636
    %v679 = vpack.c.b16 %v639, %v637
    %v680 = vpack.c.b16 %v642, %v640
    %v681 = vpack.c.b16 %v643, %v641
    %v682 = vpack.c.b16 %v646, %v644
    %v683 = vpack.c.b16 %v647, %v645
    %v684 = vpack.c.b16 %v650, %v648
    %v685 = vpack.c.b16 %v651, %v649
    %v686 = vpack.c.b16 %v654, %v652
    %v687 = vpack.c.b16 %v655, %v653
    %720 = vmatprep.subr.bf16.mxu0 %v657
    %721 = vmatpush1.bf16.msra.mxu0 %v656
    %722 = vmatprep.subr.bf16.mxu0 %v659
    %723 = vmatpush1.bf16.msra.mxu0 %v658
    %724 = vmatprep.subr.bf16.mxu0 %v661
    %725 = vmatpush1.bf16.msra.mxu0 %v660
    %726 = vmatprep.subr.bf16.mxu0 %v663
    %727 = vmatpush1.bf16.msra.mxu0 %v662
    %728 = vmatprep.subr.bf16.mxu0 %v665
    %729 = vmatpush1.bf16.msra.mxu0 %v664
    %730 = vmatprep.subr.bf16.mxu0 %v667
    %731 = vmatpush1.bf16.msra.mxu0 %v666
    %732 = vmatprep.subr.bf16.mxu0 %v669
    %733 = vmatpush1.bf16.msra.mxu0 %v668
    %734 = vmatprep.subr.bf16.mxu0 %v671
    %735 = vmatpush1.bf16.msra.mxu0 %v670
    %736 = vmatprep.subr.bf16.mxu0 %v673
    %737 = vmatpush1.bf16.msra.mxu0 %v672
    %738 = vmatprep.subr.bf16.mxu0 %v675
    %739 = vmatpush1.bf16.msra.mxu0 %v674
    %740 = vmatprep.subr.bf16.mxu0 %v677
    %741 = vmatpush1.bf16.msra.mxu0 %v676
    %742 = vmatprep.subr.bf16.mxu0 %v679
    %743 = vmatpush1.bf16.msra.mxu0 %v678
    %744 = vmatprep.subr.bf16.mxu0 %v681
    %745 = vmatpush1.bf16.msra.mxu0 %v680
    %746 = vmatprep.subr.bf16.mxu0 %v683
    %747 = vmatpush1.bf16.msra.mxu0 %v682
    %748 = vmatprep.subr.bf16.mxu0 %v685
    %749 = vmatpush1.bf16.msra.mxu0 %v684
    %750 = vmatprep.subr.bf16.mxu0 %v687
    %751 = vmatpush1.bf16.msra.mxu0 %v686
    %752 = vmatprep.mubr.bf16.mxu0 %v548
    %753 = vmatmul.mubr.bf16.gmra.mrb[0].mxu0 %v547
    %v754 = vpop.f32.mrb[0].mxu0
    %v755 = vadd.f32 %v553, %v754
    %v756 = vpop.f32.mrb[0].mxu0
    %v757 = vadd.f32 %v557, %v756
    %v758 = vpop.f32.mrb[0].mxu0
    %v759 = vadd.f32 %v553, %v758
    %v760 = vpop.f32.mrb[0].mxu0
    %v761 = vadd.f32 %v557, %v760
    %762 = vdwg.mxu0
    %v763 = vpack.c.bf16 %v759, %v755
    %v764 = vpack.c.bf16 %v761, %v757
    %765 = vmatprep.subr.bf16.mxu0 %v764
    %766 = vmatpush1.bf16.msra.mxu0 %v763
    %767 = vmatprep.subr.bf16.mxu0 0
    %768 = vmatpush1.bf16.msra.mxu0 0
    %769 = vmatprep.subr.bf16.mxu0 0
    %770 = vmatpush1.bf16.msra.mxu0 0
    %771 = vmatprep.subr.bf16.mxu0 0
    %772 = vmatpush1.bf16.msra.mxu0 0
    %773 = vmatprep.subr.bf16.mxu0 0
    %774 = vmatpush1.bf16.msra.mxu0 0
    %775 = vmatprep.subr.bf16.mxu0 0
    %776 = vmatpush1.bf16.msra.mxu0 0
    %777 = vmatprep.subr.bf16.mxu0 0
    %778 = vmatpush1.bf16.msra.mxu0 0
    %779 = vmatprep.subr.bf16.mxu0 0
    %780 = vmatpush1.bf16.msra.mxu0 0
    %781 = vmatprep.subr.bf16.mxu0 0
    %782 = vmatpush1.bf16.msra.mxu0 0
    %783 = vmatprep.subr.bf16.mxu0 0
    %784 = vmatpush1.bf16.msra.mxu0 0
    %785 = vmatprep.subr.bf16.mxu0 0
    %786 = vmatpush1.bf16.msra.mxu0 0
    %787 = vmatprep.subr.bf16.mxu0 0
    %788 = vmatpush1.bf16.msra.mxu0 0
    %789 = vmatprep.subr.bf16.mxu0 0
    %790 = vmatpush1.bf16.msra.mxu0 0
    %791 = vmatprep.subr.bf16.mxu0 0
    %792 = vmatpush1.bf16.msra.mxu0 0
    %793 = vmatprep.subr.bf16.mxu0 0
    %794 = vmatpush1.bf16.msra.mxu0 0
    %795 = vmatprep.subr.bf16.mxu0 0
    %796 = vmatpush1.bf16.msra.mxu0 0
    %797 = vmatprep.mubr.bf16.mxu0 0
    %798 = vmatmul.mubr.bf16.gmra.mrb[0].mxu0 %v463
    %v799 = vpop.f32.mrb[0].mxu0
    %v800 = vadd.f32 0.0, %v799
    %v801 = vpop.f32.mrb[0].mxu0
    %v802 = vadd.f32 0.0, %v801
    %v803 = vpop.f32.mrb[0].mxu0
    %v804 = vadd.f32 0.0, %v803
    %v805 = vpop.f32.mrb[0].mxu0
    %v806 = vadd.f32 0.0, %v805
    %807 = vdwg.mxu0
    %v808 = vmax.f32 %v800, 0.0
    %v809 = vmax.f32 %v802, 0.0
    %v810 = vmax.f32 %v804, 0.0
    %v811 = vmax.f32 %v806, 0.0
    %s812 = scalar_lea.vmem [#allocation10], 512
    %v813 = vld [vmem:[%s812] sm:$0xff]
    %v814 = vld [vmem:[%s812 + $0x8] sm:$0xff]
    %v815 = vld [vmem:[%s812 + $0x10] sm:$0xff]
    %v816 = vld [vmem:[%s812 + $0x18] sm:$0xff]
    %v817 = vld [vmem:[%s812 + $0x20] sm:$0xff]
    %v818 = vld [vmem:[%s812 + $0x28] sm:$0xff]
    %v819 = vld [vmem:[%s812 + $0x30] sm:$0xff]
    %v820 = vld [vmem:[%s812 + $0x38] sm:$0xff]
    %v821 = vld [vmem:[%s812 + $0x40] sm:$0xff]
    %v822 = vld [vmem:[%s812 + $0x48] sm:$0xff]
    %v823 = vld [vmem:[%s812 + $0x50] sm:$0xff]
    %v824 = vld [vmem:[%s812 + $0x58] sm:$0xff]
    %v825 = vld [vmem:[%s812 + $0x60] sm:$0xff]
    %v826 = vld [vmem:[%s812 + $0x68] sm:$0xff]
    %v827 = vld [vmem:[%s812 + $0x70] sm:$0xff]
    %v828 = vld [vmem:[%s812 + $0x78] sm:$0xff]
    %v829 = vld [vmem:[%s812 + $0x80] sm:$0xff]
    %v830 = vld [vmem:[%s812 + $0x88] sm:$0xff]
    %v831 = vld [vmem:[%s812 + $0x90] sm:$0xff]
    %v832 = vld [vmem:[%s812 + $0x98] sm:$0xff]
    %v833 = vld [vmem:[%s812 + $0xa0] sm:$0xff]
    %v834 = vld [vmem:[%s812 + $0xa8] sm:$0xff]
    %v835 = vld [vmem:[%s812 + $0xb0] sm:$0xff]
    %v836 = vld [vmem:[%s812 + $0xb8] sm:$0xff]
    %v837 = vld [vmem:[%s812 + $0xc0] sm:$0xff]
    %v838 = vld [vmem:[%s812 + $0xc8] sm:$0xff]
    %v839 = vld [vmem:[%s812 + $0xd0] sm:$0xff]
    %v840 = vld [vmem:[%s812 + $0xd8] sm:$0xff]
    %v841 = vld [vmem:[%s812 + $0xe0] sm:$0xff]
    %v842 = vld [vmem:[%s812 + $0xe8] sm:$0xff]
    %v843 = vld [vmem:[%s812 + $0xf0] sm:$0xff]
    %v844 = vld [vmem:[%s812 + $0xf8] sm:$0xff]
    %s845 = scalar_lea.vmem [#allocation11], 4
    %v846 = vld [vmem:[%s845] sm:$0x3]
    %v847 = vpack.c.bf16 %v810, %v808
    %v848 = vpack.c.bf16 %v811, %v809
    %v850 = vlaneseq
    %v851 = vshrl.u32 %v850, 7
    %v852 = vsub.s32 0, %v851
    %v853 = vrot.slane %v846, %v852
    %v854 = vlaneseq
    %v855 = vshrl.u32 %v854, 7
    %v856 = vsub.s32 1, %v855
    %v857 = vrot.slane %v846, %v856
    %v892 = vunpack.c.l.b16 %v813
    %v893 = vunpack.c.h.b16 %v813
    %v894 = vunpack.c.l.b16 %v814
    %v895 = vunpack.c.h.b16 %v814
    %v896 = vunpack.c.l.b16 %v815
    %v897 = vunpack.c.h.b16 %v815
    %v898 = vunpack.c.l.b16 %v816
    %v899 = vunpack.c.h.b16 %v816
    %v900 = vunpack.c.l.b16 %v817
    %v901 = vunpack.c.h.b16 %v817
    %v902 = vunpack.c.l.b16 %v818
    %v903 = vunpack.c.h.b16 %v818
    %v904 = vunpack.c.l.b16 %v819
    %v905 = vunpack.c.h.b16 %v819
    %v906 = vunpack.c.l.b16 %v820
    %v907 = vunpack.c.h.b16 %v820
    %v908 = vunpack.c.l.b16 %v821
    %v909 = vunpack.c.h.b16 %v821
    %v910 = vunpack.c.l.b16 %v822
    %v911 = vunpack.c.h.b16 %v822
    %v912 = vunpack.c.l.b16 %v823
    %v913 = vunpack.c.h.b16 %v823
    %v914 = vunpack.c.l.b16 %v824
    %v915 = vunpack.c.h.b16 %v824
    %v916 = vunpack.c.l.b16 %v825
    %v917 = vunpack.c.h.b16 %v825
    %v918 = vunpack.c.l.b16 %v826
    %v919 = vunpack.c.h.b16 %v826
    %v920 = vunpack.c.l.b16 %v827
    %v921 = vunpack.c.h.b16 %v827
    %v922 = vunpack.c.l.b16 %v828
    %v923 = vunpack.c.h.b16 %v828
    %v924 = vunpack.c.l.b16 %v829
    %v925 = vunpack.c.h.b16 %v829
    %v926 = vunpack.c.l.b16 %v830
    %v927 = vunpack.c.h.b16 %v830
    %v928 = vunpack.c.l.b16 %v831
    %v929 = vunpack.c.h.b16 %v831
    %v930 = vunpack.c.l.b16 %v832
    %v931 = vunpack.c.h.b16 %v832
    %v932 = vunpack.c.l.b16 %v833
    %v933 = vunpack.c.h.b16 %v833
    %v934 = vunpack.c.l.b16 %v834
    %v935 = vunpack.c.h.b16 %v834
    %v936 = vunpack.c.l.b16 %v835
    %v937 = vunpack.c.h.b16 %v835
    %v938 = vunpack.c.l.b16 %v836
    %v939 = vunpack.c.h.b16 %v836
    %v940 = vunpack.c.l.b16 %v837
    %v941 = vunpack.c.h.b16 %v837
    %v942 = vunpack.c.l.b16 %v838
    %v943 = vunpack.c.h.b16 %v838
    %v944 = vunpack.c.l.b16 %v839
    %v945 = vunpack.c.h.b16 %v839
    %v946 = vunpack.c.l.b16 %v840
    %v947 = vunpack.c.h.b16 %v840
    %v948 = vunpack.c.l.b16 %v841
    %v949 = vunpack.c.h.b16 %v841
    %v950 = vunpack.c.l.b16 %v842
    %v951 = vunpack.c.h.b16 %v842
    %v952 = vunpack.c.l.b16 %v843
    %v953 = vunpack.c.h.b16 %v843
    %v954 = vunpack.c.l.b16 %v844
    %v955 = vunpack.c.h.b16 %v844
    %v956 = vpack.c.b16 %v894, %v892
    %v957 = vpack.c.b16 %v895, %v893
    %v958 = vpack.c.b16 %v898, %v896
    %v959 = vpack.c.b16 %v899, %v897
    %v960 = vpack.c.b16 %v902, %v900
    %v961 = vpack.c.b16 %v903, %v901
    %v962 = vpack.c.b16 %v906, %v904
    %v963 = vpack.c.b16 %v907, %v905
    %v964 = vpack.c.b16 %v910, %v908
    %v965 = vpack.c.b16 %v911, %v909
    %v966 = vpack.c.b16 %v914, %v912
    %v967 = vpack.c.b16 %v915, %v913
    %v968 = vpack.c.b16 %v918, %v916
    %v969 = vpack.c.b16 %v919, %v917
    %v970 = vpack.c.b16 %v922, %v920
    %v971 = vpack.c.b16 %v923, %v921
    %v972 = vpack.c.b16 %v926, %v924
    %v973 = vpack.c.b16 %v927, %v925
    %v974 = vpack.c.b16 %v930, %v928
    %v975 = vpack.c.b16 %v931, %v929
    %v976 = vpack.c.b16 %v934, %v932
    %v977 = vpack.c.b16 %v935, %v933
    %v978 = vpack.c.b16 %v938, %v936
    %v979 = vpack.c.b16 %v939, %v937
    %v980 = vpack.c.b16 %v942, %v940
    %v981 = vpack.c.b16 %v943, %v941
    %v982 = vpack.c.b16 %v946, %v944
    %v983 = vpack.c.b16 %v947, %v945
    %v984 = vpack.c.b16 %v950, %v948
    %v985 = vpack.c.b16 %v951, %v949
    %v986 = vpack.c.b16 %v954, %v952
    %v987 = vpack.c.b16 %v955, %v953
    %1020 = vmatprep.subr.bf16.mxu0 %v957
    %1021 = vmatpush1.bf16.msra.mxu0 %v956
    %1022 = vmatprep.subr.bf16.mxu0 %v959
    %1023 = vmatpush1.bf16.msra.mxu0 %v958
    %1024 = vmatprep.subr.bf16.mxu0 %v961
    %1025 = vmatpush1.bf16.msra.mxu0 %v960
    %1026 = vmatprep.subr.bf16.mxu0 %v963
    %1027 = vmatpush1.bf16.msra.mxu0 %v962
    %1028 = vmatprep.subr.bf16.mxu0 %v965
    %1029 = vmatpush1.bf16.msra.mxu0 %v964
    %1030 = vmatprep.subr.bf16.mxu0 %v967
    %1031 = vmatpush1.bf16.msra.mxu0 %v966
    %1032 = vmatprep.subr.bf16.mxu0 %v969
    %1033 = vmatpush1.bf16.msra.mxu0 %v968
    %1034 = vmatprep.subr.bf16.mxu0 %v971
    %1035 = vmatpush1.bf16.msra.mxu0 %v970
    %1036 = vmatprep.subr.bf16.mxu0 %v973
    %1037 = vmatpush1.bf16.msra.mxu0 %v972
    %1038 = vmatprep.subr.bf16.mxu0 %v975
    %1039 = vmatpush1.bf16.msra.mxu0 %v974
    %1040 = vmatprep.subr.bf16.mxu0 %v977
    %1041 = vmatpush1.bf16.msra.mxu0 %v976
    %1042 = vmatprep.subr.bf16.mxu0 %v979
    %1043 = vmatpush1.bf16.msra.mxu0 %v978
    %1044 = vmatprep.subr.bf16.mxu0 %v981
    %1045 = vmatpush1.bf16.msra.mxu0 %v980
    %1046 = vmatprep.subr.bf16.mxu0 %v983
    %1047 = vmatpush1.bf16.msra.mxu0 %v982
    %1048 = vmatprep.subr.bf16.mxu0 %v985
    %1049 = vmatpush1.bf16.msra.mxu0 %v984
    %1050 = vmatprep.subr.bf16.mxu0 %v987
    %1051 = vmatpush1.bf16.msra.mxu0 %v986
    %1052 = vmatprep.mubr.bf16.mxu0 %v848
    %1053 = vmatmul.mubr.bf16.gmra.mrb[0].mxu0 %v847
    %v1054 = vpop.f32.mrb[0].mxu0
    %v1055 = vadd.f32 %v853, %v1054
    %v1056 = vpop.f32.mrb[0].mxu0
    %v1057 = vadd.f32 %v857, %v1056
    %v1058 = vpop.f32.mrb[0].mxu0
    %v1059 = vadd.f32 %v853, %v1058
    %v1060 = vpop.f32.mrb[0].mxu0
    %v1061 = vadd.f32 %v857, %v1060
    %1062 = vdwg.mxu0
    %v1063 = vpack.c.bf16 %v1059, %v1055
    %v1064 = vpack.c.bf16 %v1061, %v1057
    %1065 = vmatprep.subr.bf16.mxu0 %v1064
    %1066 = vmatpush1.bf16.msra.mxu0 %v1063
    %1067 = vmatprep.subr.bf16.mxu0 0
    %1068 = vmatpush1.bf16.msra.mxu0 0
    %1069 = vmatprep.subr.bf16.mxu0 0
    %1070 = vmatpush1.bf16.msra.mxu0 0
    %1071 = vmatprep.subr.bf16.mxu0 0
    %1072 = vmatpush1.bf16.msra.mxu0 0
    %1073 = vmatprep.subr.bf16.mxu0 0
    %1074 = vmatpush1.bf16.msra.mxu0 0
    %1075 = vmatprep.subr.bf16.mxu0 0
    %1076 = vmatpush1.bf16.msra.mxu0 0
    %1077 = vmatprep.subr.bf16.mxu0 0
    %1078 = vmatpush1.bf16.msra.mxu0 0
    %1079 = vmatprep.subr.bf16.mxu0 0
    %1080 = vmatpush1.bf16.msra.mxu0 0
    %1081 = vmatprep.subr.bf16.mxu0 0
    %1082 = vmatpush1.bf16.msra.mxu0 0
    %1083 = vmatprep.subr.bf16.mxu0 0
    %1084 = vmatpush1.bf16.msra.mxu0 0
    %1085 = vmatprep.subr.bf16.mxu0 0
    %1086 = vmatpush1.bf16.msra.mxu0 0
    %1087 = vmatprep.subr.bf16.mxu0 0
    %1088 = vmatpush1.bf16.msra.mxu0 0
    %1089 = vmatprep.subr.bf16.mxu0 0
    %1090 = vmatpush1.bf16.msra.mxu0 0
    %1091 = vmatprep.subr.bf16.mxu0 0
    %1092 = vmatpush1.bf16.msra.mxu0 0
    %1093 = vmatprep.subr.bf16.mxu0 0
    %1094 = vmatpush1.bf16.msra.mxu0 0
    %1095 = vmatprep.subr.bf16.mxu0 0
    %1096 = vmatpush1.bf16.msra.mxu0 0
    %1097 = vmatprep.mubr.bf16.mxu0 0
    %1098 = vmatmul.mubr.bf16.gmra.mrb[0].mxu0 %v463
    %v1099 = vpop.f32.mrb[0].mxu0
    %v1100 = vadd.f32 0.0, %v1099
    %v1101 = vpop.f32.mrb[0].mxu0
    %v1102 = vadd.f32 0.0, %v1101
    %v1103 = vpop.f32.mrb[0].mxu0
    %v1104 = vadd.f32 0.0, %v1103
    %v1105 = vpop.f32.mrb[0].mxu0
    %v1106 = vadd.f32 0.0, %v1105
    %1107 = vdwg.mxu0
    %v1108 = vmax.f32 %v1100, 0.0
    %v1109 = vmax.f32 %v1102, 0.0
    %v1110 = vmax.f32 %v1104, 0.0
    %v1111 = vmax.f32 %v1106, 0.0
    %s1112 = scalar_lea.vmem [#allocation10], 768
    %v1113 = vld [vmem:[%s1112] sm:$0xff]
    %v1114 = vld [vmem:[%s1112 + $0x8] sm:$0xff]
    %v1115 = vld [vmem:[%s1112 + $0x10] sm:$0xff]
    %v1116 = vld [vmem:[%s1112 + $0x18] sm:$0xff]
    %v1117 = vld [vmem:[%s1112 + $0x20] sm:$0xff]
    %v1118 = vld [vmem:[%s1112 + $0x28] sm:$0xff]
    %v1119 = vld [vmem:[%s1112 + $0x30] sm:$0xff]
    %v1120 = vld [vmem:[%s1112 + $0x38] sm:$0xff]
    %v1121 = vld [vmem:[%s1112 + $0x40] sm:$0xff]
    %v1122 = vld [vmem:[%s1112 + $0x48] sm:$0xff]
    %v1123 = vld [vmem:[%s1112 + $0x50] sm:$0xff]
    %v1124 = vld [vmem:[%s1112 + $0x58] sm:$0xff]
    %v1125 = vld [vmem:[%s1112 + $0x60] sm:$0xff]
    %v1126 = vld [vmem:[%s1112 + $0x68] sm:$0xff]
    %v1127 = vld [vmem:[%s1112 + $0x70] sm:$0xff]
    %v1128 = vld [vmem:[%s1112 + $0x78] sm:$0xff]
    %v1129 = vld [vmem:[%s1112 + $0x80] sm:$0xff]
    %v1130 = vld [vmem:[%s1112 + $0x88] sm:$0xff]
    %v1131 = vld [vmem:[%s1112 + $0x90] sm:$0xff]
    %v1132 = vld [vmem:[%s1112 + $0x98] sm:$0xff]
    %v1133 = vld [vmem:[%s1112 + $0xa0] sm:$0xff]
    %v1134 = vld [vmem:[%s1112 + $0xa8] sm:$0xff]
    %v1135 = vld [vmem:[%s1112 + $0xb0] sm:$0xff]
    %v1136 = vld [vmem:[%s1112 + $0xb8] sm:$0xff]
    %v1137 = vld [vmem:[%s1112 + $0xc0] sm:$0xff]
    %v1138 = vld [vmem:[%s1112 + $0xc8] sm:$0xff]
    %v1139 = vld [vmem:[%s1112 + $0xd0] sm:$0xff]
    %v1140 = vld [vmem:[%s1112 + $0xd8] sm:$0xff]
    %v1141 = vld [vmem:[%s1112 + $0xe0] sm:$0xff]
    %v1142 = vld [vmem:[%s1112 + $0xe8] sm:$0xff]
    %v1143 = vld [vmem:[%s1112 + $0xf0] sm:$0xff]
    %v1144 = vld [vmem:[%s1112 + $0xf8] sm:$0xff]
    %s1145 = scalar_lea.vmem [#allocation11], 6
    %v1146 = vld [vmem:[%s1145] sm:$0x3]
    %v1147 = vpack.c.bf16 %v1110, %v1108
    %v1148 = vpack.c.bf16 %v1111, %v1109
    %v1150 = vlaneseq
    %v1151 = vshrl.u32 %v1150, 7
    %v1152 = vsub.s32 0, %v1151
    %v1153 = vrot.slane %v1146, %v1152
    %v1154 = vlaneseq
    %v1155 = vshrl.u32 %v1154, 7
    %v1156 = vsub.s32 1, %v1155
    %v1157 = vrot.slane %v1146, %v1156
    %v1192 = vunpack.c.l.b16 %v1113
    %v1193 = vunpack.c.h.b16 %v1113
    %v1194 = vunpack.c.l.b16 %v1114
    %v1195 = vunpack.c.h.b16 %v1114
    %v1196 = vunpack.c.l.b16 %v1115
    %v1197 = vunpack.c.h.b16 %v1115
    %v1198 = vunpack.c.l.b16 %v1116
    %v1199 = vunpack.c.h.b16 %v1116
    %v1200 = vunpack.c.l.b16 %v1117
    %v1201 = vunpack.c.h.b16 %v1117
    %v1202 = vunpack.c.l.b16 %v1118
    %v1203 = vunpack.c.h.b16 %v1118
    %v1204 = vunpack.c.l.b16 %v1119
    %v1205 = vunpack.c.h.b16 %v1119
    %v1206 = vunpack.c.l.b16 %v1120
    %v1207 = vunpack.c.h.b16 %v1120
    %v1208 = vunpack.c.l.b16 %v1121
    %v1209 = vunpack.c.h.b16 %v1121
    %v1210 = vunpack.c.l.b16 %v1122
    %v1211 = vunpack.c.h.b16 %v1122
    %v1212 = vunpack.c.l.b16 %v1123
    %v1213 = vunpack.c.h.b16 %v1123
    %v1214 = vunpack.c.l.b16 %v1124
    %v1215 = vunpack.c.h.b16 %v1124
    %v1216 = vunpack.c.l.b16 %v1125
    %v1217 = vunpack.c.h.b16 %v1125
    %v1218 = vunpack.c.l.b16 %v1126
    %v1219 = vunpack.c.h.b16 %v1126
    %v1220 = vunpack.c.l.b16 %v1127
    %v1221 = vunpack.c.h.b16 %v1127
    %v1222 = vunpack.c.l.b16 %v1128
    %v1223 = vunpack.c.h.b16 %v1128
    %v1224 = vunpack.c.l.b16 %v1129
    %v1225 = vunpack.c.h.b16 %v1129
    %v1226 = vunpack.c.l.b16 %v1130
    %v1227 = vunpack.c.h.b16 %v1130
    %v1228 = vunpack.c.l.b16 %v1131
    %v1229 = vunpack.c.h.b16 %v1131
    %v1230 = vunpack.c.l.b16 %v1132
    %v1231 = vunpack.c.h.b16 %v1132
    %v1232 = vunpack.c.l.b16 %v1133
    %v1233 = vunpack.c.h.b16 %v1133
    %v1234 = vunpack.c.l.b16 %v1134
    %v1235 = vunpack.c.h.b16 %v1134
    %v1236 = vunpack.c.l.b16 %v1135
    %v1237 = vunpack.c.h.b16 %v1135
    %v1238 = vunpack.c.l.b16 %v1136
    %v1239 = vunpack.c.h.b16 %v1136
    %v1240 = vunpack.c.l.b16 %v1137
    %v1241 = vunpack.c.h.b16 %v1137
    %v1242 = vunpack.c.l.b16 %v1138
    %v1243 = vunpack.c.h.b16 %v1138
    %v1244 = vunpack.c.l.b16 %v1139
    %v1245 = vunpack.c.h.b16 %v1139
    %v1246 = vunpack.c.l.b16 %v1140
    %v1247 = vunpack.c.h.b16 %v1140
    %v1248 = vunpack.c.l.b16 %v1141
    %v1249 = vunpack.c.h.b16 %v1141
    %v1250 = vunpack.c.l.b16 %v1142
    %v1251 = vunpack.c.h.b16 %v1142
    %v1252 = vunpack.c.l.b16 %v1143
    %v1253 = vunpack.c.h.b16 %v1143
    %v1254 = vunpack.c.l.b16 %v1144
    %v1255 = vunpack.c.h.b16 %v1144
    %v1256 = vpack.c.b16 %v1194, %v1192
    %v1257 = vpack.c.b16 %v1195, %v1193
    %v1258 = vpack.c.b16 %v1198, %v1196
    %v1259 = vpack.c.b16 %v1199, %v1197
    %v1260 = vpack.c.b16 %v1202, %v1200
    %v1261 = vpack.c.b16 %v1203, %v1201
    %v1262 = vpack.c.b16 %v1206, %v1204
    %v1263 = vpack.c.b16 %v1207, %v1205
    %v1264 = vpack.c.b16 %v1210, %v1208
    %v1265 = vpack.c.b16 %v1211, %v1209
    %v1266 = vpack.c.b16 %v1214, %v1212
    %v1267 = vpack.c.b16 %v1215, %v1213
    %v1268 = vpack.c.b16 %v1218, %v1216
    %v1269 = vpack.c.b16 %v1219, %v1217
    %v1270 = vpack.c.b16 %v1222, %v1220
    %v1271 = vpack.c.b16 %v1223, %v1221
    %v1272 = vpack.c.b16 %v1226, %v1224
    %v1273 = vpack.c.b16 %v1227, %v1225
    %v1274 = vpack.c.b16 %v1230, %v1228
    %v1275 = vpack.c.b16 %v1231, %v1229
    %v1276 = vpack.c.b16 %v1234, %v1232
    %v1277 = vpack.c.b16 %v1235, %v1233
    %v1278 = vpack.c.b16 %v1238, %v1236
    %v1279 = vpack.c.b16 %v1239, %v1237
    %v1280 = vpack.c.b16 %v1242, %v1240
    %v1281 = vpack.c.b16 %v1243, %v1241
    %v1282 = vpack.c.b16 %v1246, %v1244
    %v1283 = vpack.c.b16 %v1247, %v1245
    %v1284 = vpack.c.b16 %v1250, %v1248
    %v1285 = vpack.c.b16 %v1251, %v1249
    %v1286 = vpack.c.b16 %v1254, %v1252
    %v1287 = vpack.c.b16 %v1255, %v1253
    %1320 = vmatprep.subr.bf16.mxu0 %v1257
    %1321 = vmatpush1.bf16.msra.mxu0 %v1256
    %1322 = vmatprep.subr.bf16.mxu0 %v1259
    %1323 = vmatpush1.bf16.msra.mxu0 %v1258
    %1324 = vmatprep.subr.bf16.mxu0 %v1261
    %1325 = vmatpush1.bf16.msra.mxu0 %v1260
    %1326 = vmatprep.subr.bf16.mxu0 %v1263
    %1327 = vmatpush1.bf16.msra.mxu0 %v1262
    %1328 = vmatprep.subr.bf16.mxu0 %v1265
    %1329 = vmatpush1.bf16.msra.mxu0 %v1264
    %1330 = vmatprep.subr.bf16.mxu0 %v1267
    %1331 = vmatpush1.bf16.msra.mxu0 %v1266
    %1332 = vmatprep.subr.bf16.mxu0 %v1269
    %1333 = vmatpush1.bf16.msra.mxu0 %v1268
    %1334 = vmatprep.subr.bf16.mxu0 %v1271
    %1335 = vmatpush1.bf16.msra.mxu0 %v1270
    %1336 = vmatprep.subr.bf16.mxu0 %v1273
    %1337 = vmatpush1.bf16.msra.mxu0 %v1272
    %1338 = vmatprep.subr.bf16.mxu0 %v1275
    %1339 = vmatpush1.bf16.msra.mxu0 %v1274
    %1340 = vmatprep.subr.bf16.mxu0 %v1277
    %1341 = vmatpush1.bf16.msra.mxu0 %v1276
    %1342 = vmatprep.subr.bf16.mxu0 %v1279
    %1343 = vmatpush1.bf16.msra.mxu0 %v1278
    %1344 = vmatprep.subr.bf16.mxu0 %v1281
    %1345 = vmatpush1.bf16.msra.mxu0 %v1280
    %1346 = vmatprep.subr.bf16.mxu0 %v1283
    %1347 = vmatpush1.bf16.msra.mxu0 %v1282
    %1348 = vmatprep.subr.bf16.mxu0 %v1285
    %1349 = vmatpush1.bf16.msra.mxu0 %v1284
    %1350 = vmatprep.subr.bf16.mxu0 %v1287
    %1351 = vmatpush1.bf16.msra.mxu0 %v1286
    %1352 = vmatprep.mubr.bf16.mxu0 %v1148
    %1353 = vmatmul.mubr.bf16.gmra.mrb[0].mxu0 %v1147
    %v1354 = vpop.f32.mrb[0].mxu0
    %v1355 = vadd.f32 %v1153, %v1354
    %v1356 = vpop.f32.mrb[0].mxu0
    %v1357 = vadd.f32 %v1157, %v1356
    %v1358 = vpop.f32.mrb[0].mxu0
    %v1359 = vadd.f32 %v1153, %v1358
    %v1360 = vpop.f32.mrb[0].mxu0
    %v1361 = vadd.f32 %v1157, %v1360
    %1362 = vdwg.mxu0
    %v1363 = vpack.c.bf16 %v1359, %v1355
    %v1364 = vpack.c.bf16 %v1361, %v1357
    %1365 = vmatprep.subr.bf16.mxu0 %v1364
    %1366 = vmatpush1.bf16.msra.mxu0 %v1363
    %1367 = vmatprep.subr.bf16.mxu0 0
    %1368 = vmatpush1.bf16.msra.mxu0 0
    %1369 = vmatprep.subr.bf16.mxu0 0
    %1370 = vmatpush1.bf16.msra.mxu0 0
    %1371 = vmatprep.subr.bf16.mxu0 0
    %1372 = vmatpush1.bf16.msra.mxu0 0
    %1373 = vmatprep.subr.bf16.mxu0 0
    %1374 = vmatpush1.bf16.msra.mxu0 0
    %1375 = vmatprep.subr.bf16.mxu0 0
    %1376 = vmatpush1.bf16.msra.mxu0 0
    %1377 = vmatprep.subr.bf16.mxu0 0
    %1378 = vmatpush1.bf16.msra.mxu0 0
    %1379 = vmatprep.subr.bf16.mxu0 0
    %1380 = vmatpush1.bf16.msra.mxu0 0
    %1381 = vmatprep.subr.bf16.mxu0 0
    %1382 = vmatpush1.bf16.msra.mxu0 0
    %1383 = vmatprep.subr.bf16.mxu0 0
    %1384 = vmatpush1.bf16.msra.mxu0 0
    %1385 = vmatprep.subr.bf16.mxu0 0
    %1386 = vmatpush1.bf16.msra.mxu0 0
    %1387 = vmatprep.subr.bf16.mxu0 0
    %1388 = vmatpush1.bf16.msra.mxu0 0
    %1389 = vmatprep.subr.bf16.mxu0 0
    %1390 = vmatpush1.bf16.msra.mxu0 0
    %1391 = vmatprep.subr.bf16.mxu0 0
    %1392 = vmatpush1.bf16.msra.mxu0 0
    %1393 = vmatprep.subr.bf16.mxu0 0
    %1394 = vmatpush1.bf16.msra.mxu0 0
    %1395 = vmatprep.subr.bf16.mxu0 0
    %1396 = vmatpush1.bf16.msra.mxu0 0
    %1397 = vmatprep.mubr.bf16.mxu0 0
    %1398 = vmatmul.mubr.bf16.gmra.mrb[0].mxu0 %v463
    %v1399 = vpop.f32.mrb[0].mxu0
    %v1400 = vadd.f32 0.0, %v1399
    %v1401 = vpop.f32.mrb[0].mxu0
    %v1402 = vadd.f32 0.0, %v1401
    %v1403 = vpop.f32.mrb[0].mxu0
    %v1404 = vadd.f32 0.0, %v1403
    %v1405 = vpop.f32.mrb[0].mxu0
    %v1406 = vadd.f32 0.0, %v1405
    %1407 = vdwg.mxu0
    %v1408 = vmax.f32 %v1400, 0.0
    %v1409 = vmax.f32 %v1402, 0.0
    %v1410 = vmax.f32 %v1404, 0.0
    %v1411 = vmax.f32 %v1406, 0.0
    %s1412 = scalar_lea.vmem [#allocation10], 1024
    %v1413 = vld [vmem:[%s1412] sm:$0xff]
    %v1414 = vld [vmem:[%s1412 + $0x8] sm:$0xff]
    %v1415 = vld [vmem:[%s1412 + $0x10] sm:$0xff]
    %v1416 = vld [vmem:[%s1412 + $0x18] sm:$0xff]
    %v1417 = vld [vmem:[%s1412 + $0x20] sm:$0xff]
    %v1418 = vld [vmem:[%s1412 + $0x28] sm:$0xff]
    %v1419 = vld [vmem:[%s1412 + $0x30] sm:$0xff]
    %v1420 = vld [vmem:[%s1412 + $0x38] sm:$0xff]
    %v1421 = vld [vmem:[%s1412 + $0x40] sm:$0xff]
    %v1422 = vld [vmem:[%s1412 + $0x48] sm:$0xff]
    %v1423 = vld [vmem:[%s1412 + $0x50] sm:$0xff]
    %v1424 = vld [vmem:[%s1412 + $0x58] sm:$0xff]
    %v1425 = vld [vmem:[%s1412 + $0x60] sm:$0xff]
    %v1426 = vld [vmem:[%s1412 + $0x68] sm:$0xff]
    %v1427 = vld [vmem:[%s1412 + $0x70] sm:$0xff]
    %v1428 = vld [vmem:[%s1412 + $0x78] sm:$0xff]
    %v1429 = vld [vmem:[%s1412 + $0x80] sm:$0xff]
    %v1430 = vld [vmem:[%s1412 + $0x88] sm:$0xff]
    %v1431 = vld [vmem:[%s1412 + $0x90] sm:$0xff]
    %v1432 = vld [vmem:[%s1412 + $0x98] sm:$0xff]
    %v1433 = vld [vmem:[%s1412 + $0xa0] sm:$0xff]
    %v1434 = vld [vmem:[%s1412 + $0xa8] sm:$0xff]
    %v1435 = vld [vmem:[%s1412 + $0xb0] sm:$0xff]
    %v1436 = vld [vmem:[%s1412 + $0xb8] sm:$0xff]
    %v1437 = vld [vmem:[%s1412 + $0xc0] sm:$0xff]
    %v1438 = vld [vmem:[%s1412 + $0xc8] sm:$0xff]
    %v1439 = vld [vmem:[%s1412 + $0xd0] sm:$0xff]
    %v1440 = vld [vmem:[%s1412 + $0xd8] sm:$0xff]
    %v1441 = vld [vmem:[%s1412 + $0xe0] sm:$0xff]
    %v1442 = vld [vmem:[%s1412 + $0xe8] sm:$0xff]
    %v1443 = vld [vmem:[%s1412 + $0xf0] sm:$0xff]
    %v1444 = vld [vmem:[%s1412 + $0xf8] sm:$0xff]
    %s1445 = scalar_lea.vmem [#allocation11], 8
    %v1446 = vld [vmem:[%s1445] sm:$0x3]
    %v1447 = vpack.c.bf16 %v1410, %v1408
    %v1448 = vpack.c.bf16 %v1411, %v1409
    %v1450 = vlaneseq
    %v1451 = vshrl.u32 %v1450, 7
    %v1452 = vsub.s32 0, %v1451
    %v1453 = vrot.slane %v1446, %v1452
    %v1454 = vlaneseq
    %v1455 = vshrl.u32 %v1454, 7
    %v1456 = vsub.s32 1, %v1455
    %v1457 = vrot.slane %v1446, %v1456
    %v1492 = vunpack.c.l.b16 %v1413
    %v1493 = vunpack.c.h.b16 %v1413
    %v1494 = vunpack.c.l.b16 %v1414
    %v1495 = vunpack.c.h.b16 %v1414
    %v1496 = vunpack.c.l.b16 %v1415
    %v1497 = vunpack.c.h.b16 %v1415
    %v1498 = vunpack.c.l.b16 %v1416
    %v1499 = vunpack.c.h.b16 %v1416
    %v1500 = vunpack.c.l.b16 %v1417
    %v1501 = vunpack.c.h.b16 %v1417
    %v1502 = vunpack.c.l.b16 %v1418
    %v1503 = vunpack.c.h.b16 %v1418
    %v1504 = vunpack.c.l.b16 %v1419
    %v1505 = vunpack.c.h.b16 %v1419
    %v1506 = vunpack.c.l.b16 %v1420
    %v1507 = vunpack.c.h.b16 %v1420
    %v1508 = vunpack.c.l.b16 %v1421
    %v1509 = vunpack.c.h.b16 %v1421
    %v1510 = vunpack.c.l.b16 %v1422
    %v1511 = vunpack.c.h.b16 %v1422
    %v1512 = vunpack.c.l.b16 %v1423
    %v1513 = vunpack.c.h.b16 %v1423
    %v1514 = vunpack.c.l.b16 %v1424
    %v1515 = vunpack.c.h.b16 %v1424
    %v1516 = vunpack.c.l.b16 %v1425
    %v1517 = vunpack.c.h.b16 %v1425
    %v1518 = vunpack.c.l.b16 %v1426
    %v1519 = vunpack.c.h.b16 %v1426
    %v1520 = vunpack.c.l.b16 %v1427
    %v1521 = vunpack.c.h.b16 %v1427
    %v1522 = vunpack.c.l.b16 %v1428
    %v1523 = vunpack.c.h.b16 %v1428
    %v1524 = vunpack.c.l.b16 %v1429
    %v1525 = vunpack.c.h.b16 %v1429
    %v1526 = vunpack.c.l.b16 %v1430
    %v1527 = vunpack.c.h.b16 %v1430
    %v1528 = vunpack.c.l.b16 %v1431
    %v1529 = vunpack.c.h.b16 %v1431
    %v1530 = vunpack.c.l.b16 %v1432
    %v1531 = vunpack.c.h.b16 %v1432
    %v1532 = vunpack.c.l.b16 %v1433
    %v1533 = vunpack.c.h.b16 %v1433
    %v1534 = vunpack.c.l.b16 %v1434
    %v1535 = vunpack.c.h.b16 %v1434
    %v1536 = vunpack.c.l.b16 %v1435
    %v1537 = vunpack.c.h.b16 %v1435
    %v1538 = vunpack.c.l.b16 %v1436
    %v1539 = vunpack.c.h.b16 %v1436
    %v1540 = vunpack.c.l.b16 %v1437
    %v1541 = vunpack.c.h.b16 %v1437
    %v1542 = vunpack.c.l.b16 %v1438
    %v1543 = vunpack.c.h.b16 %v1438
    %v1544 = vunpack.c.l.b16 %v1439
    %v1545 = vunpack.c.h.b16 %v1439
    %v1546 = vunpack.c.l.b16 %v1440
    %v1547 = vunpack.c.h.b16 %v1440
    %v1548 = vunpack.c.l.b16 %v1441
    %v1549 = vunpack.c.h.b16 %v1441
    %v1550 = vunpack.c.l.b16 %v1442
    %v1551 = vunpack.c.h.b16 %v1442
    %v1552 = vunpack.c.l.b16 %v1443
    %v1553 = vunpack.c.h.b16 %v1443
    %v1554 = vunpack.c.l.b16 %v1444
    %v1555 = vunpack.c.h.b16 %v1444
    %v1556 = vpack.c.b16 %v1494, %v1492
    %v1557 = vpack.c.b16 %v1495, %v1493
    %v1558 = vpack.c.b16 %v1498, %v1496
    %v1559 = vpack.c.b16 %v1499, %v1497
    %v1560 = vpack.c.b16 %v1502, %v1500
    %v1561 = vpack.c.b16 %v1503, %v1501
    %v1562 = vpack.c.b16 %v1506, %v1504
    %v1563 = vpack.c.b16 %v1507, %v1505
    %v1564 = vpack.c.b16 %v1510, %v1508
    %v1565 = vpack.c.b16 %v1511, %v1509
    %v1566 = vpack.c.b16 %v1514, %v1512
    %v1567 = vpack.c.b16 %v1515, %v1513
    %v1568 = vpack.c.b16 %v1518, %v1516
    %v1569 = vpack.c.b16 %v1519, %v1517
    %v1570 = vpack.c.b16 %v1522, %v1520
    %v1571 = vpack.c.b16 %v1523, %v1521
    %v1572 = vpack.c.b16 %v1526, %v1524
    %v1573 = vpack.c.b16 %v1527, %v1525
    %v1574 = vpack.c.b16 %v1530, %v1528
    %v1575 = vpack.c.b16 %v1531, %v1529
    %v1576 = vpack.c.b16 %v1534, %v1532
    %v1577 = vpack.c.b16 %v1535, %v1533
    %v1578 = vpack.c.b16 %v1538, %v1536
    %v1579 = vpack.c.b16 %v1539, %v1537
    %v1580 = vpack.c.b16 %v1542, %v1540
    %v1581 = vpack.c.b16 %v1543, %v1541
    %v1582 = vpack.c.b16 %v1546, %v1544
    %v1583 = vpack.c.b16 %v1547, %v1545
    %v1584 = vpack.c.b16 %v1550, %v1548
    %v1585 = vpack.c.b16 %v1551, %v1549
    %v1586 = vpack.c.b16 %v1554, %v1552
    %v1587 = vpack.c.b16 %v1555, %v1553
    %1620 = vmatprep.subr.bf16.mxu0 %v1557
    %1621 = vmatpush1.bf16.msra.mxu0 %v1556
    %1622 = vmatprep.subr.bf16.mxu0 %v1559
    %1623 = vmatpush1.bf16.msra.mxu0 %v1558
    %1624 = vmatprep.subr.bf16.mxu0 %v1561
    %1625 = vmatpush1.bf16.msra.mxu0 %v1560
    %1626 = vmatprep.subr.bf16.mxu0 %v1563
    %1627 = vmatpush1.bf16.msra.mxu0 %v1562
    %1628 = vmatprep.subr.bf16.mxu0 %v1565
    %1629 = vmatpush1.bf16.msra.mxu0 %v1564
    %1630 = vmatprep.subr.bf16.mxu0 %v1567
    %1631 = vmatpush1.bf16.msra.mxu0 %v1566
    %1632 = vmatprep.subr.bf16.mxu0 %v1569
    %1633 = vmatpush1.bf16.msra.mxu0 %v1568
    %1634 = vmatprep.subr.bf16.mxu0 %v1571
    %1635 = vmatpush1.bf16.msra.mxu0 %v1570
    %1636 = vmatprep.subr.bf16.mxu0 %v1573
    %1637 = vmatpush1.bf16.msra.mxu0 %v1572
    %1638 = vmatprep.subr.bf16.mxu0 %v1575
    %1639 = vmatpush1.bf16.msra.mxu0 %v1574
    %1640 = vmatprep.subr.bf16.mxu0 %v1577
    %1641 = vmatpush1.bf16.msra.mxu0 %v1576
    %1642 = vmatprep.subr.bf16.mxu0 %v1579
    %1643 = vmatpush1.bf16.msra.mxu0 %v1578
    %1644 = vmatprep.subr.bf16.mxu0 %v1581
    %1645 = vmatpush1.bf16.msra.mxu0 %v1580
    %1646 = vmatprep.subr.bf16.mxu0 %v1583
    %1647 = vmatpush1.bf16.msra.mxu0 %v1582
    %1648 = vmatprep.subr.bf16.mxu0 %v1585
    %1649 = vmatpush1.bf16.msra.mxu0 %v1584
    %1650 = vmatprep.subr.bf16.mxu0 %v1587
    %1651 = vmatpush1.bf16.msra.mxu0 %v1586
    %1652 = vmatprep.mubr.bf16.mxu0 %v1448
    %1653 = vmatmul.mubr.bf16.gmra.mrb[0].mxu0 %v1447
    %v1654 = vpop.f32.mrb[0].mxu0
    %v1655 = vadd.f32 %v1453, %v1654
    %v1656 = vpop.f32.mrb[0].mxu0
    %v1657 = vadd.f32 %v1457, %v1656
    %v1658 = vpop.f32.mrb[0].mxu0
    %v1659 = vadd.f32 %v1453, %v1658
    %v1660 = vpop.f32.mrb[0].mxu0
    %v1661 = vadd.f32 %v1457, %v1660
    %1662 = vdwg.mxu0
    %v1663 = vpack.c.bf16 %v1659, %v1655
    %v1664 = vpack.c.bf16 %v1661, %v1657
    %1665 = vmatprep.subr.bf16.mxu0 %v1664
    %1666 = vmatpush1.bf16.msra.mxu0 %v1663
    %1667 = vmatprep.subr.bf16.mxu0 0
    %1668 = vmatpush1.bf16.msra.mxu0 0
    %1669 = vmatprep.subr.bf16.mxu0 0
    %1670 = vmatpush1.bf16.msra.mxu0 0
    %1671 = vmatprep.subr.bf16.mxu0 0
    %1672 = vmatpush1.bf16.msra.mxu0 0
    %1673 = vmatprep.subr.bf16.mxu0 0
    %1674 = vmatpush1.bf16.msra.mxu0 0
    %1675 = vmatprep.subr.bf16.mxu0 0
    %1676 = vmatpush1.bf16.msra.mxu0 0
    %1677 = vmatprep.subr.bf16.mxu0 0
    %1678 = vmatpush1.bf16.msra.mxu0 0
    %1679 = vmatprep.subr.bf16.mxu0 0
    %1680 = vmatpush1.bf16.msra.mxu0 0
    %1681 = vmatprep.subr.bf16.mxu0 0
    %1682 = vmatpush1.bf16.msra.mxu0 0
    %1683 = vmatprep.subr.bf16.mxu0 0
    %1684 = vmatpush1.bf16.msra.mxu0 0
    %1685 = vmatprep.subr.bf16.mxu0 0
    %1686 = vmatpush1.bf16.msra.mxu0 0
    %1687 = vmatprep.subr.bf16.mxu0 0
    %1688 = vmatpush1.bf16.msra.mxu0 0
    %1689 = vmatprep.subr.bf16.mxu0 0
    %1690 = vmatpush1.bf16.msra.mxu0 0
    %1691 = vmatprep.subr.bf16.mxu0 0
    %1692 = vmatpush1.bf16.msra.mxu0 0
    %1693 = vmatprep.subr.bf16.mxu0 0
    %1694 = vmatpush1.bf16.msra.mxu0 0
    %1695 = vmatprep.subr.bf16.mxu0 0
    %1696 = vmatpush1.bf16.msra.mxu0 0
    %1697 = vmatprep.mubr.bf16.mxu0 0
    %1698 = vmatmul.mubr.bf16.gmra.mrb[0].mxu0 %v463
    %v1699 = vpop.f32.mrb[0].mxu0
    %v1700 = vadd.f32 0.0, %v1699
    %v1701 = vpop.f32.mrb[0].mxu0
    %v1702 = vadd.f32 0.0, %v1701
    %v1703 = vpop.f32.mrb[0].mxu0
    %v1704 = vadd.f32 0.0, %v1703
    %v1705 = vpop.f32.mrb[0].mxu0
    %v1706 = vadd.f32 0.0, %v1705
    %1707 = vdwg.mxu0
    %v1708 = vmax.f32 %v1700, 0.0
    %v1709 = vmax.f32 %v1702, 0.0
    %v1710 = vmax.f32 %v1704, 0.0
    %v1711 = vmax.f32 %v1706, 0.0
    %s1712 = scalar_lea.vmem [#allocation10], 1280
    %v1713 = vld [vmem:[%s1712] sm:$0xff]
    %v1714 = vld [vmem:[%s1712 + $0x8] sm:$0xff]
    %v1715 = vld [vmem:[%s1712 + $0x10] sm:$0xff]
    %v1716 = vld [vmem:[%s1712 + $0x18] sm:$0xff]
    %v1717 = vld [vmem:[%s1712 + $0x20] sm:$0xff]
    %v1718 = vld [vmem:[%s1712 + $0x28] sm:$0xff]
    %v1719 = vld [vmem:[%s1712 + $0x30] sm:$0xff]
    %v1720 = vld [vmem:[%s1712 + $0x38] sm:$0xff]
    %v1721 = vld [vmem:[%s1712 + $0x40] sm:$0xff]
    %v1722 = vld [vmem:[%s1712 + $0x48] sm:$0xff]
    %v1723 = vld [vmem:[%s1712 + $0x50] sm:$0xff]
    %v1724 = vld [vmem:[%s1712 + $0x58] sm:$0xff]
    %v1725 = vld [vmem:[%s1712 + $0x60] sm:$0xff]
    %v1726 = vld [vmem:[%s1712 + $0x68] sm:$0xff]
    %v1727 = vld [vmem:[%s1712 + $0x70] sm:$0xff]
    %v1728 = vld [vmem:[%s1712 + $0x78] sm:$0xff]
    %v1729 = vld [vmem:[%s1712 + $0x80] sm:$0xff]
    %v1730 = vld [vmem:[%s1712 + $0x88] sm:$0xff]
    %v1731 = vld [vmem:[%s1712 + $0x90] sm:$0xff]
    %v1732 = vld [vmem:[%s1712 + $0x98] sm:$0xff]
    %v1733 = vld [vmem:[%s1712 + $0xa0] sm:$0xff]
    %v1734 = vld [vmem:[%s1712 + $0xa8] sm:$0xff]
    %v1735 = vld [vmem:[%s1712 + $0xb0] sm:$0xff]
    %v1736 = vld [vmem:[%s1712 + $0xb8] sm:$0xff]
    %v1737 = vld [vmem:[%s1712 + $0xc0] sm:$0xff]
    %v1738 = vld [vmem:[%s1712 + $0xc8] sm:$0xff]
    %v1739 = vld [vmem:[%s1712 + $0xd0] sm:$0xff]
    %v1740 = vld [vmem:[%s1712 + $0xd8] sm:$0xff]
    %v1741 = vld [vmem:[%s1712 + $0xe0] sm:$0xff]
    %v1742 = vld [vmem:[%s1712 + $0xe8] sm:$0xff]
    %v1743 = vld [vmem:[%s1712 + $0xf0] sm:$0xff]
    %v1744 = vld [vmem:[%s1712 + $0xf8] sm:$0xff]
    %s1745 = scalar_lea.vmem [#allocation11], 10
    %v1746 = vld [vmem:[%s1745] sm:$0x3]
    %v1747 = vpack.c.bf16 %v1710, %v1708
    %v1748 = vpack.c.bf16 %v1711, %v1709
    %v1750 = vlaneseq
    %v1751 = vshrl.u32 %v1750, 7
    %v1752 = vsub.s32 0, %v1751
    %v1753 = vrot.slane %v1746, %v1752
    %v1754 = vlaneseq
    %v1755 = vshrl.u32 %v1754, 7
    %v1756 = vsub.s32 1, %v1755
    %v1757 = vrot.slane %v1746, %v1756
    %v1792 = vunpack.c.l.b16 %v1713
    %v1793 = vunpack.c.h.b16 %v1713
    %v1794 = vunpack.c.l.b16 %v1714
    %v1795 = vunpack.c.h.b16 %v1714
    %v1796 = vunpack.c.l.b16 %v1715
    %v1797 = vunpack.c.h.b16 %v1715
    %v1798 = vunpack.c.l.b16 %v1716
    %v1799 = vunpack.c.h.b16 %v1716
    %v1800 = vunpack.c.l.b16 %v1717
    %v1801 = vunpack.c.h.b16 %v1717
    %v1802 = vunpack.c.l.b16 %v1718
    %v1803 = vunpack.c.h.b16 %v1718
    %v1804 = vunpack.c.l.b16 %v1719
    %v1805 = vunpack.c.h.b16 %v1719
    %v1806 = vunpack.c.l.b16 %v1720
    %v1807 = vunpack.c.h.b16 %v1720
    %v1808 = vunpack.c.l.b16 %v1721
    %v1809 = vunpack.c.h.b16 %v1721
    %v1810 = vunpack.c.l.b16 %v1722
    %v1811 = vunpack.c.h.b16 %v1722
    %v1812 = vunpack.c.l.b16 %v1723
    %v1813 = vunpack.c.h.b16 %v1723
    %v1814 = vunpack.c.l.b16 %v1724
    %v1815 = vunpack.c.h.b16 %v1724
    %v1816 = vunpack.c.l.b16 %v1725
    %v1817 = vunpack.c.h.b16 %v1725
    %v1818 = vunpack.c.l.b16 %v1726
    %v1819 = vunpack.c.h.b16 %v1726
    %v1820 = vunpack.c.l.b16 %v1727
    %v1821 = vunpack.c.h.b16 %v1727
    %v1822 = vunpack.c.l.b16 %v1728
    %v1823 = vunpack.c.h.b16 %v1728
    %v1824 = vunpack.c.l.b16 %v1729
    %v1825 = vunpack.c.h.b16 %v1729
    %v1826 = vunpack.c.l.b16 %v1730
    %v1827 = vunpack.c.h.b16 %v1730
    %v1828 = vunpack.c.l.b16 %v1731
    %v1829 = vunpack.c.h.b16 %v1731
    %v1830 = vunpack.c.l.b16 %v1732
    %v1831 = vunpack.c.h.b16 %v1732
    %v1832 = vunpack.c.l.b16 %v1733
    %v1833 = vunpack.c.h.b16 %v1733
    %v1834 = vunpack.c.l.b16 %v1734
    %v1835 = vunpack.c.h.b16 %v1734
    %v1836 = vunpack.c.l.b16 %v1735
    %v1837 = vunpack.c.h.b16 %v1735
    %v1838 = vunpack.c.l.b16 %v1736
    %v1839 = vunpack.c.h.b16 %v1736
    %v1840 = vunpack.c.l.b16 %v1737
    %v1841 = vunpack.c.h.b16 %v1737
    %v1842 = vunpack.c.l.b16 %v1738
    %v1843 = vunpack.c.h.b16 %v1738
    %v1844 = vunpack.c.l.b16 %v1739
    %v1845 = vunpack.c.h.b16 %v1739
    %v1846 = vunpack.c.l.b16 %v1740
    %v1847 = vunpack.c.h.b16 %v1740
    %v1848 = vunpack.c.l.b16 %v1741
    %v1849 = vunpack.c.h.b16 %v1741
    %v1850 = vunpack.c.l.b16 %v1742
    %v1851 = vunpack.c.h.b16 %v1742
    %v1852 = vunpack.c.l.b16 %v1743
    %v1853 = vunpack.c.h.b16 %v1743
    %v1854 = vunpack.c.l.b16 %v1744
    %v1855 = vunpack.c.h.b16 %v1744
    %v1856 = vpack.c.b16 %v1794, %v1792
    %v1857 = vpack.c.b16 %v1795, %v1793
    %v1858 = vpack.c.b16 %v1798, %v1796
    %v1859 = vpack.c.b16 %v1799, %v1797
    %v1860 = vpack.c.b16 %v1802, %v1800
    %v1861 = vpack.c.b16 %v1803, %v1801
    %v1862 = vpack.c.b16 %v1806, %v1804
    %v1863 = vpack.c.b16 %v1807, %v1805
    %v1864 = vpack.c.b16 %v1810, %v1808
    %v1865 = vpack.c.b16 %v1811, %v1809
    %v1866 = vpack.c.b16 %v1814, %v1812
    %v1867 = vpack.c.b16 %v1815, %v1813
    %v1868 = vpack.c.b16 %v1818, %v1816
    %v1869 = vpack.c.b16 %v1819, %v1817
    %v1870 = vpack.c.b16 %v1822, %v1820
    %v1871 = vpack.c.b16 %v1823, %v1821
    %v1872 = vpack.c.b16 %v1826, %v1824
    %v1873 = vpack.c.b16 %v1827, %v1825
    %v1874 = vpack.c.b16 %v1830, %v1828
    %v1875 = vpack.c.b16 %v1831, %v1829
    %v1876 = vpack.c.b16 %v1834, %v1832
    %v1877 = vpack.c.b16 %v1835, %v1833
    %v1878 = vpack.c.b16 %v1838, %v1836
    %v1879 = vpack.c.b16 %v1839, %v1837
    %v1880 = vpack.c.b16 %v1842, %v1840
    %v1881 = vpack.c.b16 %v1843, %v1841
    %v1882 = vpack.c.b16 %v1846, %v1844
    %v1883 = vpack.c.b16 %v1847, %v1845
    %v1884 = vpack.c.b16 %v1850, %v1848
    %v1885 = vpack.c.b16 %v1851, %v1849
    %v1886 = vpack.c.b16 %v1854, %v1852
    %v1887 = vpack.c.b16 %v1855, %v1853
    %1920 = vmatprep.subr.bf16.mxu0 %v1857
    %1921 = vmatpush1.bf16.msra.mxu0 %v1856
    %1922 = vmatprep.subr.bf16.mxu0 %v1859
    %1923 = vmatpush1.bf16.msra.mxu0 %v1858
    %1924 = vmatprep.subr.bf16.mxu0 %v1861
    %1925 = vmatpush1.bf16.msra.mxu0 %v1860
    %1926 = vmatprep.subr.bf16.mxu0 %v1863
    %1927 = vmatpush1.bf16.msra.mxu0 %v1862
    %1928 = vmatprep.subr.bf16.mxu0 %v1865
    %1929 = vmatpush1.bf16.msra.mxu0 %v1864
    %1930 = vmatprep.subr.bf16.mxu0 %v1867
    %1931 = vmatpush1.bf16.msra.mxu0 %v1866
    %1932 = vmatprep.subr.bf16.mxu0 %v1869
    %1933 = vmatpush1.bf16.msra.mxu0 %v1868
    %1934 = vmatprep.subr.bf16.mxu0 %v1871
    %1935 = vmatpush1.bf16.msra.mxu0 %v1870
    %1936 = vmatprep.subr.bf16.mxu0 %v1873
    %1937 = vmatpush1.bf16.msra.mxu0 %v1872
    %1938 = vmatprep.subr.bf16.mxu0 %v1875
    %1939 = vmatpush1.bf16.msra.mxu0 %v1874
    %1940 = vmatprep.subr.bf16.mxu0 %v1877
    %1941 = vmatpush1.bf16.msra.mxu0 %v1876
    %1942 = vmatprep.subr.bf16.mxu0 %v1879
    %1943 = vmatpush1.bf16.msra.mxu0 %v1878
    %1944 = vmatprep.subr.bf16.mxu0 %v1881
    %1945 = vmatpush1.bf16.msra.mxu0 %v1880
    %1946 = vmatprep.subr.bf16.mxu0 %v1883
    %1947 = vmatpush1.bf16.msra.mxu0 %v1882
    %1948 = vmatprep.subr.bf16.mxu0 %v1885
    %1949 = vmatpush1.bf16.msra.mxu0 %v1884
    %1950 = vmatprep.subr.bf16.mxu0 %v1887
    %1951 = vmatpush1.bf16.msra.mxu0 %v1886
    %1952 = vmatprep.mubr.bf16.mxu0 %v1748
    %1953 = vmatmul.mubr.bf16.gmra.mrb[0].mxu0 %v1747
    %v1954 = vpop.f32.mrb[0].mxu0
    %v1955 = vadd.f32 %v1753, %v1954
    %v1956 = vpop.f32.mrb[0].mxu0
    %v1957 = vadd.f32 %v1757, %v1956
    %v1958 = vpop.f32.mrb[0].mxu0
    %v1959 = vadd.f32 %v1753, %v1958
    %v1960 = vpop.f32.mrb[0].mxu0
    %v1961 = vadd.f32 %v1757, %v1960
    %1962 = vdwg.mxu0
    %v1963 = vpack.c.bf16 %v1959, %v1955
    %v1964 = vpack.c.bf16 %v1961, %v1957
    %1965 = vmatprep.subr.bf16.mxu0 %v1964
    %1966 = vmatpush1.bf16.msra.mxu0 %v1963
    %1967 = vmatprep.subr.bf16.mxu0 0
    %1968 = vmatpush1.bf16.msra.mxu0 0
    %1969 = vmatprep.subr.bf16.mxu0 0
    %1970 = vmatpush1.bf16.msra.mxu0 0
    %1971 = vmatprep.subr.bf16.mxu0 0
    %1972 = vmatpush1.bf16.msra.mxu0 0
    %1973 = vmatprep.subr.bf16.mxu0 0
    %1974 = vmatpush1.bf16.msra.mxu0 0
    %1975 = vmatprep.subr.bf16.mxu0 0
    %1976 = vmatpush1.bf16.msra.mxu0 0
    %1977 = vmatprep.subr.bf16.mxu0 0
    %1978 = vmatpush1.bf16.msra.mxu0 0
    %1979 = vmatprep.subr.bf16.mxu0 0
    %1980 = vmatpush1.bf16.msra.mxu0 0
    %1981 = vmatprep.subr.bf16.mxu0 0
    %1982 = vmatpush1.bf16.msra.mxu0 0
    %1983 = vmatprep.subr.bf16.mxu0 0
    %1984 = vmatpush1.bf16.msra.mxu0 0
    %1985 = vmatprep.subr.bf16.mxu0 0
    %1986 = vmatpush1.bf16.msra.mxu0 0
    %1987 = vmatprep.subr.bf16.mxu0 0
    %1988 = vmatpush1.bf16.msra.mxu0 0
    %1989 = vmatprep.subr.bf16.mxu0 0
    %1990 = vmatpush1.bf16.msra.mxu0 0
    %1991 = vmatprep.subr.bf16.mxu0 0
    %1992 = vmatpush1.bf16.msra.mxu0 0
    %1993 = vmatprep.subr.bf16.mxu0 0
    %1994 = vmatpush1.bf16.msra.mxu0 0
    %1995 = vmatprep.subr.bf16.mxu0 0
    %1996 = vmatpush1.bf16.msra.mxu0 0
    %1997 = vmatprep.mubr.bf16.mxu0 0
    %1998 = vmatmul.mubr.bf16.gmra.mrb[0].mxu0 %v463
    %v1999 = vpop.f32.mrb[0].mxu0
    %v2000 = vadd.f32 0.0, %v1999
    %v2001 = vpop.f32.mrb[0].mxu0
    %v2002 = vadd.f32 0.0, %v2001
    %v2003 = vpop.f32.mrb[0].mxu0
    %v2004 = vadd.f32 0.0, %v2003
    %v2005 = vpop.f32.mrb[0].mxu0
    %v2006 = vadd.f32 0.0, %v2005
    %2007 = vdwg.mxu0
    %v2008 = vmax.f32 %v2000, 0.0
    %v2009 = vmax.f32 %v2002, 0.0
    %v2010 = vmax.f32 %v2004, 0.0
    %v2011 = vmax.f32 %v2006, 0.0
    %s2012 = scalar_lea.vmem [#allocation10], 1536
    %v2013 = vld [vmem:[%s2012] sm:$0xff]
    %v2014 = vld [vmem:[%s2012 + $0x8] sm:$0xff]
    %v2015 = vld [vmem:[%s2012 + $0x10] sm:$0xff]
    %v2016 = vld [vmem:[%s2012 + $0x18] sm:$0xff]
    %v2017 = vld [vmem:[%s2012 + $0x20] sm:$0xff]
    %v2018 = vld [vmem:[%s2012 + $0x28] sm:$0xff]
    %v2019 = vld [vmem:[%s2012 + $0x30] sm:$0xff]
    %v2020 = vld [vmem:[%s2012 + $0x38] sm:$0xff]
    %v2021 = vld [vmem:[%s2012 + $0x40] sm:$0xff]
    %v2022 = vld [vmem:[%s2012 + $0x48] sm:$0xff]
    %v2023 = vld [vmem:[%s2012 + $0x50] sm:$0xff]
    %v2024 = vld [vmem:[%s2012 + $0x58] sm:$0xff]
    %v2025 = vld [vmem:[%s2012 + $0x60] sm:$0xff]
    %v2026 = vld [vmem:[%s2012 + $0x68] sm:$0xff]
    %v2027 = vld [vmem:[%s2012 + $0x70] sm:$0xff]
    %v2028 = vld [vmem:[%s2012 + $0x78] sm:$0xff]
    %v2029 = vld [vmem:[%s2012 + $0x80] sm:$0xff]
    %v2030 = vld [vmem:[%s2012 + $0x88] sm:$0xff]
    %v2031 = vld [vmem:[%s2012 + $0x90] sm:$0xff]
    %v2032 = vld [vmem:[%s2012 + $0x98] sm:$0xff]
    %v2033 = vld [vmem:[%s2012 + $0xa0] sm:$0xff]
    %v2034 = vld [vmem:[%s2012 + $0xa8] sm:$0xff]
    %v2035 = vld [vmem:[%s2012 + $0xb0] sm:$0xff]
    %v2036 = vld [vmem:[%s2012 + $0xb8] sm:$0xff]
    %v2037 = vld [vmem:[%s2012 + $0xc0] sm:$0xff]
    %v2038 = vld [vmem:[%s2012 + $0xc8] sm:$0xff]
    %v2039 = vld [vmem:[%s2012 + $0xd0] sm:$0xff]
    %v2040 = vld [vmem:[%s2012 + $0xd8] sm:$0xff]
    %v2041 = vld [vmem:[%s2012 + $0xe0] sm:$0xff]
    %v2042 = vld [vmem:[%s2012 + $0xe8] sm:$0xff]
    %v2043 = vld [vmem:[%s2012 + $0xf0] sm:$0xff]
    %v2044 = vld [vmem:[%s2012 + $0xf8] sm:$0xff]
    %s2045 = scalar_lea.vmem [#allocation11], 12
    %v2046 = vld [vmem:[%s2045] sm:$0x3]
    %v2047 = vpack.c.bf16 %v2010, %v2008
    %v2048 = vpack.c.bf16 %v2011, %v2009
    %v2050 = vlaneseq
    %v2051 = vshrl.u32 %v2050, 7
    %v2052 = vsub.s32 0, %v2051
    %v2053 = vrot.slane %v2046, %v2052
    %v2054 = vlaneseq
    %v2055 = vshrl.u32 %v2054, 7
    %v2056 = vsub.s32 1, %v2055
    %v2057 = vrot.slane %v2046, %v2056
    %v2092 = vunpack.c.l.b16 %v2013
    %v2093 = vunpack.c.h.b16 %v2013
    %v2094 = vunpack.c.l.b16 %v2014
    %v2095 = vunpack.c.h.b16 %v2014
    %v2096 = vunpack.c.l.b16 %v2015
    %v2097 = vunpack.c.h.b16 %v2015
    %v2098 = vunpack.c.l.b16 %v2016
    %v2099 = vunpack.c.h.b16 %v2016
    %v2100 = vunpack.c.l.b16 %v2017
    %v2101 = vunpack.c.h.b16 %v2017
    %v2102 = vunpack.c.l.b16 %v2018
    %v2103 = vunpack.c.h.b16 %v2018
    %v2104 = vunpack.c.l.b16 %v2019
    %v2105 = vunpack.c.h.b16 %v2019
    %v2106 = vunpack.c.l.b16 %v2020
    %v2107 = vunpack.c.h.b16 %v2020
    %v2108 = vunpack.c.l.b16 %v2021
    %v2109 = vunpack.c.h.b16 %v2021
    %v2110 = vunpack.c.l.b16 %v2022
    %v2111 = vunpack.c.h.b16 %v2022
    %v2112 = vunpack.c.l.b16 %v2023
    %v2113 = vunpack.c.h.b16 %v2023
    %v2114 = vunpack.c.l.b16 %v2024
    %v2115 = vunpack.c.h.b16 %v2024
    %v2116 = vunpack.c.l.b16 %v2025
    %v2117 = vunpack.c.h.b16 %v2025
    %v2118 = vunpack.c.l.b16 %v2026
    %v2119 = vunpack.c.h.b16 %v2026
    %v2120 = vunpack.c.l.b16 %v2027
    %v2121 = vunpack.c.h.b16 %v2027
    %v2122 = vunpack.c.l.b16 %v2028
    %v2123 = vunpack.c.h.b16 %v2028
    %v2124 = vunpack.c.l.b16 %v2029
    %v2125 = vunpack.c.h.b16 %v2029
    %v2126 = vunpack.c.l.b16 %v2030
    %v2127 = vunpack.c.h.b16 %v2030
    %v2128 = vunpack.c.l.b16 %v2031
    %v2129 = vunpack.c.h.b16 %v2031
    %v2130 = vunpack.c.l.b16 %v2032
    %v2131 = vunpack.c.h.b16 %v2032
    %v2132 = vunpack.c.l.b16 %v2033
    %v2133 = vunpack.c.h.b16 %v2033
    %v2134 = vunpack.c.l.b16 %v2034
    %v2135 = vunpack.c.h.b16 %v2034
    %v2136 = vunpack.c.l.b16 %v2035
    %v2137 = vunpack.c.h.b16 %v2035
    %v2138 = vunpack.c.l.b16 %v2036
    %v2139 = vunpack.c.h.b16 %v2036
    %v2140 = vunpack.c.l.b16 %v2037
    %v2141 = vunpack.c.h.b16 %v2037
    %v2142 = vunpack.c.l.b16 %v2038
    %v2143 = vunpack.c.h.b16 %v2038
    %v2144 = vunpack.c.l.b16 %v2039
    %v2145 = vunpack.c.h.b16 %v2039
    %v2146 = vunpack.c.l.b16 %v2040
    %v2147 = vunpack.c.h.b16 %v2040
    %v2148 = vunpack.c.l.b16 %v2041
    %v2149 = vunpack.c.h.b16 %v2041
    %v2150 = vunpack.c.l.b16 %v2042
    %v2151 = vunpack.c.h.b16 %v2042
    %v2152 = vunpack.c.l.b16 %v2043
    %v2153 = vunpack.c.h.b16 %v2043
    %v2154 = vunpack.c.l.b16 %v2044
    %v2155 = vunpack.c.h.b16 %v2044
    %v2156 = vpack.c.b16 %v2094, %v2092
    %v2157 = vpack.c.b16 %v2095, %v2093
    %v2158 = vpack.c.b16 %v2098, %v2096
    %v2159 = vpack.c.b16 %v2099, %v2097
    %v2160 = vpack.c.b16 %v2102, %v2100
    %v2161 = vpack.c.b16 %v2103, %v2101
    %v2162 = vpack.c.b16 %v2106, %v2104
    %v2163 = vpack.c.b16 %v2107, %v2105
    %v2164 = vpack.c.b16 %v2110, %v2108
    %v2165 = vpack.c.b16 %v2111, %v2109
    %v2166 = vpack.c.b16 %v2114, %v2112
    %v2167 = vpack.c.b16 %v2115, %v2113
    %v2168 = vpack.c.b16 %v2118, %v2116
    %v2169 = vpack.c.b16 %v2119, %v2117
    %v2170 = vpack.c.b16 %v2122, %v2120
    %v2171 = vpack.c.b16 %v2123, %v2121
    %v2172 = vpack.c.b16 %v2126, %v2124
    %v2173 = vpack.c.b16 %v2127, %v2125
    %v2174 = vpack.c.b16 %v2130, %v2128
    %v2175 = vpack.c.b16 %v2131, %v2129
    %v2176 = vpack.c.b16 %v2134, %v2132
    %v2177 = vpack.c.b16 %v2135, %v2133
    %v2178 = vpack.c.b16 %v2138, %v2136
    %v2179 = vpack.c.b16 %v2139, %v2137
    %v2180 = vpack.c.b16 %v2142, %v2140
    %v2181 = vpack.c.b16 %v2143, %v2141
    %v2182 = vpack.c.b16 %v2146, %v2144
    %v2183 = vpack.c.b16 %v2147, %v2145
    %v2184 = vpack.c.b16 %v2150, %v2148
    %v2185 = vpack.c.b16 %v2151, %v2149
    %v2186 = vpack.c.b16 %v2154, %v2152
    %v2187 = vpack.c.b16 %v2155, %v2153
    %2220 = vmatprep.subr.bf16.mxu0 %v2157
    %2221 = vmatpush1.bf16.msra.mxu0 %v2156
    %2222 = vmatprep.subr.bf16.mxu0 %v2159
    %2223 = vmatpush1.bf16.msra.mxu0 %v2158
    %2224 = vmatprep.subr.bf16.mxu0 %v2161
    %2225 = vmatpush1.bf16.msra.mxu0 %v2160
    %2226 = vmatprep.subr.bf16.mxu0 %v2163
    %2227 = vmatpush1.bf16.msra.mxu0 %v2162
    %2228 = vmatprep.subr.bf16.mxu0 %v2165
    %2229 = vmatpush1.bf16.msra.mxu0 %v2164
    %2230 = vmatprep.subr.bf16.mxu0 %v2167
    %2231 = vmatpush1.bf16.msra.mxu0 %v2166
    %2232 = vmatprep.subr.bf16.mxu0 %v2169
    %2233 = vmatpush1.bf16.msra.mxu0 %v2168
    %2234 = vmatprep.subr.bf16.mxu0 %v2171
    %2235 = vmatpush1.bf16.msra.mxu0 %v2170
    %2236 = vmatprep.subr.bf16.mxu0 %v2173
    %2237 = vmatpush1.bf16.msra.mxu0 %v2172
    %2238 = vmatprep.subr.bf16.mxu0 %v2175
    %2239 = vmatpush1.bf16.msra.mxu0 %v2174
    %2240 = vmatprep.subr.bf16.mxu0 %v2177
    %2241 = vmatpush1.bf16.msra.mxu0 %v2176
    %2242 = vmatprep.subr.bf16.mxu0 %v2179
    %2243 = vmatpush1.bf16.msra.mxu0 %v2178
    %2244 = vmatprep.subr.bf16.mxu0 %v2181
    %2245 = vmatpush1.bf16.msra.mxu0 %v2180
    %2246 = vmatprep.subr.bf16.mxu0 %v2183
    %2247 = vmatpush1.bf16.msra.mxu0 %v2182
    %2248 = vmatprep.subr.bf16.mxu0 %v2185
    %2249 = vmatpush1.bf16.msra.mxu0 %v2184
    %2250 = vmatprep.subr.bf16.mxu0 %v2187
    %2251 = vmatpush1.bf16.msra.mxu0 %v2186
    %2252 = vmatprep.mubr.bf16.mxu0 %v2048
    %2253 = vmatmul.mubr.bf16.gmra.mrb[0].mxu0 %v2047
    %v2254 = vpop.f32.mrb[0].mxu0
    %v2255 = vadd.f32 %v2053, %v2254
    %v2256 = vpop.f32.mrb[0].mxu0
    %v2257 = vadd.f32 %v2057, %v2256
    %v2258 = vpop.f32.mrb[0].mxu0
    %v2259 = vadd.f32 %v2053, %v2258
    %v2260 = vpop.f32.mrb[0].mxu0
    %v2261 = vadd.f32 %v2057, %v2260
    %2262 = vdwg.mxu0
    %v2263 = vpack.c.bf16 %v2259, %v2255
    %v2264 = vpack.c.bf16 %v2261, %v2257
    %2265 = vmatprep.subr.bf16.mxu0 %v2264
    %2266 = vmatpush1.bf16.msra.mxu0 %v2263
    %2267 = vmatprep.subr.bf16.mxu0 0
    %2268 = vmatpush1.bf16.msra.mxu0 0
    %2269 = vmatprep.subr.bf16.mxu0 0
    %2270 = vmatpush1.bf16.msra.mxu0 0
    %2271 = vmatprep.subr.bf16.mxu0 0
    %2272 = vmatpush1.bf16.msra.mxu0 0
    %2273 = vmatprep.subr.bf16.mxu0 0
    %2274 = vmatpush1.bf16.msra.mxu0 0
    %2275 = vmatprep.subr.bf16.mxu0 0
    %2276 = vmatpush1.bf16.msra.mxu0 0
    %2277 = vmatprep.subr.bf16.mxu0 0
    %2278 = vmatpush1.bf16.msra.mxu0 0
    %2279 = vmatprep.subr.bf16.mxu0 0
    %2280 = vmatpush1.bf16.msra.mxu0 0
    %2281 = vmatprep.subr.bf16.mxu0 0
    %2282 = vmatpush1.bf16.msra.mxu0 0
    %2283 = vmatprep.subr.bf16.mxu0 0
    %2284 = vmatpush1.bf16.msra.mxu0 0
    %2285 = vmatprep.subr.bf16.mxu0 0
    %2286 = vmatpush1.bf16.msra.mxu0 0
    %2287 = vmatprep.subr.bf16.mxu0 0
    %2288 = vmatpush1.bf16.msra.mxu0 0
    %2289 = vmatprep.subr.bf16.mxu0 0
    %2290 = vmatpush1.bf16.msra.mxu0 0
    %2291 = vmatprep.subr.bf16.mxu0 0
    %2292 = vmatpush1.bf16.msra.mxu0 0
    %2293 = vmatprep.subr.bf16.mxu0 0
    %2294 = vmatpush1.bf16.msra.mxu0 0
    %2295 = vmatprep.subr.bf16.mxu0 0
    %2296 = vmatpush1.bf16.msra.mxu0 0
    %2297 = vmatprep.mubr.bf16.mxu0 0
    %2298 = vmatmul.mubr.bf16.gmra.mrb[0].mxu0 %v463
    %v2299 = vpop.f32.mrb[0].mxu0
    %v2300 = vadd.f32 0.0, %v2299
    %v2301 = vpop.f32.mrb[0].mxu0
    %v2302 = vadd.f32 0.0, %v2301
    %v2303 = vpop.f32.mrb[0].mxu0
    %v2304 = vadd.f32 0.0, %v2303
    %v2305 = vpop.f32.mrb[0].mxu0
    %v2306 = vadd.f32 0.0, %v2305
    %2307 = vdwg.mxu0
    %v2308 = vmax.f32 %v2300, 0.0
    %v2309 = vmax.f32 %v2302, 0.0
    %v2310 = vmax.f32 %v2304, 0.0
    %v2311 = vmax.f32 %v2306, 0.0
    %s2312 = scalar_lea.vmem [#allocation10], 1792
    %v2313 = vld [vmem:[%s2312] sm:$0xff]
    %v2314 = vld [vmem:[%s2312 + $0x8] sm:$0xff]
    %v2315 = vld [vmem:[%s2312 + $0x10] sm:$0xff]
    %v2316 = vld [vmem:[%s2312 + $0x18] sm:$0xff]
    %v2317 = vld [vmem:[%s2312 + $0x20] sm:$0xff]
    %v2318 = vld [vmem:[%s2312 + $0x28] sm:$0xff]
    %v2319 = vld [vmem:[%s2312 + $0x30] sm:$0xff]
    %v2320 = vld [vmem:[%s2312 + $0x38] sm:$0xff]
    %v2321 = vld [vmem:[%s2312 + $0x40] sm:$0xff]
    %v2322 = vld [vmem:[%s2312 + $0x48] sm:$0xff]
    %v2323 = vld [vmem:[%s2312 + $0x50] sm:$0xff]
    %v2324 = vld [vmem:[%s2312 + $0x58] sm:$0xff]
    %v2325 = vld [vmem:[%s2312 + $0x60] sm:$0xff]
    %v2326 = vld [vmem:[%s2312 + $0x68] sm:$0xff]
    %v2327 = vld [vmem:[%s2312 + $0x70] sm:$0xff]
    %v2328 = vld [vmem:[%s2312 + $0x78] sm:$0xff]
    %v2329 = vld [vmem:[%s2312 + $0x80] sm:$0xff]
    %v2330 = vld [vmem:[%s2312 + $0x88] sm:$0xff]
    %v2331 = vld [vmem:[%s2312 + $0x90] sm:$0xff]
    %v2332 = vld [vmem:[%s2312 + $0x98] sm:$0xff]
    %v2333 = vld [vmem:[%s2312 + $0xa0] sm:$0xff]
    %v2334 = vld [vmem:[%s2312 + $0xa8] sm:$0xff]
    %v2335 = vld [vmem:[%s2312 + $0xb0] sm:$0xff]
    %v2336 = vld [vmem:[%s2312 + $0xb8] sm:$0xff]
    %v2337 = vld [vmem:[%s2312 + $0xc0] sm:$0xff]
    %v2338 = vld [vmem:[%s2312 + $0xc8] sm:$0xff]
    %v2339 = vld [vmem:[%s2312 + $0xd0] sm:$0xff]
    %v2340 = vld [vmem:[%s2312 + $0xd8] sm:$0xff]
    %v2341 = vld [vmem:[%s2312 + $0xe0] sm:$0xff]
    %v2342 = vld [vmem:[%s2312 + $0xe8] sm:$0xff]
    %v2343 = vld [vmem:[%s2312 + $0xf0] sm:$0xff]
    %v2344 = vld [vmem:[%s2312 + $0xf8] sm:$0xff]
    %s2345 = scalar_lea.vmem [#allocation11], 14
    %v2346 = vld [vmem:[%s2345] sm:$0x3]
    %v2347 = vpack.c.bf16 %v2310, %v2308
    %v2348 = vpack.c.bf16 %v2311, %v2309
    %v2350 = vlaneseq
    %v2351 = vshrl.u32 %v2350, 7
    %v2352 = vsub.s32 0, %v2351
    %v2353 = vrot.slane %v2346, %v2352
    %v2354 = vlaneseq
    %v2355 = vshrl.u32 %v2354, 7
    %v2356 = vsub.s32 1, %v2355
    %v2357 = vrot.slane %v2346, %v2356
    %v2392 = vunpack.c.l.b16 %v2313
    %v2393 = vunpack.c.h.b16 %v2313
    %v2394 = vunpack.c.l.b16 %v2314
    %v2395 = vunpack.c.h.b16 %v2314
    %v2396 = vunpack.c.l.b16 %v2315
    %v2397 = vunpack.c.h.b16 %v2315
    %v2398 = vunpack.c.l.b16 %v2316
    %v2399 = vunpack.c.h.b16 %v2316
    %v2400 = vunpack.c.l.b16 %v2317
    %v2401 = vunpack.c.h.b16 %v2317
    %v2402 = vunpack.c.l.b16 %v2318
    %v2403 = vunpack.c.h.b16 %v2318
    %v2404 = vunpack.c.l.b16 %v2319
    %v2405 = vunpack.c.h.b16 %v2319
    %v2406 = vunpack.c.l.b16 %v2320
    %v2407 = vunpack.c.h.b16 %v2320
    %v2408 = vunpack.c.l.b16 %v2321
    %v2409 = vunpack.c.h.b16 %v2321
    %v2410 = vunpack.c.l.b16 %v2322
    %v2411 = vunpack.c.h.b16 %v2322
    %v2412 = vunpack.c.l.b16 %v2323
    %v2413 = vunpack.c.h.b16 %v2323
    %v2414 = vunpack.c.l.b16 %v2324
    %v2415 = vunpack.c.h.b16 %v2324
    %v2416 = vunpack.c.l.b16 %v2325
    %v2417 = vunpack.c.h.b16 %v2325
    %v2418 = vunpack.c.l.b16 %v2326
    %v2419 = vunpack.c.h.b16 %v2326
    %v2420 = vunpack.c.l.b16 %v2327
    %v2421 = vunpack.c.h.b16 %v2327
    %v2422 = vunpack.c.l.b16 %v2328
    %v2423 = vunpack.c.h.b16 %v2328
    %v2424 = vunpack.c.l.b16 %v2329
    %v2425 = vunpack.c.h.b16 %v2329
    %v2426 = vunpack.c.l.b16 %v2330
    %v2427 = vunpack.c.h.b16 %v2330
    %v2428 = vunpack.c.l.b16 %v2331
    %v2429 = vunpack.c.h.b16 %v2331
    %v2430 = vunpack.c.l.b16 %v2332
    %v2431 = vunpack.c.h.b16 %v2332
    %v2432 = vunpack.c.l.b16 %v2333
    %v2433 = vunpack.c.h.b16 %v2333
    %v2434 = vunpack.c.l.b16 %v2334
    %v2435 = vunpack.c.h.b16 %v2334
    %v2436 = vunpack.c.l.b16 %v2335
    %v2437 = vunpack.c.h.b16 %v2335
    %v2438 = vunpack.c.l.b16 %v2336
    %v2439 = vunpack.c.h.b16 %v2336
    %v2440 = vunpack.c.l.b16 %v2337
    %v2441 = vunpack.c.h.b16 %v2337
    %v2442 = vunpack.c.l.b16 %v2338
    %v2443 = vunpack.c.h.b16 %v2338
    %v2444 = vunpack.c.l.b16 %v2339
    %v2445 = vunpack.c.h.b16 %v2339
    %v2446 = vunpack.c.l.b16 %v2340
    %v2447 = vunpack.c.h.b16 %v2340
    %v2448 = vunpack.c.l.b16 %v2341
    %v2449 = vunpack.c.h.b16 %v2341
    %v2450 = vunpack.c.l.b16 %v2342
    %v2451 = vunpack.c.h.b16 %v2342
    %v2452 = vunpack.c.l.b16 %v2343
    %v2453 = vunpack.c.h.b16 %v2343
    %v2454 = vunpack.c.l.b16 %v2344
    %v2455 = vunpack.c.h.b16 %v2344
    %v2456 = vpack.c.b16 %v2394, %v2392
    %v2457 = vpack.c.b16 %v2395, %v2393
    %v2458 = vpack.c.b16 %v2398, %v2396
    %v2459 = vpack.c.b16 %v2399, %v2397
    %v2460 = vpack.c.b16 %v2402, %v2400
    %v2461 = vpack.c.b16 %v2403, %v2401
    %v2462 = vpack.c.b16 %v2406, %v2404
    %v2463 = vpack.c.b16 %v2407, %v2405
    %v2464 = vpack.c.b16 %v2410, %v2408
    %v2465 = vpack.c.b16 %v2411, %v2409
    %v2466 = vpack.c.b16 %v2414, %v2412
    %v2467 = vpack.c.b16 %v2415, %v2413
    %v2468 = vpack.c.b16 %v2418, %v2416
    %v2469 = vpack.c.b16 %v2419, %v2417
    %v2470 = vpack.c.b16 %v2422, %v2420
    %v2471 = vpack.c.b16 %v2423, %v2421
    %v2472 = vpack.c.b16 %v2426, %v2424
    %v2473 = vpack.c.b16 %v2427, %v2425
    %v2474 = vpack.c.b16 %v2430, %v2428
    %v2475 = vpack.c.b16 %v2431, %v2429
    %v2476 = vpack.c.b16 %v2434, %v2432
    %v2477 = vpack.c.b16 %v2435, %v2433
    %v2478 = vpack.c.b16 %v2438, %v2436
    %v2479 = vpack.c.b16 %v2439, %v2437
    %v2480 = vpack.c.b16 %v2442, %v2440
    %v2481 = vpack.c.b16 %v2443, %v2441
    %v2482 = vpack.c.b16 %v2446, %v2444
    %v2483 = vpack.c.b16 %v2447, %v2445
    %v2484 = vpack.c.b16 %v2450, %v2448
    %v2485 = vpack.c.b16 %v2451, %v2449
    %v2486 = vpack.c.b16 %v2454, %v2452
    %v2487 = vpack.c.b16 %v2455, %v2453
    %2520 = vmatprep.subr.bf16.mxu0 %v2457
    %2521 = vmatpush1.bf16.msra.mxu0 %v2456
    %2522 = vmatprep.subr.bf16.mxu0 %v2459
    %2523 = vmatpush1.bf16.msra.mxu0 %v2458
    %2524 = vmatprep.subr.bf16.mxu0 %v2461
    %2525 = vmatpush1.bf16.msra.mxu0 %v2460
    %2526 = vmatprep.subr.bf16.mxu0 %v2463
    %2527 = vmatpush1.bf16.msra.mxu0 %v2462
    %2528 = vmatprep.subr.bf16.mxu0 %v2465
    %2529 = vmatpush1.bf16.msra.mxu0 %v2464
    %2530 = vmatprep.subr.bf16.mxu0 %v2467
    %2531 = vmatpush1.bf16.msra.mxu0 %v2466
    %2532 = vmatprep.subr.bf16.mxu0 %v2469
    %2533 = vmatpush1.bf16.msra.mxu0 %v2468
    %2534 = vmatprep.subr.bf16.mxu0 %v2471
    %2535 = vmatpush1.bf16.msra.mxu0 %v2470
    %2536 = vmatprep.subr.bf16.mxu0 %v2473
    %2537 = vmatpush1.bf16.msra.mxu0 %v2472
    %2538 = vmatprep.subr.bf16.mxu0 %v2475
    %2539 = vmatpush1.bf16.msra.mxu0 %v2474
    %2540 = vmatprep.subr.bf16.mxu0 %v2477
    %2541 = vmatpush1.bf16.msra.mxu0 %v2476
    %2542 = vmatprep.subr.bf16.mxu0 %v2479
    %2543 = vmatpush1.bf16.msra.mxu0 %v2478
    %2544 = vmatprep.subr.bf16.mxu0 %v2481
    %2545 = vmatpush1.bf16.msra.mxu0 %v2480
    %2546 = vmatprep.subr.bf16.mxu0 %v2483
    %2547 = vmatpush1.bf16.msra.mxu0 %v2482
    %2548 = vmatprep.subr.bf16.mxu0 %v2485
    %2549 = vmatpush1.bf16.msra.mxu0 %v2484
    %2550 = vmatprep.subr.bf16.mxu0 %v2487
    %2551 = vmatpush1.bf16.msra.mxu0 %v2486
    %2552 = vmatprep.mubr.bf16.mxu0 %v2348
    %2553 = vmatmul.mubr.bf16.gmra.mrb[0].mxu0 %v2347
    %v2554 = vpop.f32.mrb[0].mxu0
    %v2555 = vadd.f32 %v2353, %v2554
    %v2556 = vpop.f32.mrb[0].mxu0
    %v2557 = vadd.f32 %v2357, %v2556
    %v2558 = vpop.f32.mrb[0].mxu0
    %v2559 = vadd.f32 %v2353, %v2558
    %v2560 = vpop.f32.mrb[0].mxu0
    %v2561 = vadd.f32 %v2357, %v2560
    %2562 = vdwg.mxu0
    %v2563 = vpack.c.bf16 %v2559, %v2555
    %v2564 = vpack.c.bf16 %v2561, %v2557
    %2565 = vmatprep.subr.bf16.mxu0 %v2564
    %2566 = vmatpush1.bf16.msra.mxu0 %v2563
    %2567 = vmatprep.subr.bf16.mxu0 0
    %2568 = vmatpush1.bf16.msra.mxu0 0
    %2569 = vmatprep.subr.bf16.mxu0 0
    %2570 = vmatpush1.bf16.msra.mxu0 0
    %2571 = vmatprep.subr.bf16.mxu0 0
    %2572 = vmatpush1.bf16.msra.mxu0 0
    %2573 = vmatprep.subr.bf16.mxu0 0
    %2574 = vmatpush1.bf16.msra.mxu0 0
    %2575 = vmatprep.subr.bf16.mxu0 0
    %2576 = vmatpush1.bf16.msra.mxu0 0
    %2577 = vmatprep.subr.bf16.mxu0 0
    %2578 = vmatpush1.bf16.msra.mxu0 0
    %2579 = vmatprep.subr.bf16.mxu0 0
    %2580 = vmatpush1.bf16.msra.mxu0 0
    %2581 = vmatprep.subr.bf16.mxu0 0
    %2582 = vmatpush1.bf16.msra.mxu0 0
    %2583 = vmatprep.subr.bf16.mxu0 0
    %2584 = vmatpush1.bf16.msra.mxu0 0
    %2585 = vmatprep.subr.bf16.mxu0 0
    %2586 = vmatpush1.bf16.msra.mxu0 0
    %2587 = vmatprep.subr.bf16.mxu0 0
    %2588 = vmatpush1.bf16.msra.mxu0 0
    %2589 = vmatprep.subr.bf16.mxu0 0
    %2590 = vmatpush1.bf16.msra.mxu0 0
    %2591 = vmatprep.subr.bf16.mxu0 0
    %2592 = vmatpush1.bf16.msra.mxu0 0
    %2593 = vmatprep.subr.bf16.mxu0 0
    %2594 = vmatpush1.bf16.msra.mxu0 0
    %2595 = vmatprep.subr.bf16.mxu0 0
    %2596 = vmatpush1.bf16.msra.mxu0 0
    %2597 = vmatprep.mubr.bf16.mxu0 0
    %2598 = vmatmul.mubr.bf16.gmra.mrb[0].mxu0 %v463
    %v2599 = vpop.f32.mrb[0].mxu0
    %v2600 = vadd.f32 0.0, %v2599
    %v2601 = vpop.f32.mrb[0].mxu0
    %v2602 = vadd.f32 0.0, %v2601
    %v2603 = vpop.f32.mrb[0].mxu0
    %v2604 = vadd.f32 0.0, %v2603
    %v2605 = vpop.f32.mrb[0].mxu0
    %v2606 = vadd.f32 0.0, %v2605
    %2607 = vdwg.mxu0
    %v2608 = vmax.f32 %v2600, 0.0
    %v2609 = vmax.f32 %v2602, 0.0
    %v2610 = vmax.f32 %v2604, 0.0
    %v2611 = vmax.f32 %v2606, 0.0
    %s2612 = scalar_lea.vmem [#allocation10], 2048
    %v2613 = vld [vmem:[%s2612] sm:$0xff]
    %v2614 = vld [vmem:[%s2612 + $0x8] sm:$0xff]
    %v2615 = vld [vmem:[%s2612 + $0x10] sm:$0xff]
    %v2616 = vld [vmem:[%s2612 + $0x18] sm:$0xff]
    %v2617 = vld [vmem:[%s2612 + $0x20] sm:$0xff]
    %v2618 = vld [vmem:[%s2612 + $0x28] sm:$0xff]
    %v2619 = vld [vmem:[%s2612 + $0x30] sm:$0xff]
    %v2620 = vld [vmem:[%s2612 + $0x38] sm:$0xff]
    %v2621 = vld [vmem:[%s2612 + $0x40] sm:$0xff]
    %v2622 = vld [vmem:[%s2612 + $0x48] sm:$0xff]
    %v2623 = vld [vmem:[%s2612 + $0x50] sm:$0xff]
    %v2624 = vld [vmem:[%s2612 + $0x58] sm:$0xff]
    %v2625 = vld [vmem:[%s2612 + $0x60] sm:$0xff]
    %v2626 = vld [vmem:[%s2612 + $0x68] sm:$0xff]
    %v2627 = vld [vmem:[%s2612 + $0x70] sm:$0xff]
    %v2628 = vld [vmem:[%s2612 + $0x78] sm:$0xff]
    %v2629 = vld [vmem:[%s2612 + $0x80] sm:$0xff]
    %v2630 = vld [vmem:[%s2612 + $0x88] sm:$0xff]
    %v2631 = vld [vmem:[%s2612 + $0x90] sm:$0xff]
    %v2632 = vld [vmem:[%s2612 + $0x98] sm:$0xff]
    %v2633 = vld [vmem:[%s2612 + $0xa0] sm:$0xff]
    %v2634 = vld [vmem:[%s2612 + $0xa8] sm:$0xff]
    %v2635 = vld [vmem:[%s2612 + $0xb0] sm:$0xff]
    %v2636 = vld [vmem:[%s2612 + $0xb8] sm:$0xff]
    %v2637 = vld [vmem:[%s2612 + $0xc0] sm:$0xff]
    %v2638 = vld [vmem:[%s2612 + $0xc8] sm:$0xff]
    %v2639 = vld [vmem:[%s2612 + $0xd0] sm:$0xff]
    %v2640 = vld [vmem:[%s2612 + $0xd8] sm:$0xff]
    %v2641 = vld [vmem:[%s2612 + $0xe0] sm:$0xff]
    %v2642 = vld [vmem:[%s2612 + $0xe8] sm:$0xff]
    %v2643 = vld [vmem:[%s2612 + $0xf0] sm:$0xff]
    %v2644 = vld [vmem:[%s2612 + $0xf8] sm:$0xff]
    %s2645 = scalar_lea.vmem [#allocation11], 16
    %v2646 = vld [vmem:[%s2645] sm:$0x3]
    %v2647 = vpack.c.bf16 %v2610, %v2608
    %v2648 = vpack.c.bf16 %v2611, %v2609
    %v2650 = vlaneseq
    %v2651 = vshrl.u32 %v2650, 7
    %v2652 = vsub.s32 0, %v2651
    %v2653 = vrot.slane %v2646, %v2652
    %v2654 = vlaneseq
    %v2655 = vshrl.u32 %v2654, 7
    %v2656 = vsub.s32 1, %v2655
    %v2657 = vrot.slane %v2646, %v2656
    %v2692 = vunpack.c.l.b16 %v2613
    %v2693 = vunpack.c.h.b16 %v2613
    %v2694 = vunpack.c.l.b16 %v2614
    %v2695 = vunpack.c.h.b16 %v2614
    %v2696 = vunpack.c.l.b16 %v2615
    %v2697 = vunpack.c.h.b16 %v2615
    %v2698 = vunpack.c.l.b16 %v2616
    %v2699 = vunpack.c.h.b16 %v2616
    %v2700 = vunpack.c.l.b16 %v2617
    %v2701 = vunpack.c.h.b16 %v2617
    %v2702 = vunpack.c.l.b16 %v2618
    %v2703 = vunpack.c.h.b16 %v2618
    %v2704 = vunpack.c.l.b16 %v2619
    %v2705 = vunpack.c.h.b16 %v2619
    %v2706 = vunpack.c.l.b16 %v2620
    %v2707 = vunpack.c.h.b16 %v2620
    %v2708 = vunpack.c.l.b16 %v2621
    %v2709 = vunpack.c.h.b16 %v2621
    %v2710 = vunpack.c.l.b16 %v2622
    %v2711 = vunpack.c.h.b16 %v2622
    %v2712 = vunpack.c.l.b16 %v2623
    %v2713 = vunpack.c.h.b16 %v2623
    %v2714 = vunpack.c.l.b16 %v2624
    %v2715 = vunpack.c.h.b16 %v2624
    %v2716 = vunpack.c.l.b16 %v2625
    %v2717 = vunpack.c.h.b16 %v2625
    %v2718 = vunpack.c.l.b16 %v2626
    %v2719 = vunpack.c.h.b16 %v2626
    %v2720 = vunpack.c.l.b16 %v2627
    %v2721 = vunpack.c.h.b16 %v2627
    %v2722 = vunpack.c.l.b16 %v2628
    %v2723 = vunpack.c.h.b16 %v2628
    %v2724 = vunpack.c.l.b16 %v2629
    %v2725 = vunpack.c.h.b16 %v2629
    %v2726 = vunpack.c.l.b16 %v2630
    %v2727 = vunpack.c.h.b16 %v2630
    %v2728 = vunpack.c.l.b16 %v2631
    %v2729 = vunpack.c.h.b16 %v2631
    %v2730 = vunpack.c.l.b16 %v2632
    %v2731 = vunpack.c.h.b16 %v2632
    %v2732 = vunpack.c.l.b16 %v2633
    %v2733 = vunpack.c.h.b16 %v2633
    %v2734 = vunpack.c.l.b16 %v2634
    %v2735 = vunpack.c.h.b16 %v2634
    %v2736 = vunpack.c.l.b16 %v2635
    %v2737 = vunpack.c.h.b16 %v2635
    %v2738 = vunpack.c.l.b16 %v2636
    %v2739 = vunpack.c.h.b16 %v2636
    %v2740 = vunpack.c.l.b16 %v2637
    %v2741 = vunpack.c.h.b16 %v2637
    %v2742 = vunpack.c.l.b16 %v2638
    %v2743 = vunpack.c.h.b16 %v2638
    %v2744 = vunpack.c.l.b16 %v2639
    %v2745 = vunpack.c.h.b16 %v2639
    %v2746 = vunpack.c.l.b16 %v2640
    %v2747 = vunpack.c.h.b16 %v2640
    %v2748 = vunpack.c.l.b16 %v2641
    %v2749 = vunpack.c.h.b16 %v2641
    %v2750 = vunpack.c.l.b16 %v2642
    %v2751 = vunpack.c.h.b16 %v2642
    %v2752 = vunpack.c.l.b16 %v2643
    %v2753 = vunpack.c.h.b16 %v2643
    %v2754 = vunpack.c.l.b16 %v2644
    %v2755 = vunpack.c.h.b16 %v2644
    %v2756 = vpack.c.b16 %v2694, %v2692
    %v2757 = vpack.c.b16 %v2695, %v2693
    %v2758 = vpack.c.b16 %v2698, %v2696
    %v2759 = vpack.c.b16 %v2699, %v2697
    %v2760 = vpack.c.b16 %v2702, %v2700
    %v2761 = vpack.c.b16 %v2703, %v2701
    %v2762 = vpack.c.b16 %v2706, %v2704
    %v2763 = vpack.c.b16 %v2707, %v2705
    %v2764 = vpack.c.b16 %v2710, %v2708
    %v2765 = vpack.c.b16 %v2711, %v2709
    %v2766 = vpack.c.b16 %v2714, %v2712
    %v2767 = vpack.c.b16 %v2715, %v2713
    %v2768 = vpack.c.b16 %v2718, %v2716
    %v2769 = vpack.c.b16 %v2719, %v2717
    %v2770 = vpack.c.b16 %v2722, %v2720
    %v2771 = vpack.c.b16 %v2723, %v2721
    %v2772 = vpack.c.b16 %v2726, %v2724
    %v2773 = vpack.c.b16 %v2727, %v2725
    %v2774 = vpack.c.b16 %v2730, %v2728
    %v2775 = vpack.c.b16 %v2731, %v2729
    %v2776 = vpack.c.b16 %v2734, %v2732
    %v2777 = vpack.c.b16 %v2735, %v2733
    %v2778 = vpack.c.b16 %v2738, %v2736
    %v2779 = vpack.c.b16 %v2739, %v2737
    %v2780 = vpack.c.b16 %v2742, %v2740
    %v2781 = vpack.c.b16 %v2743, %v2741
    %v2782 = vpack.c.b16 %v2746, %v2744
    %v2783 = vpack.c.b16 %v2747, %v2745
    %v2784 = vpack.c.b16 %v2750, %v2748
    %v2785 = vpack.c.b16 %v2751, %v2749
    %v2786 = vpack.c.b16 %v2754, %v2752
    %v2787 = vpack.c.b16 %v2755, %v2753
    %2820 = vmatprep.subr.bf16.mxu0 %v2757
    %2821 = vmatpush1.bf16.msra.mxu0 %v2756
    %2822 = vmatprep.subr.bf16.mxu0 %v2759
    %2823 = vmatpush1.bf16.msra.mxu0 %v2758
    %2824 = vmatprep.subr.bf16.mxu0 %v2761
    %2825 = vmatpush1.bf16.msra.mxu0 %v2760
    %2826 = vmatprep.subr.bf16.mxu0 %v2763
    %2827 = vmatpush1.bf16.msra.mxu0 %v2762
    %2828 = vmatprep.subr.bf16.mxu0 %v2765
    %2829 = vmatpush1.bf16.msra.mxu0 %v2764
    %2830 = vmatprep.subr.bf16.mxu0 %v2767
    %2831 = vmatpush1.bf16.msra.mxu0 %v2766
    %2832 = vmatprep.subr.bf16.mxu0 %v2769
    %2833 = vmatpush1.bf16.msra.mxu0 %v2768
    %2834 = vmatprep.subr.bf16.mxu0 %v2771
    %2835 = vmatpush1.bf16.msra.mxu0 %v2770
    %2836 = vmatprep.subr.bf16.mxu0 %v2773
    %2837 = vmatpush1.bf16.msra.mxu0 %v2772
    %2838 = vmatprep.subr.bf16.mxu0 %v2775
    %2839 = vmatpush1.bf16.msra.mxu0 %v2774
    %2840 = vmatprep.subr.bf16.mxu0 %v2777
    %2841 = vmatpush1.bf16.msra.mxu0 %v2776
    %2842 = vmatprep.subr.bf16.mxu0 %v2779
    %2843 = vmatpush1.bf16.msra.mxu0 %v2778
    %2844 = vmatprep.subr.bf16.mxu0 %v2781
    %2845 = vmatpush1.bf16.msra.mxu0 %v2780
    %2846 = vmatprep.subr.bf16.mxu0 %v2783
    %2847 = vmatpush1.bf16.msra.mxu0 %v2782
    %2848 = vmatprep.subr.bf16.mxu0 %v2785
    %2849 = vmatpush1.bf16.msra.mxu0 %v2784
    %2850 = vmatprep.subr.bf16.mxu0 %v2787
    %2851 = vmatpush1.bf16.msra.mxu0 %v2786
    %2852 = vmatprep.mubr.bf16.mxu0 %v2648
    %2853 = vmatmul.mubr.bf16.gmra.mrb[0].mxu0 %v2647
    %v2854 = vpop.f32.mrb[0].mxu0
    %v2855 = vadd.f32 %v2653, %v2854
    %v2856 = vpop.f32.mrb[0].mxu0
    %v2857 = vadd.f32 %v2657, %v2856
    %v2858 = vpop.f32.mrb[0].mxu0
    %v2859 = vadd.f32 %v2653, %v2858
    %v2860 = vpop.f32.mrb[0].mxu0
    %v2861 = vadd.f32 %v2657, %v2860
    %2862 = vdwg.mxu0
    %v2863 = vpack.c.bf16 %v2859, %v2855
    %v2864 = vpack.c.bf16 %v2861, %v2857
    %2865 = vmatprep.subr.bf16.mxu0 %v2864
    %2866 = vmatpush1.bf16.msra.mxu0 %v2863
    %2867 = vmatprep.subr.bf16.mxu0 0
    %2868 = vmatpush1.bf16.msra.mxu0 0
    %2869 = vmatprep.subr.bf16.mxu0 0
    %2870 = vmatpush1.bf16.msra.mxu0 0
    %2871 = vmatprep.subr.bf16.mxu0 0
    %2872 = vmatpush1.bf16.msra.mxu0 0
    %2873 = vmatprep.subr.bf16.mxu0 0
    %2874 = vmatpush1.bf16.msra.mxu0 0
    %2875 = vmatprep.subr.bf16.mxu0 0
    %2876 = vmatpush1.bf16.msra.mxu0 0
    %2877 = vmatprep.subr.bf16.mxu0 0
    %2878 = vmatpush1.bf16.msra.mxu0 0
    %2879 = vmatprep.subr.bf16.mxu0 0
    %2880 = vmatpush1.bf16.msra.mxu0 0
    %2881 = vmatprep.subr.bf16.mxu0 0
    %2882 = vmatpush1.bf16.msra.mxu0 0
    %2883 = vmatprep.subr.bf16.mxu0 0
    %2884 = vmatpush1.bf16.msra.mxu0 0
    %2885 = vmatprep.subr.bf16.mxu0 0
    %2886 = vmatpush1.bf16.msra.mxu0 0
    %2887 = vmatprep.subr.bf16.mxu0 0
    %2888 = vmatpush1.bf16.msra.mxu0 0
    %2889 = vmatprep.subr.bf16.mxu0 0
    %2890 = vmatpush1.bf16.msra.mxu0 0
    %2891 = vmatprep.subr.bf16.mxu0 0
    %2892 = vmatpush1.bf16.msra.mxu0 0
    %2893 = vmatprep.subr.bf16.mxu0 0
    %2894 = vmatpush1.bf16.msra.mxu0 0
    %2895 = vmatprep.subr.bf16.mxu0 0
    %2896 = vmatpush1.bf16.msra.mxu0 0
    %2897 = vmatprep.mubr.bf16.mxu0 0
    %2898 = vmatmul.mubr.bf16.gmra.mrb[0].mxu0 %v463
    %v2899 = vpop.f32.mrb[0].mxu0
    %v2900 = vadd.f32 0.0, %v2899
    %v2901 = vpop.f32.mrb[0].mxu0
    %v2902 = vadd.f32 0.0, %v2901
    %v2903 = vpop.f32.mrb[0].mxu0
    %v2904 = vadd.f32 0.0, %v2903
    %v2905 = vpop.f32.mrb[0].mxu0
    %v2906 = vadd.f32 0.0, %v2905
    %2907 = vdwg.mxu0
    %v2908 = vmax.f32 %v2900, 0.0
    %v2909 = vmax.f32 %v2902, 0.0
    %v2910 = vmax.f32 %v2904, 0.0
    %v2911 = vmax.f32 %v2906, 0.0
    %s2912 = scalar_lea.vmem [#allocation10], 2304
    %v2913 = vld [vmem:[%s2912] sm:$0xff]
    %v2914 = vld [vmem:[%s2912 + $0x8] sm:$0xff]
    %v2915 = vld [vmem:[%s2912 + $0x10] sm:$0xff]
    %v2916 = vld [vmem:[%s2912 + $0x18] sm:$0xff]
    %v2917 = vld [vmem:[%s2912 + $0x20] sm:$0xff]
    %v2918 = vld [vmem:[%s2912 + $0x28] sm:$0xff]
    %v2919 = vld [vmem:[%s2912 + $0x30] sm:$0xff]
    %v2920 = vld [vmem:[%s2912 + $0x38] sm:$0xff]
    %v2921 = vld [vmem:[%s2912 + $0x40] sm:$0xff]
    %v2922 = vld [vmem:[%s2912 + $0x48] sm:$0xff]
    %v2923 = vld [vmem:[%s2912 + $0x50] sm:$0xff]
    %v2924 = vld [vmem:[%s2912 + $0x58] sm:$0xff]
    %v2925 = vld [vmem:[%s2912 + $0x60] sm:$0xff]
    %v2926 = vld [vmem:[%s2912 + $0x68] sm:$0xff]
    %v2927 = vld [vmem:[%s2912 + $0x70] sm:$0xff]
    %v2928 = vld [vmem:[%s2912 + $0x78] sm:$0xff]
    %v2929 = vld [vmem:[%s2912 + $0x80] sm:$0xff]
    %v2930 = vld [vmem:[%s2912 + $0x88] sm:$0xff]
    %v2931 = vld [vmem:[%s2912 + $0x90] sm:$0xff]
    %v2932 = vld [vmem:[%s2912 + $0x98] sm:$0xff]
    %v2933 = vld [vmem:[%s2912 + $0xa0] sm:$0xff]
    %v2934 = vld [vmem:[%s2912 + $0xa8] sm:$0xff]
    %v2935 = vld [vmem:[%s2912 + $0xb0] sm:$0xff]
    %v2936 = vld [vmem:[%s2912 + $0xb8] sm:$0xff]
    %v2937 = vld [vmem:[%s2912 + $0xc0] sm:$0xff]
    %v2938 = vld [vmem:[%s2912 + $0xc8] sm:$0xff]
    %v2939 = vld [vmem:[%s2912 + $0xd0] sm:$0xff]
    %v2940 = vld [vmem:[%s2912 + $0xd8] sm:$0xff]
    %v2941 = vld [vmem:[%s2912 + $0xe0] sm:$0xff]
    %v2942 = vld [vmem:[%s2912 + $0xe8] sm:$0xff]
    %v2943 = vld [vmem:[%s2912 + $0xf0] sm:$0xff]
    %v2944 = vld [vmem:[%s2912 + $0xf8] sm:$0xff]
    %s2945 = scalar_lea.vmem [#allocation11], 18
    %v2946 = vld [vmem:[%s2945] sm:$0x3]
    %v2947 = vpack.c.bf16 %v2910, %v2908
    %v2948 = vpack.c.bf16 %v2911, %v2909
    %v2950 = vlaneseq
    %v2951 = vshrl.u32 %v2950, 7
    %v2952 = vsub.s32 0, %v2951
    %v2953 = vrot.slane %v2946, %v2952
    %v2954 = vlaneseq
    %v2955 = vshrl.u32 %v2954, 7
    %v2956 = vsub.s32 1, %v2955
    %v2957 = vrot.slane %v2946, %v2956
    %v2992 = vunpack.c.l.b16 %v2913
    %v2993 = vunpack.c.h.b16 %v2913
    %v2994 = vunpack.c.l.b16 %v2914
    %v2995 = vunpack.c.h.b16 %v2914
    %v2996 = vunpack.c.l.b16 %v2915
    %v2997 = vunpack.c.h.b16 %v2915
    %v2998 = vunpack.c.l.b16 %v2916
    %v2999 = vunpack.c.h.b16 %v2916
    %v3000 = vunpack.c.l.b16 %v2917
    %v3001 = vunpack.c.h.b16 %v2917
    %v3002 = vunpack.c.l.b16 %v2918
    %v3003 = vunpack.c.h.b16 %v2918
    %v3004 = vunpack.c.l.b16 %v2919
    %v3005 = vunpack.c.h.b16 %v2919
    %v3006 = vunpack.c.l.b16 %v2920
    %v3007 = vunpack.c.h.b16 %v2920
    %v3008 = vunpack.c.l.b16 %v2921
    %v3009 = vunpack.c.h.b16 %v2921
    %v3010 = vunpack.c.l.b16 %v2922
    %v3011 = vunpack.c.h.b16 %v2922
    %v3012 = vunpack.c.l.b16 %v2923
    %v3013 = vunpack.c.h.b16 %v2923
    %v3014 = vunpack.c.l.b16 %v2924
    %v3015 = vunpack.c.h.b16 %v2924
    %v3016 = vunpack.c.l.b16 %v2925
    %v3017 = vunpack.c.h.b16 %v2925
    %v3018 = vunpack.c.l.b16 %v2926
    %v3019 = vunpack.c.h.b16 %v2926
    %v3020 = vunpack.c.l.b16 %v2927
    %v3021 = vunpack.c.h.b16 %v2927
    %v3022 = vunpack.c.l.b16 %v2928
    %v3023 = vunpack.c.h.b16 %v2928
    %v3024 = vunpack.c.l.b16 %v2929
    %v3025 = vunpack.c.h.b16 %v2929
    %v3026 = vunpack.c.l.b16 %v2930
    %v3027 = vunpack.c.h.b16 %v2930
    %v3028 = vunpack.c.l.b16 %v2931
    %v3029 = vunpack.c.h.b16 %v2931
    %v3030 = vunpack.c.l.b16 %v2932
    %v3031 = vunpack.c.h.b16 %v2932
    %v3032 = vunpack.c.l.b16 %v2933
    %v3033 = vunpack.c.h.b16 %v2933
    %v3034 = vunpack.c.l.b16 %v2934
    %v3035 = vunpack.c.h.b16 %v2934
    %v3036 = vunpack.c.l.b16 %v2935
    %v3037 = vunpack.c.h.b16 %v2935
    %v3038 = vunpack.c.l.b16 %v2936
    %v3039 = vunpack.c.h.b16 %v2936
    %v3040 = vunpack.c.l.b16 %v2937
    %v3041 = vunpack.c.h.b16 %v2937
    %v3042 = vunpack.c.l.b16 %v2938
    %v3043 = vunpack.c.h.b16 %v2938
    %v3044 = vunpack.c.l.b16 %v2939
    %v3045 = vunpack.c.h.b16 %v2939
    %v3046 = vunpack.c.l.b16 %v2940
    %v3047 = vunpack.c.h.b16 %v2940
    %v3048 = vunpack.c.l.b16 %v2941
    %v3049 = vunpack.c.h.b16 %v2941
    %v3050 = vunpack.c.l.b16 %v2942
    %v3051 = vunpack.c.h.b16 %v2942
    %v3052 = vunpack.c.l.b16 %v2943
    %v3053 = vunpack.c.h.b16 %v2943
    %v3054 = vunpack.c.l.b16 %v2944
    %v3055 = vunpack.c.h.b16 %v2944
    %v3056 = vpack.c.b16 %v2994, %v2992
    %v3057 = vpack.c.b16 %v2995, %v2993
    %v3058 = vpack.c.b16 %v2998, %v2996
    %v3059 = vpack.c.b16 %v2999, %v2997
    %v3060 = vpack.c.b16 %v3002, %v3000
    %v3061 = vpack.c.b16 %v3003, %v3001
    %v3062 = vpack.c.b16 %v3006, %v3004
    %v3063 = vpack.c.b16 %v3007, %v3005
    %v3064 = vpack.c.b16 %v3010, %v3008
    %v3065 = vpack.c.b16 %v3011, %v3009
    %v3066 = vpack.c.b16 %v3014, %v3012
    %v3067 = vpack.c.b16 %v3015, %v3013
    %v3068 = vpack.c.b16 %v3018, %v3016
    %v3069 = vpack.c.b16 %v3019, %v3017
    %v3070 = vpack.c.b16 %v3022, %v3020
    %v3071 = vpack.c.b16 %v3023, %v3021
    %v3072 = vpack.c.b16 %v3026, %v3024
    %v3073 = vpack.c.b16 %v3027, %v3025
    %v3074 = vpack.c.b16 %v3030, %v3028
    %v3075 = vpack.c.b16 %v3031, %v3029
    %v3076 = vpack.c.b16 %v3034, %v3032
    %v3077 = vpack.c.b16 %v3035, %v3033
    %v3078 = vpack.c.b16 %v3038, %v3036
    %v3079 = vpack.c.b16 %v3039, %v3037
    %v3080 = vpack.c.b16 %v3042, %v3040
    %v3081 = vpack.c.b16 %v3043, %v3041
    %v3082 = vpack.c.b16 %v3046, %v3044
    %v3083 = vpack.c.b16 %v3047, %v3045
    %v3084 = vpack.c.b16 %v3050, %v3048
    %v3085 = vpack.c.b16 %v3051, %v3049
    %v3086 = vpack.c.b16 %v3054, %v3052
    %v3087 = vpack.c.b16 %v3055, %v3053
    %3120 = vmatprep.subr.bf16.mxu0 %v3057
    %3121 = vmatpush1.bf16.msra.mxu0 %v3056
    %3122 = vmatprep.subr.bf16.mxu0 %v3059
    %3123 = vmatpush1.bf16.msra.mxu0 %v3058
    %3124 = vmatprep.subr.bf16.mxu0 %v3061
    %3125 = vmatpush1.bf16.msra.mxu0 %v3060
    %3126 = vmatprep.subr.bf16.mxu0 %v3063
    %3127 = vmatpush1.bf16.msra.mxu0 %v3062
    %3128 = vmatprep.subr.bf16.mxu0 %v3065
    %3129 = vmatpush1.bf16.msra.mxu0 %v3064
    %3130 = vmatprep.subr.bf16.mxu0 %v3067
    %3131 = vmatpush1.bf16.msra.mxu0 %v3066
    %3132 = vmatprep.subr.bf16.mxu0 %v3069
    %3133 = vmatpush1.bf16.msra.mxu0 %v3068
    %3134 = vmatprep.subr.bf16.mxu0 %v3071
    %3135 = vmatpush1.bf16.msra.mxu0 %v3070
    %3136 = vmatprep.subr.bf16.mxu0 %v3073
    %3137 = vmatpush1.bf16.msra.mxu0 %v3072
    %3138 = vmatprep.subr.bf16.mxu0 %v3075
    %3139 = vmatpush1.bf16.msra.mxu0 %v3074
    %3140 = vmatprep.subr.bf16.mxu0 %v3077
    %3141 = vmatpush1.bf16.msra.mxu0 %v3076
    %3142 = vmatprep.subr.bf16.mxu0 %v3079
    %3143 = vmatpush1.bf16.msra.mxu0 %v3078
    %3144 = vmatprep.subr.bf16.mxu0 %v3081
    %3145 = vmatpush1.bf16.msra.mxu0 %v3080
    %3146 = vmatprep.subr.bf16.mxu0 %v3083
    %3147 = vmatpush1.bf16.msra.mxu0 %v3082
    %3148 = vmatprep.subr.bf16.mxu0 %v3085
    %3149 = vmatpush1.bf16.msra.mxu0 %v3084
    %3150 = vmatprep.subr.bf16.mxu0 %v3087
    %3151 = vmatpush1.bf16.msra.mxu0 %v3086
    %3152 = vmatprep.mubr.bf16.mxu0 %v2948
    %3153 = vmatmul.mubr.bf16.gmra.mrb[0].mxu0 %v2947
    %v3154 = vpop.f32.mrb[0].mxu0
    %v3155 = vadd.f32 %v2953, %v3154
    %v3156 = vpop.f32.mrb[0].mxu0
    %v3157 = vadd.f32 %v2957, %v3156
    %v3158 = vpop.f32.mrb[0].mxu0
    %v3159 = vadd.f32 %v2953, %v3158
    %v3160 = vpop.f32.mrb[0].mxu0
    %v3161 = vadd.f32 %v2957, %v3160
    %3162 = vdwg.mxu0
    %v3163 = vpack.c.bf16 %v3159, %v3155
    %v3164 = vpack.c.bf16 %v3161, %v3157
    %3165 = vmatprep.subr.bf16.mxu0 %v3164
    %3166 = vmatpush1.bf16.msra.mxu0 %v3163
    %3167 = vmatprep.subr.bf16.mxu0 0
    %3168 = vmatpush1.bf16.msra.mxu0 0
    %3169 = vmatprep.subr.bf16.mxu0 0
    %3170 = vmatpush1.bf16.msra.mxu0 0
    %3171 = vmatprep.subr.bf16.mxu0 0
    %3172 = vmatpush1.bf16.msra.mxu0 0
    %3173 = vmatprep.subr.bf16.mxu0 0
    %3174 = vmatpush1.bf16.msra.mxu0 0
    %3175 = vmatprep.subr.bf16.mxu0 0
    %3176 = vmatpush1.bf16.msra.mxu0 0
    %3177 = vmatprep.subr.bf16.mxu0 0
    %3178 = vmatpush1.bf16.msra.mxu0 0
    %3179 = vmatprep.subr.bf16.mxu0 0
    %3180 = vmatpush1.bf16.msra.mxu0 0
    %3181 = vmatprep.subr.bf16.mxu0 0
    %3182 = vmatpush1.bf16.msra.mxu0 0
    %3183 = vmatprep.subr.bf16.mxu0 0
    %3184 = vmatpush1.bf16.msra.mxu0 0
    %3185 = vmatprep.subr.bf16.mxu0 0
    %3186 = vmatpush1.bf16.msra.mxu0 0
    %3187 = vmatprep.subr.bf16.mxu0 0
    %3188 = vmatpush1.bf16.msra.mxu0 0
    %3189 = vmatprep.subr.bf16.mxu0 0
    %3190 = vmatpush1.bf16.msra.mxu0 0
    %3191 = vmatprep.subr.bf16.mxu0 0
    %3192 = vmatpush1.bf16.msra.mxu0 0
    %3193 = vmatprep.subr.bf16.mxu0 0
    %3194 = vmatpush1.bf16.msra.mxu0 0
    %3195 = vmatprep.subr.bf16.mxu0 0
    %3196 = vmatpush1.bf16.msra.mxu0 0
    %3197 = vmatprep.mubr.bf16.mxu0 0
    %3198 = vmatmul.mubr.bf16.gmra.mrb[0].mxu0 %v463
    %v3199 = vpop.f32.mrb[0].mxu0
    %v3200 = vadd.f32 0.0, %v3199
    %v3201 = vpop.f32.mrb[0].mxu0
    %v3202 = vadd.f32 0.0, %v3201
    %v3203 = vpop.f32.mrb[0].mxu0
    %v3204 = vadd.f32 0.0, %v3203
    %v3205 = vpop.f32.mrb[0].mxu0
    %v3206 = vadd.f32 0.0, %v3205
    %3207 = vdwg.mxu0
    %v3208 = vmax.f32 %v3200, 0.0
    %v3209 = vmax.f32 %v3202, 0.0
    %v3210 = vmax.f32 %v3204, 0.0
    %v3211 = vmax.f32 %v3206, 0.0
    %v3212 = vld [vmem:[#allocation13] sm:$0x1]
    %v3213 = vpack.c.bf16 %v3210, %v3208
    %v3214 = vpack.c.bf16 %v3211, %v3209
    %v3216 = vsel %vm159, %v3212, 0
    %3218 = vmatprep.subr.bf16.mxu0 %v3214
    %3219 = vmatpush1.bf16.msra.mxu0 %v3213
    %3220 = vmatprep.subr.bf16.mxu0 0
    %3221 = vmatpush1.bf16.msra.mxu0 0
    %3222 = vmatprep.subr.bf16.mxu0 0
    %3223 = vmatpush1.bf16.msra.mxu0 0
    %3224 = vmatprep.subr.bf16.mxu0 0
    %3225 = vmatpush1.bf16.msra.mxu0 0
    %3226 = vmatprep.subr.bf16.mxu0 0
    %3227 = vmatpush1.bf16.msra.mxu0 0
    %3228 = vmatprep.subr.bf16.mxu0 0
    %3229 = vmatpush1.bf16.msra.mxu0 0
    %3230 = vmatprep.subr.bf16.mxu0 0
    %3231 = vmatpush1.bf16.msra.mxu0 0
    %3232 = vmatprep.subr.bf16.mxu0 0
    %3233 = vmatpush1.bf16.msra.mxu0 0
    %3234 = vmatprep.subr.bf16.mxu0 0
    %3235 = vmatpush1.bf16.msra.mxu0 0
    %3236 = vmatprep.subr.bf16.mxu0 0
    %3237 = vmatpush1.bf16.msra.mxu0 0
    %3238 = vmatprep.subr.bf16.mxu0 0
    %3239 = vmatpush1.bf16.msra.mxu0 0
    %3240 = vmatprep.subr.bf16.mxu0 0
    %3241 = vmatpush1.bf16.msra.mxu0 0
    %3242 = vmatprep.subr.bf16.mxu0 0
    %3243 = vmatpush1.bf16.msra.mxu0 0
    %3244 = vmatprep.subr.bf16.mxu0 0
    %3245 = vmatpush1.bf16.msra.mxu0 0
    %3246 = vmatprep.subr.bf16.mxu0 0
    %3247 = vmatpush1.bf16.msra.mxu0 0
    %3248 = vmatprep.subr.bf16.mxu0 0
    %3249 = vmatpush1.bf16.msra.mxu0 0
    %3250 = vmatprep.mubr.bf16.mxu0 0
    %3251 = vmatmul.mubr.bf16.gmra.mrb[0].mxu0 %v3216
    %v3252 = vpop.f32.mrb[0].mxu0
    %v3253 = vadd.f32 0.0, %v3252
    %v3254 = vpop.f32.mrb[0].mxu0
    %v3255 = vadd.f32 0.0, %v3254
    %v3256 = vpop.f32.mrb[0].mxu0
    %v3257 = vpop.f32.mrb[0].mxu0
    %3258 = vdwg.mxu0
    %v3259 = vpack.c.bf16 %v3253, %v3253
    %v3260 = vpack.c.bf16 %v3255, %v3255
    %v3261 = vld [vmem:[%s7] sm:$0xf]
    %v3262 = vld [vmem:[%s7 + $0x4] sm:$0xf]
    %v3263 = vld [vmem:[%s7 + $0x8] sm:$0xf]
    %v3264 = vld [vmem:[%s7 + $0xc] sm:$0xf]
    %v3265 = vld [vmem:[%s7 + $0x10] sm:$0xf]
    %v3266 = vld [vmem:[%s7 + $0x14] sm:$0xf]
    %v3267 = vld [vmem:[%s7 + $0x18] sm:$0xf]
    %v3268 = vld [vmem:[%s7 + $0x1c] sm:$0xf]
    %v3269 = vld [vmem:[%s7 + $0x20] sm:$0xf]
    %v3270 = vld [vmem:[%s7 + $0x24] sm:$0xf]
    %v3271 = vld [vmem:[%s7 + $0x28] sm:$0xf]
    %v3272 = vld [vmem:[%s7 + $0x2c] sm:$0xf]
    %v3273 = vld [vmem:[%s7 + $0x30] sm:$0xf]
    %v3274 = vld [vmem:[%s7 + $0x34] sm:$0xf]
    %v3275 = vld [vmem:[%s7 + $0x38] sm:$0xf]
    %v3276 = vld [vmem:[%s7 + $0x3c] sm:$0xf]
    %v3277 = vld [vmem:[%s7 + $0x40] sm:$0xf]
    %v3278 = vld [vmem:[%s7 + $0x44] sm:$0xf]
    %v3279 = vld [vmem:[%s7 + $0x48] sm:$0xf]
    %v3280 = vld [vmem:[%s7 + $0x4c] sm:$0xf]
    %v3281 = vld [vmem:[%s7 + $0x50] sm:$0xf]
    %v3282 = vld [vmem:[%s7 + $0x54] sm:$0xf]
    %v3283 = vld [vmem:[%s7 + $0x58] sm:$0xf]
    %v3284 = vld [vmem:[%s7 + $0x5c] sm:$0xf]
    %v3285 = vld [vmem:[%s7 + $0x60] sm:$0xf]
    %v3286 = vld [vmem:[%s7 + $0x64] sm:$0xf]
    %v3287 = vld [vmem:[%s7 + $0x68] sm:$0xf]
    %v3288 = vld [vmem:[%s7 + $0x6c] sm:$0xf]
    %v3289 = vld [vmem:[%s7 + $0x70] sm:$0xf]
    %v3290 = vld [vmem:[%s7 + $0x74] sm:$0xf]
    %v3291 = vld [vmem:[%s7 + $0x78] sm:$0xf]
    %v3292 = vld [vmem:[%s7 + $0x7c] sm:$0xf]
    %v3293 = vld [vmem:[#allocation2] sm:$0x1]
    %v3295 = vlaneseq
    %v3296 = vshrl.u32 %v3295, 7
    %v3297 = vsub.s32 0, %v3296
    %v3298 = vrot.slane %v3293, %v3297
    %v3332 = vunpack.c.l.b16 %v3261
    %v3333 = vunpack.c.l.b16 %v3262
    %v3334 = vunpack.c.l.b16 %v3263
    %v3335 = vunpack.c.l.b16 %v3264
    %v3336 = vunpack.c.l.b16 %v3265
    %v3337 = vunpack.c.l.b16 %v3266
    %v3338 = vunpack.c.l.b16 %v3267
    %v3339 = vunpack.c.l.b16 %v3268
    %v3340 = vunpack.c.l.b16 %v3269
    %v3341 = vunpack.c.l.b16 %v3270
    %v3342 = vunpack.c.l.b16 %v3271
    %v3343 = vunpack.c.l.b16 %v3272
    %v3344 = vunpack.c.l.b16 %v3273
    %v3345 = vunpack.c.l.b16 %v3274
    %v3346 = vunpack.c.l.b16 %v3275
    %v3347 = vunpack.c.l.b16 %v3276
    %v3348 = vunpack.c.l.b16 %v3277
    %v3349 = vunpack.c.l.b16 %v3278
    %v3350 = vunpack.c.l.b16 %v3279
    %v3351 = vunpack.c.l.b16 %v3280
    %v3352 = vunpack.c.l.b16 %v3281
    %v3353 = vunpack.c.l.b16 %v3282
    %v3354 = vunpack.c.l.b16 %v3283
    %v3355 = vunpack.c.l.b16 %v3284
    %v3356 = vunpack.c.l.b16 %v3285
    %v3357 = vunpack.c.l.b16 %v3286
    %v3358 = vunpack.c.l.b16 %v3287
    %v3359 = vunpack.c.l.b16 %v3288
    %v3360 = vunpack.c.l.b16 %v3289
    %v3361 = vunpack.c.l.b16 %v3290
    %v3362 = vunpack.c.l.b16 %v3291
    %v3363 = vunpack.c.l.b16 %v3292
    %v3364 = vpack.c.b16 %v3333, %v3332
    %v3365 = vpack.c.b16 %v3335, %v3334
    %v3366 = vpack.c.b16 %v3337, %v3336
    %v3367 = vpack.c.b16 %v3339, %v3338
    %v3368 = vpack.c.b16 %v3341, %v3340
    %v3369 = vpack.c.b16 %v3343, %v3342
    %v3370 = vpack.c.b16 %v3345, %v3344
    %v3371 = vpack.c.b16 %v3347, %v3346
    %v3372 = vpack.c.b16 %v3349, %v3348
    %v3373 = vpack.c.b16 %v3351, %v3350
    %v3374 = vpack.c.b16 %v3353, %v3352
    %v3375 = vpack.c.b16 %v3355, %v3354
    %v3376 = vpack.c.b16 %v3357, %v3356
    %v3377 = vpack.c.b16 %v3359, %v3358
    %v3378 = vpack.c.b16 %v3361, %v3360
    %v3379 = vpack.c.b16 %v3363, %v3362
    %3396 = vmatprep.subr.bf16.mxu0 0
    %3397 = vmatpush1.bf16.msra.mxu0 %v3364
    %3398 = vmatprep.subr.bf16.mxu0 0
    %3399 = vmatpush1.bf16.msra.mxu0 %v3365
    %3400 = vmatprep.subr.bf16.mxu0 0
    %3401 = vmatpush1.bf16.msra.mxu0 %v3366
    %3402 = vmatprep.subr.bf16.mxu0 0
    %3403 = vmatpush1.bf16.msra.mxu0 %v3367
    %3404 = vmatprep.subr.bf16.mxu0 0
    %3405 = vmatpush1.bf16.msra.mxu0 %v3368
    %3406 = vmatprep.subr.bf16.mxu0 0
    %3407 = vmatpush1.bf16.msra.mxu0 %v3369
    %3408 = vmatprep.subr.bf16.mxu0 0
    %3409 = vmatpush1.bf16.msra.mxu0 %v3370
    %3410 = vmatprep.subr.bf16.mxu0 0
    %3411 = vmatpush1.bf16.msra.mxu0 %v3371
    %3412 = vmatprep.subr.bf16.mxu0 0
    %3413 = vmatpush1.bf16.msra.mxu0 %v3372
    %3414 = vmatprep.subr.bf16.mxu0 0
    %3415 = vmatpush1.bf16.msra.mxu0 %v3373
    %3416 = vmatprep.subr.bf16.mxu0 0
    %3417 = vmatpush1.bf16.msra.mxu0 %v3374
    %3418 = vmatprep.subr.bf16.mxu0 0
    %3419 = vmatpush1.bf16.msra.mxu0 %v3375
    %3420 = vmatprep.subr.bf16.mxu0 0
    %3421 = vmatpush1.bf16.msra.mxu0 %v3376
    %3422 = vmatprep.subr.bf16.mxu0 0
    %3423 = vmatpush1.bf16.msra.mxu0 %v3377
    %3424 = vmatprep.subr.bf16.mxu0 0
    %3425 = vmatpush1.bf16.msra.mxu0 %v3378
    %3426 = vmatprep.subr.bf16.mxu0 0
    %3427 = vmatpush1.bf16.msra.mxu0 %v3379
    %3428 = vmatprep.mubr.bf16.mxu0 %v3260
    %3429 = vmatmul.mubr.bf16.gmra.mrb[0].mxu0 %v3259
    %v3430 = vpop.f32.mrb[0].mxu0
    %v3431 = vadd.f32 %v3298, %v3430
    %v3432 = vpop.f32.mrb[0].mxu0
    %v3433 = vpop.f32.mrb[0].mxu0
    %v3434 = vpop.f32.mrb[0].mxu0
    %3435 = vdwg.mxu0
    %vm3436 = vcmask 1024
    %3437 = vst.msk [vmem:[%s9] sm:$0x3] %vm3436, %v3431
    // Predicated region
    $region66: #{tpu_custom_call.1} parent=1 // pred_check
      _
    $region67: #{tpu_custom_call.1} parent=1 // pred_check_branch
      %3439 = sbr.rel (0) target = $region69
    $region68: #{tpu_custom_call.1} parent=1 // pred_region
      _
    $region69: #{tpu_custom_call.1} parent=1 // pred_fallthru
      _
    // Predicated region
    $region70: #{tpu_custom_call.1} parent=1 // pred_check
      _
    $region71: #{tpu_custom_call.1} parent=1 // pred_check_branch
      %3441 = sbr.rel (0) target = $region73
    $region72: #{tpu_custom_call.1} parent=1 // pred_region
      _
    $region73: #{tpu_custom_call.1} parent=1 // pred_fallthru
      _
    %3442 = vsyncpa [#allocation4], 1
    %3443 = vsyncpa [#allocation6], 1
    %3444 = vsyncpa [#allocation9], 1
    %3445 = vsyncpa [#allocation12], 1

</llo_original>
